<compile_context>
chip_gen: v6e
topology: v6e:2x2x1
jax: 0.10.0
libtpu: 0.0.40
codegen_flags: <defaults>
</compile_context>

<pallas_src>
import jax
import jax.numpy as jnp
from jax.experimental import pallas as pl
from jax.experimental.pallas import tpu as pltpu

LRELU_SLOPE = 0.2
BN_EPS = 1e-5
VMEM_LIMIT = 32 * 1024 * 1024  # conservative; fits all generations incl. v7x
TM_TARGET = 256                # M-tile rows


def _round_up(x, m):
    return (x + m - 1) // m * m


def _cpad(c):
    # pad channel counts to a multiple of 8 -> K = 4*4*Cpad is a multiple of 128
    return _round_up(max(c, 8), 8)


def _pad_axis(a, axis, size):
    if a.shape[axis] == size:
        return a
    widths = [(0, 0)] * a.ndim
    widths[axis] = (0, size - a.shape[axis])
    return jnp.pad(a, widths)


# ---------------------------------------------------------------------------
# Pallas kernels
# ---------------------------------------------------------------------------
def _mm_lrelu_kernel(p_ref, w_ref, o_ref):
    y = jnp.dot(p_ref[...], w_ref[...], preferred_element_type=jnp.float32)
    o_ref[...] = jnp.where(y > 0, y, LRELU_SLOPE * y).astype(o_ref.dtype)


def _mm_sigmoid_kernel(p_ref, w_ref, o_ref):
    y = jnp.dot(p_ref[...], w_ref[...], preferred_element_type=jnp.float32)
    o_ref[...] = jax.nn.sigmoid(y).astype(o_ref.dtype)


def _mm_stats_kernel(p_ref, w_ref, y_ref, stat_ref):
    # conv-as-matmul; also accumulate per-channel sum / sum-of-squares into a
    # grid-resident (2, Cout) output (true batch statistics despite M tiling).
    y = jnp.dot(p_ref[...], w_ref[...], preferred_element_type=jnp.float32)
    y_ref[...] = y
    s = jnp.sum(y, axis=0, keepdims=True)
    ss = jnp.sum(y * y, axis=0, keepdims=True)
    upd = jnp.concatenate([s, ss], axis=0)  # (2, Cout)

    @pl.when(pl.program_id(0) == 0)
    def _init():
        stat_ref[...] = upd

    @pl.when(pl.program_id(0) > 0)
    def _acc():
        stat_ref[...] = stat_ref[...] + upd


def _affine_lrelu_kernel(y_ref, scale_ref, shift_ref, o_ref):
    z = y_ref[...] * scale_ref[...] + shift_ref[...]
    o_ref[...] = jnp.where(z > 0, z, LRELU_SLOPE * z).astype(o_ref.dtype)


# ---------------------------------------------------------------------------
# pallas_call wrappers (M-tiled, resident weights)
# ---------------------------------------------------------------------------
def _choose_tm(m):
    return min(TM_TARGET, _round_up(m, 8))


def _tiled_matmul(kernel, p, wm, cout, out_dtype, with_stats=False):
    M, K = p.shape
    tm = _choose_tm(M)
    Mp = _round_up(M, tm)
    p = _pad_axis(p, 0, Mp)  # zero rows: contribute 0 to matmul & BN stats
    grid = (Mp // tm,)

    in_specs = [
        pl.BlockSpec((tm, K), lambda i: (i, 0)),
        pl.BlockSpec((K, cout), lambda i: (0, 0)),   # weights resident
    ]
    if with_stats:
        out_shape = (jax.ShapeDtypeStruct((Mp, cout), jnp.float32),
                     jax.ShapeDtypeStruct((2, cout), jnp.float32))
        out_specs = (pl.BlockSpec((tm, cout), lambda i: (i, 0)),
                     pl.BlockSpec((2, cout), lambda i: (0, 0)))
        semantics = ("arbitrary",)   # stats output is a resident accumulator
    else:
        out_shape = jax.ShapeDtypeStruct((Mp, cout), out_dtype)
        out_specs = pl.BlockSpec((tm, cout), lambda i: (i, 0))
        semantics = ("parallel",)

    res = pl.pallas_call(
        kernel,
        grid=grid,
        in_specs=in_specs,
        out_specs=out_specs,
        out_shape=out_shape,
        compiler_params=pltpu.CompilerParams(
            dimension_semantics=semantics,
            vmem_limit_bytes=VMEM_LIMIT),
    )(p, wm)
    return res, M


def _tiled_affine_lrelu(y, scale, shift, out_dtype):
    Mp, C = y.shape
    tm = _choose_tm(Mp)  # Mp is already a multiple of this tm
    grid = (Mp // tm,)
    return pl.pallas_call(
        _affine_lrelu_kernel,
        grid=grid,
        in_specs=[pl.BlockSpec((tm, C), lambda i: (i, 0)),
                  pl.BlockSpec((1, C), lambda i: (0, 0)),
                  pl.BlockSpec((1, C), lambda i: (0, 0))],
        out_specs=pl.BlockSpec((tm, C), lambda i: (i, 0)),
        out_shape=jax.ShapeDtypeStruct((Mp, C), out_dtype),
        compiler_params=pltpu.CompilerParams(
            dimension_semantics=("parallel",),
            vmem_limit_bytes=VMEM_LIMIT),
    )(y, scale, shift)


# ---------------------------------------------------------------------------
# im2col (trace-time reshuffle) + layer wrappers
# ---------------------------------------------------------------------------
def _im2col(x_nhwc, kh, kw, stride, pad):
    N, H, W, C = x_nhwc.shape
    if pad:
        x_nhwc = jnp.pad(x_nhwc, ((0, 0), (pad, pad), (pad, pad), (0, 0)))
    Hp, Wp = H + 2 * pad, W + 2 * pad
    OH = (Hp - kh) // stride + 1
    OW = (Wp - kw) // stride + 1
    cols = []
    for i in range(kh):
        for j in range(kw):
            cols.append(x_nhwc[:, i:i + stride * (OH - 1) + 1:stride,
                               j:j + stride * (OW - 1) + 1:stride, :])
    p = jnp.stack(cols, axis=3)  # (N, OH, OW, KH*KW, C)
    return p.reshape(N * OH * OW, kh * kw * C), N, OH, OW


def _pad_weight(w):
    kh, kw, cin, cout = w.shape
    w = _pad_axis(w, 2, _cpad(cin))
    w = _pad_axis(w, 3, _cpad(cout))
    return w


def _conv_lrelu(x, w, stride=2, pad=1):
    wp = _pad_weight(w)
    kh, kw, cin_p, cout_p = wp.shape
    p, N, OH, OW = _im2col(x, kh, kw, stride, pad)
    wm = wp.reshape(kh * kw * cin_p, cout_p).astype(jnp.bfloat16)
    out, M = _tiled_matmul(_mm_lrelu_kernel, p, wm, cout_p, jnp.bfloat16)
    return out[:M].reshape(N, OH, OW, cout_p)


def _conv_bn_lrelu(x, w, gamma, beta, stride=2, pad=1):
    wp = _pad_weight(w)
    kh, kw, cin_p, cout_p = wp.shape
    p, N, OH, OW = _im2col(x, kh, kw, stride, pad)
    wm = wp.reshape(kh * kw * cin_p, cout_p).astype(jnp.bfloat16)

    # pass 1: tiled matmul + per-channel sum / sumsq (true batch statistics)
    (y, stats), M = _tiled_matmul(_mm_stats_kernel, p, wm, cout_p, None,
                                  with_stats=True)

    gamma_p = _pad_axis(gamma.astype(jnp.float32), 0, cout_p)  # zero pad -> 0 out
    beta_p = _pad_axis(beta.astype(jnp.float32), 0, cout_p)
    mean = stats[0] / float(M)
    var = jnp.maximum(stats[1] / float(M) - mean * mean, 0.0)  # biased variance
    rstd = jax.lax.rsqrt(var + BN_EPS)
    scale = (gamma_p * rstd)[None, :]
    shift = (beta_p - mean * gamma_p * rstd)[None, :]

    # pass 2: tiled normalize + affine + LeakyReLU
    z = _tiled_affine_lrelu(y, scale, shift, jnp.bfloat16)
    return z[:M].reshape(N, OH, OW, cout_p)


def _conv_sigmoid(x, w, stride=1, pad=0):
    wp = _pad_weight(w)
    kh, kw, cin_p, cout_p = wp.shape
    p, N, OH, OW = _im2col(x, kh, kw, stride, pad)
    wm = wp.reshape(kh * kw * cin_p, cout_p).astype(jnp.bfloat16)
    out, M = _tiled_matmul(_mm_sigmoid_kernel, p, wm, cout_p, jnp.float32)
    cout_real = w.shape[3]
    return out[:M, :cout_real].reshape(N, OH, OW, cout_real)


def discriminator_forward(x_nchw, params):
    x = jnp.transpose(x_nchw, (0, 2, 3, 1)).astype(jnp.float32)  # NCHW -> NHWC
    x = _pad_axis(x, 3, _cpad(x.shape[3])).astype(jnp.bfloat16)  # lane-friendly Cin
    h = _conv_lrelu(x, params["w1"])
    h = _conv_bn_lrelu(h, params["w2"], params["g2"], params["b2"])
    h = _conv_bn_lrelu(h, params["w3"], params["g3"], params["b3"])
    h = _conv_bn_lrelu(h, params["w4"], params["g4"], params["b4"])
    out = _conv_sigmoid(h, params["w5"])
    return jnp.transpose(out, (0, 3, 1, 2))  # (N, 1, 1, 1)


# ---------------------------------------------------------------------------
# Deterministic parameter init (DCGAN: conv ~ N(0, 0.02), BN gamma ~ N(1, 0.02),
# beta = 0).  Weights stored as (KH, KW, Cin, Cout).
# ---------------------------------------------------------------------------
def init_params(key, ndf, n_channels):
    ks = jax.random.split(key, 8)

    def conv_w(k, cin, cout):
        return 0.02 * jax.random.normal(k, (4, 4, cin, cout), jnp.float32)

    def bn_g(k, c):
        return 1.0 + 0.02 * jax.random.normal(k, (c,), jnp.float32)

    return {
        "w1": conv_w(ks[0], n_channels, ndf),
        "w2": conv_w(ks[1], ndf, ndf * 2),
        "g2": bn_g(ks[2], ndf * 2),
        "b2": jnp.zeros((ndf * 2,), jnp.float32),
        "w3": conv_w(ks[3], ndf * 2, ndf * 4),
        "g3": bn_g(ks[4], ndf * 4),
        "b3": jnp.zeros((ndf * 4,), jnp.float32),
        "w4": conv_w(ks[5], ndf * 4, ndf * 8),
        "g4": bn_g(ks[6], ndf * 8),
        "b4": jnp.zeros((ndf * 8,), jnp.float32),
        "w5": conv_w(ks[7], ndf * 8, 1),
    }


if __name__ == "__main__":
    # The final 4x4 stride-1 valid conv requires 64x64 input spatial dims.
    batch, n_channels, ndf, spatial = 2, 3, 8, 64
    key = jax.random.PRNGKey(0)
    kx, kp = jax.random.split(key)
    x = jax.random.normal(kx, (batch, n_channels, spatial, spatial), jnp.float32)
    params = init_params(kp, ndf, n_channels)

    out = jax.jit(discriminator_forward)(x, params)
    out = jax.block_until_ready(out)

    assert out.shape == (batch, 1, 1, 1), out.shape
    assert bool(jnp.all((out >= 0.0) & (out <= 1.0)))
    print("KERNEL_OK")
</pallas_src>

<mosaic_0001>
module attributes {stable_mosaic.version = 11 : i64} {
  func.func @_mm_lrelu_kernel(%arg0: i32, %arg1: memref<256x128xbf16, #tpu.memory_space<vmem>>, %arg2: memref<128x8xbf16, #tpu.memory_space<vmem>>, %arg3: memref<256x8xbf16, #tpu.memory_space<vmem>>) attributes {dimension_semantics = [#tpu.dimension_semantics<parallel>], iteration_bounds = array<i64: 8>, scalar_prefetch = 0 : i64, scratch_operands = 0 : i64, tpu.core_type = #tpu.core_type<tc>, window_params = [{transform_indices = @transform_0, window_bounds = array<i64: 256, 128>}, {pipeline_mode = #tpu.pipeline_mode<synchronous>, transform_indices = @transform_1, window_bounds = array<i64: 128, 8>}, {transform_indices = @transform_2, window_bounds = array<i64: 256, 8>}]} {
    %c0 = arith.constant 0 : index
    %c0_0 = arith.constant 0 : index
    %0 = vector.load %arg1[%c0, %c0_0] : memref<256x128xbf16, #tpu.memory_space<vmem>>, vector<256x128xbf16>
    %c0_1 = arith.constant 0 : index
    %c0_2 = arith.constant 0 : index
    %1 = vector.load %arg2[%c0_1, %c0_2] : memref<128x8xbf16, #tpu.memory_space<vmem>>, vector<128x8xbf16>
    %cst = arith.constant dense<0.000000e+00> : vector<256x8xf32>
    %2 = tpu.matmul %0, %1, %cst {dimension_numbers = #tpu.dot_dimension_numbers<[1], [0], [0], [1], [0, 0, 1, 1], [], []>} : vector<256x128xbf16>, vector<128x8xbf16>, vector<256x8xf32> -> vector<256x8xf32>
    %cst_3 = arith.constant 0.000000e+00 : f32
    %3 = vector.broadcast %cst_3 : f32 to vector<256x8xf32>
    %4 = arith.cmpf ogt, %2, %3 : vector<256x8xf32>
    %cst_4 = arith.constant 2.000000e-01 : f32
    %5 = vector.broadcast %cst_4 : f32 to vector<256x8xf32>
    %6 = arith.mulf %5, %2 : vector<256x8xf32>
    %7 = arith.select %4, %2, %6 : vector<256x8xi1>, vector<256x8xf32>
    %8 = arith.truncf %7 : vector<256x8xf32> to vector<256x8xbf16>
    %c0_5 = arith.constant 0 : index
    %c0_6 = arith.constant 0 : index
    %9 = vector.load %arg3[%c0_5, %c0_6] : memref<256x8xbf16, #tpu.memory_space<vmem>>, vector<256x8xbf16>
    tpu.vector_store %arg3[%c0_5, %c0_6], %8 {strides = array<i32>} : memref<256x8xbf16, #tpu.memory_space<vmem>>, vector<256x8xbf16>,
    return
  }
  func.func @transform_0(%arg0: i32) -> (i32, i32) {
    %c0_i32 = arith.constant 0 : i32
    %c0_i32_0 = arith.constant 0 : i32
    return %arg0, %c0_i32 : i32, i32
  }
  func.func @transform_1(%arg0: i32) -> (i32, i32) {
    %c0_i32 = arith.constant 0 : i32
    %c0_i32_0 = arith.constant 0 : i32
    %c0_i32_1 = arith.constant 0 : i32
    return %c0_i32, %c0_i32_0 : i32, i32
  }
  func.func @transform_2(%arg0: i32) -> (i32, i32) {
    %c0_i32 = arith.constant 0 : i32
    %c0_i32_0 = arith.constant 0 : i32
    return %arg0, %c0_i32 : i32, i32
  }
}

module attributes {stable_mosaic.version = 11 : i64} {
  func.func @_mm_stats_kernel(%arg0: i32, %arg1: memref<256x128xbf16, #tpu.memory_space<vmem>>, %arg2: memref<128x16xbf16, #tpu.memory_space<vmem>>, %arg3: memref<256x16xf32, #tpu.memory_space<vmem>>, %arg4: memref<2x16xf32, #tpu.memory_space<vmem>>) attributes {dimension_semantics = [#tpu.dimension_semantics<arbitrary>], iteration_bounds = array<i64: 2>, scalar_prefetch = 0 : i64, scratch_operands = 0 : i64, tpu.core_type = #tpu.core_type<tc>, window_params = [{transform_indices = @transform_0, window_bounds = array<i64: 256, 128>}, {pipeline_mode = #tpu.pipeline_mode<synchronous>, transform_indices = @transform_1, window_bounds = array<i64: 128, 16>}, {transform_indices = @transform_2, window_bounds = array<i64: 256, 16>}, {pipeline_mode = #tpu.pipeline_mode<synchronous>, transform_indices = @transform_3, window_bounds = array<i64: 2, 16>}]} {
    %c0 = arith.constant 0 : index
    %c0_0 = arith.constant 0 : index
    %0 = vector.load %arg1[%c0, %c0_0] : memref<256x128xbf16, #tpu.memory_space<vmem>>, vector<256x128xbf16>
    %c0_1 = arith.constant 0 : index
    %c0_2 = arith.constant 0 : index
    %1 = vector.load %arg2[%c0_1, %c0_2] : memref<128x16xbf16, #tpu.memory_space<vmem>>, vector<128x16xbf16>
    %cst = arith.constant dense<0.000000e+00> : vector<256x16xf32>
    %2 = tpu.matmul %0, %1, %cst {dimension_numbers = #tpu.dot_dimension_numbers<[1], [0], [0], [1], [0, 0, 1, 1], [], []>} : vector<256x128xbf16>, vector<128x16xbf16>, vector<256x16xf32> -> vector<256x16xf32>
    %c0_3 = arith.constant 0 : index
    %c0_4 = arith.constant 0 : index
    %3 = vector.load %arg3[%c0_3, %c0_4] : memref<256x16xf32, #tpu.memory_space<vmem>>, vector<256x16xf32>
    tpu.vector_store %arg3[%c0_3, %c0_4], %2 {strides = array<i32>} : memref<256x16xf32, #tpu.memory_space<vmem>>, vector<256x16xf32>,
    %cst_5 = arith.constant dense<0.000000e+00> : vector<16xf32>
    %4 = vector.multi_reduction <add>, %2, %cst_5 [0] : vector<256x16xf32> to vector<16xf32>
    %5 = vector.shape_cast %4 : vector<16xf32> to vector<1x16xf32>
    %6 = arith.mulf %2, %2 : vector<256x16xf32>
    %cst_6 = arith.constant dense<0.000000e+00> : vector<16xf32>
    %7 = vector.multi_reduction <add>, %6, %cst_6 [0] : vector<256x16xf32> to vector<16xf32>
    %8 = vector.shape_cast %7 : vector<16xf32> to vector<1x16xf32>
    %9 = tpu.concatenate %5, %8 in 0 : vector<1x16xf32>, vector<1x16xf32> -> vector<2x16xf32>
    %c0_i32 = arith.constant 0 : i32
    %10 = arith.cmpi eq, %arg0, %c0_i32 : i32
    %11 = arith.extui %10 : i1 to i32
    %c0_i32_7 = arith.constant 0 : i32
    %12 = arith.cmpi ne, %11, %c0_i32_7 : i32
    scf.if %12 {
      %c0_10 = arith.constant 0 : index
      %c0_11 = arith.constant 0 : index
      %16 = vector.load %arg4[%c0_10, %c0_11] : memref<2x16xf32, #tpu.memory_space<vmem>>, vector<2x16xf32>
      tpu.vector_store %arg4[%c0_10, %c0_11], %9 {strides = array<i32>} : memref<2x16xf32, #tpu.memory_space<vmem>>, vector<2x16xf32>,
    } else {
    }
    %c0_i32_8 = arith.constant 0 : i32
    %13 = arith.cmpi sgt, %arg0, %c0_i32_8 : i32
    %14 = arith.extui %13 : i1 to i32
    %c0_i32_9 = arith.constant 0 : i32
    %15 = arith.cmpi ne, %14, %c0_i32_9 : i32
    scf.if %15 {
      %c0_10 = arith.constant 0 : index
      %c0_11 = arith.constant 0 : index
      %16 = vector.load %arg4[%c0_10, %c0_11] : memref<2x16xf32, #tpu.memory_space<vmem>>, vector<2x16xf32>
      %17 = arith.addf %16, %9 : vector<2x16xf32>
      %c0_12 = arith.constant 0 : index
      %c0_13 = arith.constant 0 : index
      %18 = vector.load %arg4[%c0_12, %c0_13] : memref<2x16xf32, #tpu.memory_space<vmem>>, vector<2x16xf32>
      tpu.vector_store %arg4[%c0_12, %c0_13], %17 {strides = array<i32>} : memref<2x16xf32, #tpu.memory_space<vmem>>, vector<2x16xf32>,
    } else {
    }
    return
  }
  func.func @transform_0(%arg0: i32) -> (i32, i32) {
    %c0_i32 = arith.constant 0 : i32
    %c0_i32_0 = arith.constant 0 : i32
    return %arg0, %c0_i32 : i32, i32
  }
  func.func @transform_1(%arg0: i32) -> (i32, i32) {
    %c0_i32 = arith.constant 0 : i32
    %c0_i32_0 = arith.constant 0 : i32
    %c0_i32_1 = arith.constant 0 : i32
    return %c0_i32, %c0_i32_0 : i32, i32
  }
  func.func @transform_2(%arg0: i32) -> (i32, i32) {
    %c0_i32 = arith.constant 0 : i32
    %c0_i32_0 = arith.constant 0 : i32
    return %arg0, %c0_i32 : i32, i32
  }
  func.func @transform_3(%arg0: i32) -> (i32, i32) {
    %c0_i32 = arith.constant 0 : i32
    %c0_i32_0 = arith.constant 0 : i32
    %c0_i32_1 = arith.constant 0 : i32
    return %c0_i32, %c0_i32_0 : i32, i32
  }
}

module attributes {stable_mosaic.version = 11 : i64} {
  func.func @_affine_lrelu_kernel(%arg0: i32, %arg1: memref<256x16xf32, #tpu.memory_space<vmem>>, %arg2: memref<1x16xf32, #tpu.memory_space<vmem>>, %arg3: memref<1x16xf32, #tpu.memory_space<vmem>>, %arg4: memref<256x16xbf16, #tpu.memory_space<vmem>>) attributes {dimension_semantics = [#tpu.dimension_semantics<parallel>], iteration_bounds = array<i64: 2>, scalar_prefetch = 0 : i64, scratch_operands = 0 : i64, tpu.core_type = #tpu.core_type<tc>, window_params = [{transform_indices = @transform_0, window_bounds = array<i64: 256, 16>}, {pipeline_mode = #tpu.pipeline_mode<synchronous>, transform_indices = @transform_1, window_bounds = array<i64: 1, 16>}, {pipeline_mode = #tpu.pipeline_mode<synchronous>, transform_indices = @transform_2, window_bounds = array<i64: 1, 16>}, {transform_indices = @transform_3, window_bounds = array<i64: 256, 16>}]} {
    %c0 = arith.constant 0 : index
    %c0_0 = arith.constant 0 : index
    %0 = vector.load %arg1[%c0, %c0_0] : memref<256x16xf32, #tpu.memory_space<vmem>>, vector<256x16xf32>
    %c0_1 = arith.constant 0 : index
    %c0_2 = arith.constant 0 : index
    %1 = vector.load %arg2[%c0_1, %c0_2] : memref<1x16xf32, #tpu.memory_space<vmem>>, vector<1x16xf32>
    %2 = vector.broadcast %1 : vector<1x16xf32> to vector<256x16xf32>
    %3 = arith.mulf %0, %2 : vector<256x16xf32>
    %c0_3 = arith.constant 0 : index
    %c0_4 = arith.constant 0 : index
    %4 = vector.load %arg3[%c0_3, %c0_4] : memref<1x16xf32, #tpu.memory_space<vmem>>, vector<1x16xf32>
    %5 = vector.broadcast %4 : vector<1x16xf32> to vector<256x16xf32>
    %6 = arith.addf %3, %5 : vector<256x16xf32>
    %cst = arith.constant 0.000000e+00 : f32
    %7 = vector.broadcast %cst : f32 to vector<256x16xf32>
    %8 = arith.cmpf ogt, %6, %7 : vector<256x16xf32>
    %cst_5 = arith.constant 2.000000e-01 : f32
    %9 = vector.broadcast %cst_5 : f32 to vector<256x16xf32>
    %10 = arith.mulf %9, %6 : vector<256x16xf32>
    %11 = arith.select %8, %6, %10 : vector<256x16xi1>, vector<256x16xf32>
    %12 = arith.truncf %11 : vector<256x16xf32> to vector<256x16xbf16>
    %c0_6 = arith.constant 0 : index
    %c0_7 = arith.constant 0 : index
    %13 = vector.load %arg4[%c0_6, %c0_7] : memref<256x16xbf16, #tpu.memory_space<vmem>>, vector<256x16xbf16>
    tpu.vector_store %arg4[%c0_6, %c0_7], %12 {strides = array<i32>} : memref<256x16xbf16, #tpu.memory_space<vmem>>, vector<256x16xbf16>,
    return
  }
  func.func @transform_0(%arg0: i32) -> (i32, i32) {
    %c0_i32 = arith.constant 0 : i32
    %c0_i32_0 = arith.constant 0 : i32
    return %arg0, %c0_i32 : i32, i32
  }
  func.func @transform_1(%arg0: i32) -> (i32, i32) {
    %c0_i32 = arith.constant 0 : i32
    %c0_i32_0 = arith.constant 0 : i32
    %c0_i32_1 = arith.constant 0 : i32
    return %c0_i32, %c0_i32_0 : i32, i32
  }
  func.func @transform_2(%arg0: i32) -> (i32, i32) {
    %c0_i32 = arith.constant 0 : i32
    %c0_i32_0 = arith.constant 0 : i32
    %c0_i32_1 = arith.constant 0 : i32
    return %c0_i32, %c0_i32_0 : i32, i32
  }
  func.func @transform_3(%arg0: i32) -> (i32, i32) {
    %c0_i32 = arith.constant 0 : i32
    %c0_i32_0 = arith.constant 0 : i32
    return %arg0, %c0_i32 : i32, i32
  }
}

module attributes {stable_mosaic.version = 11 : i64} {
  func.func @_mm_stats_kernel(%arg0: i32, %arg1: memref<128x256xbf16, #tpu.memory_space<vmem>>, %arg2: memref<256x32xbf16, #tpu.memory_space<vmem>>, %arg3: memref<128x32xf32, #tpu.memory_space<vmem>>, %arg4: memref<2x32xf32, #tpu.memory_space<vmem>>) attributes {dimension_semantics = [#tpu.dimension_semantics<arbitrary>], iteration_bounds = array<i64: 1>, scalar_prefetch = 0 : i64, scratch_operands = 0 : i64, tpu.core_type = #tpu.core_type<tc>, window_params = [{transform_indices = @transform_0, window_bounds = array<i64: 128, 256>}, {pipeline_mode = #tpu.pipeline_mode<synchronous>, transform_indices = @transform_1, window_bounds = array<i64: 256, 32>}, {transform_indices = @transform_2, window_bounds = array<i64: 128, 32>}, {pipeline_mode = #tpu.pipeline_mode<synchronous>, transform_indices = @transform_3, window_bounds = array<i64: 2, 32>}]} {
    %c0 = arith.constant 0 : index
    %c0_0 = arith.constant 0 : index
    %0 = vector.load %arg1[%c0, %c0_0] : memref<128x256xbf16, #tpu.memory_space<vmem>>, vector<128x256xbf16>
    %c0_1 = arith.constant 0 : index
    %c0_2 = arith.constant 0 : index
    %1 = vector.load %arg2[%c0_1, %c0_2] : memref<256x32xbf16, #tpu.memory_space<vmem>>, vector<256x32xbf16>
    %cst = arith.constant dense<0.000000e+00> : vector<128x32xf32>
    %2 = tpu.matmul %0, %1, %cst {dimension_numbers = #tpu.dot_dimension_numbers<[1], [0], [0], [1], [0, 0, 1, 1], [], []>} : vector<128x256xbf16>, vector<256x32xbf16>, vector<128x32xf32> -> vector<128x32xf32>
    %c0_3 = arith.constant 0 : index
    %c0_4 = arith.constant 0 : index
    %3 = vector.load %arg3[%c0_3, %c0_4] : memref<128x32xf32, #tpu.memory_space<vmem>>, vector<128x32xf32>
    tpu.vector_store %arg3[%c0_3, %c0_4], %2 {strides = array<i32>} : memref<128x32xf32, #tpu.memory_space<vmem>>, vector<128x32xf32>,
    %cst_5 = arith.constant dense<0.000000e+00> : vector<32xf32>
    %4 = vector.multi_reduction <add>, %2, %cst_5 [0] : vector<128x32xf32> to vector<32xf32>
    %5 = vector.shape_cast %4 : vector<32xf32> to vector<1x32xf32>
    %6 = arith.mulf %2, %2 : vector<128x32xf32>
    %cst_6 = arith.constant dense<0.000000e+00> : vector<32xf32>
    %7 = vector.multi_reduction <add>, %6, %cst_6 [0] : vector<128x32xf32> to vector<32xf32>
    %8 = vector.shape_cast %7 : vector<32xf32> to vector<1x32xf32>
    %9 = tpu.concatenate %5, %8 in 0 : vector<1x32xf32>, vector<1x32xf32> -> vector<2x32xf32>
    %c0_i32 = arith.constant 0 : i32
    %10 = arith.cmpi eq, %arg0, %c0_i32 : i32
    %11 = arith.extui %10 : i1 to i32
    %c0_i32_7 = arith.constant 0 : i32
    %12 = arith.cmpi ne, %11, %c0_i32_7 : i32
    scf.if %12 {
      %c0_10 = arith.constant 0 : index
      %c0_11 = arith.constant 0 : index
      %16 = vector.load %arg4[%c0_10, %c0_11] : memref<2x32xf32, #tpu.memory_space<vmem>>, vector<2x32xf32>
      tpu.vector_store %arg4[%c0_10, %c0_11], %9 {strides = array<i32>} : memref<2x32xf32, #tpu.memory_space<vmem>>, vector<2x32xf32>,
    } else {
    }
    %c0_i32_8 = arith.constant 0 : i32
    %13 = arith.cmpi sgt, %arg0, %c0_i32_8 : i32
    %14 = arith.extui %13 : i1 to i32
    %c0_i32_9 = arith.constant 0 : i32
    %15 = arith.cmpi ne, %14, %c0_i32_9 : i32
    scf.if %15 {
      %c0_10 = arith.constant 0 : index
      %c0_11 = arith.constant 0 : index
      %16 = vector.load %arg4[%c0_10, %c0_11] : memref<2x32xf32, #tpu.memory_space<vmem>>, vector<2x32xf32>
      %17 = arith.addf %16, %9 : vector<2x32xf32>
      %c0_12 = arith.constant 0 : index
      %c0_13 = arith.constant 0 : index
      %18 = vector.load %arg4[%c0_12, %c0_13] : memref<2x32xf32, #tpu.memory_space<vmem>>, vector<2x32xf32>
      tpu.vector_store %arg4[%c0_12, %c0_13], %17 {strides = array<i32>} : memref<2x32xf32, #tpu.memory_space<vmem>>, vector<2x32xf32>,
    } else {
    }
    return
  }
  func.func @transform_0(%arg0: i32) -> (i32, i32) {
    %c0_i32 = arith.constant 0 : i32
    %c0_i32_0 = arith.constant 0 : i32
    return %arg0, %c0_i32 : i32, i32
  }
  func.func @transform_1(%arg0: i32) -> (i32, i32) {
    %c0_i32 = arith.constant 0 : i32
    %c0_i32_0 = arith.constant 0 : i32
    %c0_i32_1 = arith.constant 0 : i32
    return %c0_i32, %c0_i32_0 : i32, i32
  }
  func.func @transform_2(%arg0: i32) -> (i32, i32) {
    %c0_i32 = arith.constant 0 : i32
    %c0_i32_0 = arith.constant 0 : i32
    return %arg0, %c0_i32 : i32, i32
  }
  func.func @transform_3(%arg0: i32) -> (i32, i32) {
    %c0_i32 = arith.constant 0 : i32
    %c0_i32_0 = arith.constant 0 : i32
    %c0_i32_1 = arith.constant 0 : i32
    return %c0_i32, %c0_i32_0 : i32, i32
  }
}

module attributes {stable_mosaic.version = 11 : i64} {
  func.func @_affine_lrelu_kernel(%arg0: i32, %arg1: memref<128x32xf32, #tpu.memory_space<vmem>>, %arg2: memref<1x32xf32, #tpu.memory_space<vmem>>, %arg3: memref<1x32xf32, #tpu.memory_space<vmem>>, %arg4: memref<128x32xbf16, #tpu.memory_space<vmem>>) attributes {dimension_semantics = [#tpu.dimension_semantics<parallel>], iteration_bounds = array<i64: 1>, scalar_prefetch = 0 : i64, scratch_operands = 0 : i64, tpu.core_type = #tpu.core_type<tc>, window_params = [{transform_indices = @transform_0, window_bounds = array<i64: 128, 32>}, {pipeline_mode = #tpu.pipeline_mode<synchronous>, transform_indices = @transform_1, window_bounds = array<i64: 1, 32>}, {pipeline_mode = #tpu.pipeline_mode<synchronous>, transform_indices = @transform_2, window_bounds = array<i64: 1, 32>}, {transform_indices = @transform_3, window_bounds = array<i64: 128, 32>}]} {
    %c0 = arith.constant 0 : index
    %c0_0 = arith.constant 0 : index
    %0 = vector.load %arg1[%c0, %c0_0] : memref<128x32xf32, #tpu.memory_space<vmem>>, vector<128x32xf32>
    %c0_1 = arith.constant 0 : index
    %c0_2 = arith.constant 0 : index
    %1 = vector.load %arg2[%c0_1, %c0_2] : memref<1x32xf32, #tpu.memory_space<vmem>>, vector<1x32xf32>
    %2 = vector.broadcast %1 : vector<1x32xf32> to vector<128x32xf32>
    %3 = arith.mulf %0, %2 : vector<128x32xf32>
    %c0_3 = arith.constant 0 : index
    %c0_4 = arith.constant 0 : index
    %4 = vector.load %arg3[%c0_3, %c0_4] : memref<1x32xf32, #tpu.memory_space<vmem>>, vector<1x32xf32>
    %5 = vector.broadcast %4 : vector<1x32xf32> to vector<128x32xf32>
    %6 = arith.addf %3, %5 : vector<128x32xf32>
    %cst = arith.constant 0.000000e+00 : f32
    %7 = vector.broadcast %cst : f32 to vector<128x32xf32>
    %8 = arith.cmpf ogt, %6, %7 : vector<128x32xf32>
    %cst_5 = arith.constant 2.000000e-01 : f32
    %9 = vector.broadcast %cst_5 : f32 to vector<128x32xf32>
    %10 = arith.mulf %9, %6 : vector<128x32xf32>
    %11 = arith.select %8, %6, %10 : vector<128x32xi1>, vector<128x32xf32>
    %12 = arith.truncf %11 : vector<128x32xf32> to vector<128x32xbf16>
    %c0_6 = arith.constant 0 : index
    %c0_7 = arith.constant 0 : index
    %13 = vector.load %arg4[%c0_6, %c0_7] : memref<128x32xbf16, #tpu.memory_space<vmem>>, vector<128x32xbf16>
    tpu.vector_store %arg4[%c0_6, %c0_7], %12 {strides = array<i32>} : memref<128x32xbf16, #tpu.memory_space<vmem>>, vector<128x32xbf16>,
    return
  }
  func.func @transform_0(%arg0: i32) -> (i32, i32) {
    %c0_i32 = arith.constant 0 : i32
    %c0_i32_0 = arith.constant 0 : i32
    return %arg0, %c0_i32 : i32, i32
  }
  func.func @transform_1(%arg0: i32) -> (i32, i32) {
    %c0_i32 = arith.constant 0 : i32
    %c0_i32_0 = arith.constant 0 : i32
    %c0_i32_1 = arith.constant 0 : i32
    return %c0_i32, %c0_i32_0 : i32, i32
  }
  func.func @transform_2(%arg0: i32) -> (i32, i32) {
    %c0_i32 = arith.constant 0 : i32
    %c0_i32_0 = arith.constant 0 : i32
    %c0_i32_1 = arith.constant 0 : i32
    return %c0_i32, %c0_i32_0 : i32, i32
  }
  func.func @transform_3(%arg0: i32) -> (i32, i32) {
    %c0_i32 = arith.constant 0 : i32
    %c0_i32_0 = arith.constant 0 : i32
    return %arg0, %c0_i32 : i32, i32
  }
}

module attributes {stable_mosaic.version = 11 : i64} {
  func.func @_mm_stats_kernel(%arg0: i32, %arg1: memref<32x512xbf16, #tpu.memory_space<vmem>>, %arg2: memref<512x64xbf16, #tpu.memory_space<vmem>>, %arg3: memref<32x64xf32, #tpu.memory_space<vmem>>, %arg4: memref<2x64xf32, #tpu.memory_space<vmem>>) attributes {dimension_semantics = [#tpu.dimension_semantics<arbitrary>], iteration_bounds = array<i64: 1>, scalar_prefetch = 0 : i64, scratch_operands = 0 : i64, tpu.core_type = #tpu.core_type<tc>, window_params = [{transform_indices = @transform_0, window_bounds = array<i64: 32, 512>}, {pipeline_mode = #tpu.pipeline_mode<synchronous>, transform_indices = @transform_1, window_bounds = array<i64: 512, 64>}, {transform_indices = @transform_2, window_bounds = array<i64: 32, 64>}, {pipeline_mode = #tpu.pipeline_mode<synchronous>, transform_indices = @transform_3, window_bounds = array<i64: 2, 64>}]} {
    %c0 = arith.constant 0 : index
    %c0_0 = arith.constant 0 : index
    %0 = vector.load %arg1[%c0, %c0_0] : memref<32x512xbf16, #tpu.memory_space<vmem>>, vector<32x512xbf16>
    %c0_1 = arith.constant 0 : index
    %c0_2 = arith.constant 0 : index
    %1 = vector.load %arg2[%c0_1, %c0_2] : memref<512x64xbf16, #tpu.memory_space<vmem>>, vector<512x64xbf16>
    %cst = arith.constant dense<0.000000e+00> : vector<32x64xf32>
    %2 = tpu.matmul %0, %1, %cst {dimension_numbers = #tpu.dot_dimension_numbers<[1], [0], [0], [1], [0, 0, 1, 1], [], []>} : vector<32x512xbf16>, vector<512x64xbf16>, vector<32x64xf32> -> vector<32x64xf32>
    %c0_3 = arith.constant 0 : index
    %c0_4 = arith.constant 0 : index
    %3 = vector.load %arg3[%c0_3, %c0_4] : memref<32x64xf32, #tpu.memory_space<vmem>>, vector<32x64xf32>
    tpu.vector_store %arg3[%c0_3, %c0_4], %2 {strides = array<i32>} : memref<32x64xf32, #tpu.memory_space<vmem>>, vector<32x64xf32>,
    %cst_5 = arith.constant dense<0.000000e+00> : vector<64xf32>
    %4 = vector.multi_reduction <add>, %2, %cst_5 [0] : vector<32x64xf32> to vector<64xf32>
    %5 = vector.shape_cast %4 : vector<64xf32> to vector<1x64xf32>
    %6 = arith.mulf %2, %2 : vector<32x64xf32>
    %cst_6 = arith.constant dense<0.000000e+00> : vector<64xf32>
    %7 = vector.multi_reduction <add>, %6, %cst_6 [0] : vector<32x64xf32> to vector<64xf32>
    %8 = vector.shape_cast %7 : vector<64xf32> to vector<1x64xf32>
    %9 = tpu.concatenate %5, %8 in 0 : vector<1x64xf32>, vector<1x64xf32> -> vector<2x64xf32>
    %c0_i32 = arith.constant 0 : i32
    %10 = arith.cmpi eq, %arg0, %c0_i32 : i32
    %11 = arith.extui %10 : i1 to i32
    %c0_i32_7 = arith.constant 0 : i32
    %12 = arith.cmpi ne, %11, %c0_i32_7 : i32
    scf.if %12 {
      %c0_10 = arith.constant 0 : index
      %c0_11 = arith.constant 0 : index
      %16 = vector.load %arg4[%c0_10, %c0_11] : memref<2x64xf32, #tpu.memory_space<vmem>>, vector<2x64xf32>
      tpu.vector_store %arg4[%c0_10, %c0_11], %9 {strides = array<i32>} : memref<2x64xf32, #tpu.memory_space<vmem>>, vector<2x64xf32>,
    } else {
    }
    %c0_i32_8 = arith.constant 0 : i32
    %13 = arith.cmpi sgt, %arg0, %c0_i32_8 : i32
    %14 = arith.extui %13 : i1 to i32
    %c0_i32_9 = arith.constant 0 : i32
    %15 = arith.cmpi ne, %14, %c0_i32_9 : i32
    scf.if %15 {
      %c0_10 = arith.constant 0 : index
      %c0_11 = arith.constant 0 : index
      %16 = vector.load %arg4[%c0_10, %c0_11] : memref<2x64xf32, #tpu.memory_space<vmem>>, vector<2x64xf32>
      %17 = arith.addf %16, %9 : vector<2x64xf32>
      %c0_12 = arith.constant 0 : index
      %c0_13 = arith.constant 0 : index
      %18 = vector.load %arg4[%c0_12, %c0_13] : memref<2x64xf32, #tpu.memory_space<vmem>>, vector<2x64xf32>
      tpu.vector_store %arg4[%c0_12, %c0_13], %17 {strides = array<i32>} : memref<2x64xf32, #tpu.memory_space<vmem>>, vector<2x64xf32>,
    } else {
    }
    return
  }
  func.func @transform_0(%arg0: i32) -> (i32, i32) {
    %c0_i32 = arith.constant 0 : i32
    %c0_i32_0 = arith.constant 0 : i32
    return %arg0, %c0_i32 : i32, i32
  }
  func.func @transform_1(%arg0: i32) -> (i32, i32) {
    %c0_i32 = arith.constant 0 : i32
    %c0_i32_0 = arith.constant 0 : i32
    %c0_i32_1 = arith.constant 0 : i32
    return %c0_i32, %c0_i32_0 : i32, i32
  }
  func.func @transform_2(%arg0: i32) -> (i32, i32) {
    %c0_i32 = arith.constant 0 : i32
    %c0_i32_0 = arith.constant 0 : i32
    return %arg0, %c0_i32 : i32, i32
  }
  func.func @transform_3(%arg0: i32) -> (i32, i32) {
    %c0_i32 = arith.constant 0 : i32
    %c0_i32_0 = arith.constant 0 : i32
    %c0_i32_1 = arith.constant 0 : i32
    return %c0_i32, %c0_i32_0 : i32, i32
  }
}

module attributes {stable_mosaic.version = 11 : i64} {
  func.func @_affine_lrelu_kernel(%arg0: i32, %arg1: memref<32x64xf32, #tpu.memory_space<vmem>>, %arg2: memref<1x64xf32, #tpu.memory_space<vmem>>, %arg3: memref<1x64xf32, #tpu.memory_space<vmem>>, %arg4: memref<32x64xbf16, #tpu.memory_space<vmem>>) attributes {dimension_semantics = [#tpu.dimension_semantics<parallel>], iteration_bounds = array<i64: 1>, scalar_prefetch = 0 : i64, scratch_operands = 0 : i64, tpu.core_type = #tpu.core_type<tc>, window_params = [{transform_indices = @transform_0, window_bounds = array<i64: 32, 64>}, {pipeline_mode = #tpu.pipeline_mode<synchronous>, transform_indices = @transform_1, window_bounds = array<i64: 1, 64>}, {pipeline_mode = #tpu.pipeline_mode<synchronous>, transform_indices = @transform_2, window_bounds = array<i64: 1, 64>}, {transform_indices = @transform_3, window_bounds = array<i64: 32, 64>}]} {
    %c0 = arith.constant 0 : index
    %c0_0 = arith.constant 0 : index
    %0 = vector.load %arg1[%c0, %c0_0] : memref<32x64xf32, #tpu.memory_space<vmem>>, vector<32x64xf32>
    %c0_1 = arith.constant 0 : index
    %c0_2 = arith.constant 0 : index
    %1 = vector.load %arg2[%c0_1, %c0_2] : memref<1x64xf32, #tpu.memory_space<vmem>>, vector<1x64xf32>
    %2 = vector.broadcast %1 : vector<1x64xf32> to vector<32x64xf32>
    %3 = arith.mulf %0, %2 : vector<32x64xf32>
    %c0_3 = arith.constant 0 : index
    %c0_4 = arith.constant 0 : index
    %4 = vector.load %arg3[%c0_3, %c0_4] : memref<1x64xf32, #tpu.memory_space<vmem>>, vector<1x64xf32>
    %5 = vector.broadcast %4 : vector<1x64xf32> to vector<32x64xf32>
    %6 = arith.addf %3, %5 : vector<32x64xf32>
    %cst = arith.constant 0.000000e+00 : f32
    %7 = vector.broadcast %cst : f32 to vector<32x64xf32>
    %8 = arith.cmpf ogt, %6, %7 : vector<32x64xf32>
    %cst_5 = arith.constant 2.000000e-01 : f32
    %9 = vector.broadcast %cst_5 : f32 to vector<32x64xf32>
    %10 = arith.mulf %9, %6 : vector<32x64xf32>
    %11 = arith.select %8, %6, %10 : vector<32x64xi1>, vector<32x64xf32>
    %12 = arith.truncf %11 : vector<32x64xf32> to vector<32x64xbf16>
    %c0_6 = arith.constant 0 : index
    %c0_7 = arith.constant 0 : index
    %13 = vector.load %arg4[%c0_6, %c0_7] : memref<32x64xbf16, #tpu.memory_space<vmem>>, vector<32x64xbf16>
    tpu.vector_store %arg4[%c0_6, %c0_7], %12 {strides = array<i32>} : memref<32x64xbf16, #tpu.memory_space<vmem>>, vector<32x64xbf16>,
    return
  }
  func.func @transform_0(%arg0: i32) -> (i32, i32) {
    %c0_i32 = arith.constant 0 : i32
    %c0_i32_0 = arith.constant 0 : i32
    return %arg0, %c0_i32 : i32, i32
  }
  func.func @transform_1(%arg0: i32) -> (i32, i32) {
    %c0_i32 = arith.constant 0 : i32
    %c0_i32_0 = arith.constant 0 : i32
    %c0_i32_1 = arith.constant 0 : i32
    return %c0_i32, %c0_i32_0 : i32, i32
  }
  func.func @transform_2(%arg0: i32) -> (i32, i32) {
    %c0_i32 = arith.constant 0 : i32
    %c0_i32_0 = arith.constant 0 : i32
    %c0_i32_1 = arith.constant 0 : i32
    return %c0_i32, %c0_i32_0 : i32, i32
  }
  func.func @transform_3(%arg0: i32) -> (i32, i32) {
    %c0_i32 = arith.constant 0 : i32
    %c0_i32_0 = arith.constant 0 : i32
    return %arg0, %c0_i32 : i32, i32
  }
}

module attributes {stable_mosaic.version = 11 : i64} {
  func.func @_mm_sigmoid_kernel(%arg0: i32, %arg1: memref<8x1024xbf16, #tpu.memory_space<vmem>>, %arg2: memref<1024x8xbf16, #tpu.memory_space<vmem>>, %arg3: memref<8x8xf32, #tpu.memory_space<vmem>>) attributes {dimension_semantics = [#tpu.dimension_semantics<parallel>], iteration_bounds = array<i64: 1>, scalar_prefetch = 0 : i64, scratch_operands = 0 : i64, tpu.core_type = #tpu.core_type<tc>, window_params = [{transform_indices = @transform_0, window_bounds = array<i64: 8, 1024>}, {pipeline_mode = #tpu.pipeline_mode<synchronous>, transform_indices = @transform_1, window_bounds = array<i64: 1024, 8>}, {transform_indices = @transform_2, window_bounds = array<i64: 8, 8>}]} {
    %c0 = arith.constant 0 : index
    %c0_0 = arith.constant 0 : index
    %0 = vector.load %arg1[%c0, %c0_0] : memref<8x1024xbf16, #tpu.memory_space<vmem>>, vector<8x1024xbf16>
    %c0_1 = arith.constant 0 : index
    %c0_2 = arith.constant 0 : index
    %1 = vector.load %arg2[%c0_1, %c0_2] : memref<1024x8xbf16, #tpu.memory_space<vmem>>, vector<1024x8xbf16>
    %cst = arith.constant dense<0.000000e+00> : vector<8x8xf32>
    %2 = tpu.matmul %0, %1, %cst {dimension_numbers = #tpu.dot_dimension_numbers<[1], [0], [0], [1], [0, 0, 1, 1], [], []>} : vector<8x1024xbf16>, vector<1024x8xbf16>, vector<8x8xf32> -> vector<8x8xf32>
    %3 = arith.negf %2 : vector<8x8xf32>
    %4 = math.exp %3 : vector<8x8xf32>
    %cst_3 = arith.constant 1.000000e+00 : f32
    %5 = vector.broadcast %cst_3 : f32 to vector<8x8xf32>
    %6 = arith.addf %5, %4 : vector<8x8xf32>
    %7 = arith.divf %5, %6 : vector<8x8xf32>
    %c0_4 = arith.constant 0 : index
    %c0_5 = arith.constant 0 : index
    %8 = vector.load %arg3[%c0_4, %c0_5] : memref<8x8xf32, #tpu.memory_space<vmem>>, vector<8x8xf32>
    tpu.vector_store %arg3[%c0_4, %c0_5], %7 {strides = array<i32>} : memref<8x8xf32, #tpu.memory_space<vmem>>, vector<8x8xf32>,
    return
  }
  func.func @transform_0(%arg0: i32) -> (i32, i32) {
    %c0_i32 = arith.constant 0 : i32
    %c0_i32_0 = arith.constant 0 : i32
    return %arg0, %c0_i32 : i32, i32
  }
  func.func @transform_1(%arg0: i32) -> (i32, i32) {
    %c0_i32 = arith.constant 0 : i32
    %c0_i32_0 = arith.constant 0 : i32
    %c0_i32_1 = arith.constant 0 : i32
    return %c0_i32, %c0_i32_0 : i32, i32
  }
  func.func @transform_2(%arg0: i32) -> (i32, i32) {
    %c0_i32 = arith.constant 0 : i32
    %c0_i32_0 = arith.constant 0 : i32
    return %arg0, %c0_i32 : i32, i32
  }
}

</mosaic_0001>

<llo_original>
// kernel: discriminator_forward.8
$region0: #{discriminator_forward.8}
  #allocation0 [shape = 'u32[]', space=smem, size = 0x4, offset = 0x4, fixed_abs, tag = 'smem constant byte address 0x4 - core index']
  #allocation1 [shape = 'u32[144,128]{1,0:T(1,128)}', space=vmem, size = 0x12000, scoped, tag = 'internal scratch']
  %s0 = inlined_call_operand.vmem [shape: bf16[2048,128], index: 0, kind: input, shape index: {}]
  %s1 = inlined_call_operand.vmem [shape: bf16[128,8], index: 1, kind: input, shape index: {}]
  %s2 = inlined_call_operand.vmem [shape: bf16[2048,8], index: 2, kind: output, shape index: {}]
  %s3 = sld [smem:[#allocation0]]
  $region41: #{discriminator_forward.8} parent=0
    _
  %s5 = ssub.s32 1, %s3
  %s6 = scalar_select 0, %s5, %s3
  loop: start=0, step=1, limit=10
  $region2: #{discriminator_forward.8} parent=0 // loop_pre_header
    _
  $region3: #{discriminator_forward.8} parent=0 // loop_header
    %s8 = sphi 0, %s12
    %p9 = scmp.ge.s32.totalorder %s8, 10
    %s18 = sphi 0, %s20
    %s21 = sphi 0, %s18
    %s22 = sphi 0, %s21
    %s38 = sphi 0, %s22
    %s42 = sphi 0, %s42
    %s44 = sphi 0, %s42
    %s45 = sphi 0, %s44
    %s59 = sphi 0, %s45
    %s65 = sphi 0, %s67
    %s68 = sphi 0, %s65
    %s69 = sphi 0, %s68
    %s85 = sphi 0, %s69
  $region4: #{discriminator_forward.8} parent=0 // loop_header_branch
    %11 = sbr.rel (%p9) target = $region8
  $region5: #{discriminator_forward.8} parent=0 // loop_body
    %s13 = ssub.s32 %s8, 1
    %s14 = ssub.s32 %s8, 2
    %s15 = sadd.s32 %s8, 1
    %s16 = ssub.s32 %s8, %s15
    %p17 = scmp.eq.s32.totalorder %s16, 0
    %s19 = sadd.s32 %s18, 1
    %s20 = scalar_select %p17, %s18, %s19
    %p23 = pneg %p17
    %p24 = scmp.eq.s32.totalorder %s8, 7
    %p25 = por %p23, %p24
    %p26 = scmp.ne.s32.totalorder %s18, %s21
    %p27 = scmp.eq.s32.totalorder %s8, 0
    %p28 = por %p26, %p27
    %p29 = scmp.ne.s32.totalorder %s18, %s21
    %p30 = scmp.eq.s32.totalorder %s13, 7
    %p31 = por %p29, %p30
    %p32 = scmp.ne.s32.totalorder %s21, %s22
    %p33 = scmp.eq.s32.totalorder %s13, 0
    %p34 = por %p32, %p33
    %p35 = scmp.ne.s32.totalorder %s21, %s22
    %p36 = scmp.eq.s32.totalorder %s14, 7
    %p37 = por %p35, %p36
    %p39 = scmp.ne.s32.totalorder %s22, %s38
    %p40 = scmp.eq.s32.totalorder %s14, 0
    %p41 = por %p39, %p40
    %s43 = sadd.s32 %s42, 1
    %p46 = scmp.eq.s32.totalorder %s8, 7
    %p47 = scmp.ne.s32.totalorder %s42, %s44
    %p48 = scmp.eq.s32.totalorder %s8, 0
    %p49 = por %p47, %p48
    %p50 = scmp.ne.s32.totalorder %s42, %s44
    %p51 = scmp.eq.s32.totalorder %s13, 7
    %p52 = por %p50, %p51
    %p53 = scmp.ne.s32.totalorder %s44, %s45
    %p54 = scmp.eq.s32.totalorder %s13, 0
    %p55 = por %p53, %p54
    %p56 = scmp.ne.s32.totalorder %s44, %s45
    %p57 = scmp.eq.s32.totalorder %s14, 7
    %p58 = por %p56, %p57
    %p60 = scmp.ne.s32.totalorder %s45, %s59
    %p61 = scmp.eq.s32.totalorder %s14, 0
    %p62 = por %p60, %p61
    %s63 = ssub.s32 %s8, %s15
    %p64 = scmp.eq.s32.totalorder %s63, 0
    %s66 = sadd.s32 %s65, 1
    %s67 = scalar_select %p64, %s65, %s66
    %p70 = pneg %p64
    %p71 = scmp.eq.s32.totalorder %s8, 7
    %p72 = por %p70, %p71
    %p73 = scmp.ne.s32.totalorder %s65, %s68
    %p74 = scmp.eq.s32.totalorder %s8, 0
    %p75 = por %p73, %p74
    %p76 = scmp.ne.s32.totalorder %s65, %s68
    %p77 = scmp.eq.s32.totalorder %s13, 7
    %p78 = por %p76, %p77
    %p79 = scmp.ne.s32.totalorder %s68, %s69
    %p80 = scmp.eq.s32.totalorder %s13, 0
    %p81 = por %p79, %p80
    %p82 = scmp.ne.s32.totalorder %s68, %s69
    %p83 = scmp.eq.s32.totalorder %s14, 7
    %p84 = por %p82, %p83
    %p86 = scmp.ne.s32.totalorder %s69, %s85
    %p87 = scmp.eq.s32.totalorder %s14, 0
    %p88 = por %p86, %p87
    %p89 = scmp.le.s32.totalorder 1, %s8
    %p90 = scmp.lt.s32.totalorder %s8, 9
    %p91 = pnand %p89, %p90
    %p92 = pneg %p91
    // Predicated region
    $region9: #{discriminator_forward.8} parent=5 // pred_check
      _
    $region10: #{discriminator_forward.8} parent=5 // pred_check_branch
      %94 = sbr.rel (%p91) target = $region12
    $region11: #{discriminator_forward.8} parent=5 // pred_region
      %s95 = ssub.s32 %s8, 1
      // Predicated region
      $region13: #{discriminator_forward.8} parent=11 // pred_check
        %p96 = pneg %p55
      $region14: #{discriminator_forward.8} parent=11 // pred_check_branch
        %98 = sbr.rel (%p96) target = $region16
      $region15: #{discriminator_forward.8} parent=11 // pred_region
        _
      $region16: #{discriminator_forward.8} parent=11 // pred_fallthru
        _
    $region12: #{discriminator_forward.8} parent=5 // pred_fallthru
      _
    %p99 = scmp.lt.s32.totalorder %s8, 8
    // Predicated region
    $region17: #{discriminator_forward.8} parent=5 // pred_check
      %p100 = pneg %p99
    $region18: #{discriminator_forward.8} parent=5 // pred_check_branch
      %102 = sbr.rel (%p100) target = $region20
    $region19: #{discriminator_forward.8} parent=5 // pred_region
      // Predicated region
      $region21: #{discriminator_forward.8} parent=19 // pred_check
        %p103 = pneg %p28
      $region22: #{discriminator_forward.8} parent=19 // pred_check_branch
        %105 = sbr.rel (%p103) target = $region24
      $region23: #{discriminator_forward.8} parent=19 // pred_region
        %s106 = smul.u32 32, %s8
        %p107 = scmp.lt.s32.totalorder %s106, 255
        %s108 = scalar_select %p107, %s106, 255
        %s109 = smul.addr %s108, 4
        %s110 = scalar_lea.vmem %s0, %s109
        %s111 = smul.u32 32, %s8
      $region24: #{discriminator_forward.8} parent=19 // pred_fallthru
        _
    $region20: #{discriminator_forward.8} parent=5 // pred_fallthru
      _
    %p112 = scmp.le.s32.totalorder 1, %s8
    %p113 = scmp.lt.s32.totalorder %s8, 9
    %p114 = pnand %p112, %p113
    %p115 = pneg %p114
    // Predicated region
    $region25: #{discriminator_forward.8} parent=5 // pred_check
      _
    $region26: #{discriminator_forward.8} parent=5 // pred_check_branch
      %117 = sbr.rel (%p114) target = $region28
    $region27: #{discriminator_forward.8} parent=5 // pred_region
      %s118 = ssub.s32 %s8, 1
      %s119 = smul.u32 32, %s13
      %p120 = scmp.lt.s32.totalorder %s119, 255
      %s121 = scalar_select %p120, %s119, 255
      %s122 = smul.addr %s121, 4
      %s123 = scalar_lea.vmem %s0, %s122
      %p124 = pneg %p34
      %p125 = pneg %p31
      %p126 = pneg %p55
      %p127 = pneg %p52
      %p128 = pneg %p81
      %p129 = pneg %p78
      %s130 = smul.u32 32, %s13
      %p131 = scmp.lt.s32.totalorder %s130, 255
      %s132 = scalar_select %p131, %s130, 255
      %s133 = smul.addr %s132, 4
      %s134 = scalar_lea.vmem %s2, %s133
      %s135 = smul.u32 32, %s13
      %p136 = scmp.lt.s32.totalorder %s135, 255
      %s137 = scalar_select %p136, %s135, 255
      %s138 = smul.addr %s137, 4
      %s139 = scalar_lea.vmem %s0, %s138
      %s140 = smul.u32 32, %s13
      %s141 = smul.u32 32, %s13
      %p142 = scmp.lt.s32.totalorder %s141, 255
      %s143 = scalar_select %p142, %s141, 255
      %s144 = smul.addr %s143, 4
      %s145 = scalar_lea.vmem %s2, %s144
      %s146 = smul.u32 32, %s13
      %v148 = vld [vmem:[%s139] sm:$0xf]
      %v149 = vld [vmem:[%s139 + $0x4] sm:$0xf]
      %v150 = vld [vmem:[%s139 + $0x8] sm:$0xf]
      %v151 = vld [vmem:[%s139 + $0xc] sm:$0xf]
      %v152 = vld [vmem:[%s139 + $0x10] sm:$0xf]
      %v153 = vld [vmem:[%s139 + $0x14] sm:$0xf]
      %v154 = vld [vmem:[%s139 + $0x18] sm:$0xf]
      %v155 = vld [vmem:[%s139 + $0x1c] sm:$0xf]
      %v156 = vld [vmem:[%s139 + $0x20] sm:$0xf]
      %v157 = vld [vmem:[%s139 + $0x24] sm:$0xf]
      %v158 = vld [vmem:[%s139 + $0x28] sm:$0xf]
      %v159 = vld [vmem:[%s139 + $0x2c] sm:$0xf]
      %v160 = vld [vmem:[%s139 + $0x30] sm:$0xf]
      %v161 = vld [vmem:[%s139 + $0x34] sm:$0xf]
      %v162 = vld [vmem:[%s139 + $0x38] sm:$0xf]
      %v163 = vld [vmem:[%s139 + $0x3c] sm:$0xf]
      %v164 = vld [vmem:[%s139 + $0x40] sm:$0xf]
      %v165 = vld [vmem:[%s139 + $0x44] sm:$0xf]
      %v166 = vld [vmem:[%s139 + $0x48] sm:$0xf]
      %v167 = vld [vmem:[%s139 + $0x4c] sm:$0xf]
      %v168 = vld [vmem:[%s139 + $0x50] sm:$0xf]
      %v169 = vld [vmem:[%s139 + $0x54] sm:$0xf]
      %v170 = vld [vmem:[%s139 + $0x58] sm:$0xf]
      %v171 = vld [vmem:[%s139 + $0x5c] sm:$0xf]
      %v172 = vld [vmem:[%s139 + $0x60] sm:$0xf]
      %v173 = vld [vmem:[%s139 + $0x64] sm:$0xf]
      %v174 = vld [vmem:[%s139 + $0x68] sm:$0xf]
      %v175 = vld [vmem:[%s139 + $0x6c] sm:$0xf]
      %v176 = vld [vmem:[%s139 + $0x70] sm:$0xf]
      %v177 = vld [vmem:[%s139 + $0x74] sm:$0xf]
      %v178 = vld [vmem:[%s139 + $0x78] sm:$0xf]
      %v179 = vld [vmem:[%s139 + $0x7c] sm:$0xf]
      %v180 = vld [vmem:[%s1] sm:$0xf]
      %v181 = vld [vmem:[%s1 + $0x4] sm:$0xf]
      %v182 = vld [vmem:[%s1 + $0x8] sm:$0xf]
      %v183 = vld [vmem:[%s1 + $0xc] sm:$0xf]
      %v184 = vld [vmem:[%s1 + $0x10] sm:$0xf]
      %v185 = vld [vmem:[%s1 + $0x14] sm:$0xf]
      %v186 = vld [vmem:[%s1 + $0x18] sm:$0xf]
      %v187 = vld [vmem:[%s1 + $0x1c] sm:$0xf]
      %v188 = vld [vmem:[%s1 + $0x20] sm:$0xf]
      %v189 = vld [vmem:[%s1 + $0x24] sm:$0xf]
      %v190 = vld [vmem:[%s1 + $0x28] sm:$0xf]
      %v191 = vld [vmem:[%s1 + $0x2c] sm:$0xf]
      %v192 = vld [vmem:[%s1 + $0x30] sm:$0xf]
      %v193 = vld [vmem:[%s1 + $0x34] sm:$0xf]
      %v194 = vld [vmem:[%s1 + $0x38] sm:$0xf]
      %v195 = vld [vmem:[%s1 + $0x3c] sm:$0xf]
      %v228 = vunpack.c.l.b16 %v148
      %v229 = vunpack.c.l.b16 %v149
      %v230 = vunpack.c.l.b16 %v150
      %v231 = vunpack.c.l.b16 %v151
      %v232 = vunpack.c.l.b16 %v152
      %v233 = vunpack.c.l.b16 %v153
      %v234 = vunpack.c.l.b16 %v154
      %v235 = vunpack.c.l.b16 %v155
      %v236 = vunpack.c.l.b16 %v156
      %v237 = vunpack.c.l.b16 %v157
      %v238 = vunpack.c.l.b16 %v158
      %v239 = vunpack.c.l.b16 %v159
      %v240 = vunpack.c.l.b16 %v160
      %v241 = vunpack.c.l.b16 %v161
      %v242 = vunpack.c.l.b16 %v162
      %v243 = vunpack.c.l.b16 %v163
      %v244 = vunpack.c.l.b16 %v164
      %v245 = vunpack.c.l.b16 %v165
      %v246 = vunpack.c.l.b16 %v166
      %v247 = vunpack.c.l.b16 %v167
      %v248 = vunpack.c.l.b16 %v168
      %v249 = vunpack.c.l.b16 %v169
      %v250 = vunpack.c.l.b16 %v170
      %v251 = vunpack.c.l.b16 %v171
      %v252 = vunpack.c.l.b16 %v172
      %v253 = vunpack.c.l.b16 %v173
      %v254 = vunpack.c.l.b16 %v174
      %v255 = vunpack.c.l.b16 %v175
      %v256 = vunpack.c.l.b16 %v176
      %v257 = vunpack.c.l.b16 %v177
      %v258 = vunpack.c.l.b16 %v178
      %v259 = vunpack.c.l.b16 %v179
      %v260 = vpack.c.b16 %v229, %v228
      %v261 = vpack.c.b16 %v231, %v230
      %v262 = vpack.c.b16 %v233, %v232
      %v263 = vpack.c.b16 %v235, %v234
      %v264 = vpack.c.b16 %v237, %v236
      %v265 = vpack.c.b16 %v239, %v238
      %v266 = vpack.c.b16 %v241, %v240
      %v267 = vpack.c.b16 %v243, %v242
      %v268 = vpack.c.b16 %v245, %v244
      %v269 = vpack.c.b16 %v247, %v246
      %v270 = vpack.c.b16 %v249, %v248
      %v271 = vpack.c.b16 %v251, %v250
      %v272 = vpack.c.b16 %v253, %v252
      %v273 = vpack.c.b16 %v255, %v254
      %v274 = vpack.c.b16 %v257, %v256
      %v275 = vpack.c.b16 %v259, %v258
      %v308 = vunpack.c.l.b16 %v180
      %v309 = vunpack.c.l.b16 %v181
      %v310 = vunpack.c.l.b16 %v182
      %v311 = vunpack.c.l.b16 %v183
      %v312 = vunpack.c.l.b16 %v184
      %v313 = vunpack.c.l.b16 %v185
      %v314 = vunpack.c.l.b16 %v186
      %v315 = vunpack.c.l.b16 %v187
      %v316 = vunpack.c.l.b16 %v188
      %v317 = vunpack.c.l.b16 %v189
      %v318 = vunpack.c.l.b16 %v190
      %v319 = vunpack.c.l.b16 %v191
      %v320 = vunpack.c.l.b16 %v192
      %v321 = vunpack.c.l.b16 %v193
      %v322 = vunpack.c.l.b16 %v194
      %v323 = vunpack.c.l.b16 %v195
      %v324 = vpack.c.b16 %v309, %v308
      %v325 = vpack.c.b16 %v311, %v310
      %v326 = vpack.c.b16 %v313, %v312
      %v327 = vpack.c.b16 %v315, %v314
      %v328 = vpack.c.b16 %v317, %v316
      %v329 = vpack.c.b16 %v319, %v318
      %v330 = vpack.c.b16 %v321, %v320
      %v331 = vpack.c.b16 %v323, %v322
      %340 = vmatprep.subr.bf16.mxu0 0
      %341 = vmatpush1.bf16.msra.mxu0 %v331
      %342 = vmatprep.subr.bf16.mxu0 0
      %343 = vmatpush1.bf16.msra.mxu0 %v330
      %344 = vmatprep.subr.bf16.mxu0 0
      %345 = vmatpush1.bf16.msra.mxu0 %v329
      %346 = vmatprep.subr.bf16.mxu0 0
      %347 = vmatpush1.bf16.msra.mxu0 %v328
      %348 = vmatprep.subr.bf16.mxu0 0
      %349 = vmatpush1.bf16.msra.mxu0 %v327
      %350 = vmatprep.subr.bf16.mxu0 0
      %351 = vmatpush1.bf16.msra.mxu0 %v326
      %352 = vmatprep.subr.bf16.mxu0 0
      %353 = vmatpush1.bf16.msra.mxu0 %v325
      %354 = vmatprep.subr.bf16.mxu0 0
      %355 = vmatpush1.bf16.msra.mxu0 %v324
      %356 = vmatprep.subr.bf16.mxu0 0
      %357 = vmatpush2.bf16.msra.mxu0 0
      %358 = vmatprep.subr.bf16.mxu0 0
      %359 = vmatpush2.bf16.msra.mxu0 0
      %360 = vmatprep.subr.bf16.mxu0 0
      %361 = vmatpush2.bf16.msra.mxu0 0
      %362 = vmatprep.subr.bf16.mxu0 0
      %363 = vmatpush2.bf16.msra.mxu0 0
      %364 = vmatprep.subr.bf16.mxu0 0
      %365 = vmatpush2.bf16.msra.mxu0 0
      %366 = vmatprep.subr.bf16.mxu0 0
      %367 = vmatpush2.bf16.msra.mxu0 0
      %368 = vmatprep.subr.bf16.mxu0 0
      %369 = vmatpush2.bf16.msra.mxu0 0
      %370 = vmatprep.subr.bf16.mxu0 0
      %371 = vmatpush2.bf16.msra.mxu0 0
      %372 = vmatprep.mubr.bf16.mxu0 0
      %373 = vmatmul.mubr.bf16.gmra.mxu0 %v260
      %v374 = vpop.f32.mrf.mxu0
      %v375 = vadd.f32 0.0, %v374
      %v376 = vpop.f32.mrf.mxu0
      %v377 = vpop.f32.mrf.mxu0
      %v378 = vadd.f32 0.0, %v377
      %v379 = vpop.f32.mrf.mxu0
      %380 = vmatprep.mubr.bf16.mxu0 0
      %381 = vmatmul.mubr.bf16.gmra.mxu0 %v261
      %v382 = vpop.f32.mrf.mxu0
      %v383 = vadd.f32 0.0, %v382
      %v384 = vpop.f32.mrf.mxu0
      %v385 = vpop.f32.mrf.mxu0
      %v386 = vadd.f32 0.0, %v385
      %v387 = vpop.f32.mrf.mxu0
      %388 = vmatprep.mubr.bf16.mxu0 0
      %389 = vmatmul.mubr.bf16.gmra.mxu0 %v262
      %v390 = vpop.f32.mrf.mxu0
      %v391 = vadd.f32 0.0, %v390
      %v392 = vpop.f32.mrf.mxu0
      %v393 = vpop.f32.mrf.mxu0
      %v394 = vadd.f32 0.0, %v393
      %v395 = vpop.f32.mrf.mxu0
      %396 = vmatprep.mubr.bf16.mxu0 0
      %397 = vmatmul.mubr.bf16.gmra.mxu0 %v263
      %v398 = vpop.f32.mrf.mxu0
      %v399 = vadd.f32 0.0, %v398
      %v400 = vpop.f32.mrf.mxu0
      %v401 = vpop.f32.mrf.mxu0
      %v402 = vadd.f32 0.0, %v401
      %v403 = vpop.f32.mrf.mxu0
      %404 = vmatprep.mubr.bf16.mxu0 0
      %405 = vmatmul.mubr.bf16.gmra.mxu0 %v264
      %v406 = vpop.f32.mrf.mxu0
      %v407 = vadd.f32 0.0, %v406
      %v408 = vpop.f32.mrf.mxu0
      %v409 = vpop.f32.mrf.mxu0
      %v410 = vadd.f32 0.0, %v409
      %v411 = vpop.f32.mrf.mxu0
      %412 = vmatprep.mubr.bf16.mxu0 0
      %413 = vmatmul.mubr.bf16.gmra.mxu0 %v265
      %v414 = vpop.f32.mrf.mxu0
      %v415 = vadd.f32 0.0, %v414
      %v416 = vpop.f32.mrf.mxu0
      %v417 = vpop.f32.mrf.mxu0
      %v418 = vadd.f32 0.0, %v417
      %v419 = vpop.f32.mrf.mxu0
      %420 = vmatprep.mubr.bf16.mxu0 0
      %421 = vmatmul.mubr.bf16.gmra.mxu0 %v266
      %v422 = vpop.f32.mrf.mxu0
      %v423 = vadd.f32 0.0, %v422
      %v424 = vpop.f32.mrf.mxu0
      %v425 = vpop.f32.mrf.mxu0
      %v426 = vadd.f32 0.0, %v425
      %v427 = vpop.f32.mrf.mxu0
      %428 = vmatprep.mubr.bf16.mxu0 0
      %429 = vmatmul.mubr.bf16.gmra.mxu0 %v267
      %v430 = vpop.f32.mrf.mxu0
      %v431 = vadd.f32 0.0, %v430
      %v432 = vpop.f32.mrf.mxu0
      %v433 = vpop.f32.mrf.mxu0
      %v434 = vadd.f32 0.0, %v433
      %v435 = vpop.f32.mrf.mxu0
      %436 = vmatprep.mubr.bf16.mxu0 0
      %437 = vmatmul.mubr.bf16.gmra.mxu0 %v268
      %v438 = vpop.f32.mrf.mxu0
      %v439 = vadd.f32 0.0, %v438
      %v440 = vpop.f32.mrf.mxu0
      %v441 = vpop.f32.mrf.mxu0
      %v442 = vadd.f32 0.0, %v441
      %v443 = vpop.f32.mrf.mxu0
      %444 = vmatprep.mubr.bf16.mxu0 0
      %445 = vmatmul.mubr.bf16.gmra.mxu0 %v269
      %v446 = vpop.f32.mrf.mxu0
      %v447 = vadd.f32 0.0, %v446
      %v448 = vpop.f32.mrf.mxu0
      %v449 = vpop.f32.mrf.mxu0
      %v450 = vadd.f32 0.0, %v449
      %v451 = vpop.f32.mrf.mxu0
      %452 = vmatprep.mubr.bf16.mxu0 0
      %453 = vmatmul.mubr.bf16.gmra.mxu0 %v270
      %v454 = vpop.f32.mrf.mxu0
      %v455 = vadd.f32 0.0, %v454
      %v456 = vpop.f32.mrf.mxu0
      %v457 = vpop.f32.mrf.mxu0
      %v458 = vadd.f32 0.0, %v457
      %v459 = vpop.f32.mrf.mxu0
      %460 = vmatprep.mubr.bf16.mxu0 0
      %461 = vmatmul.mubr.bf16.gmra.mxu0 %v271
      %v462 = vpop.f32.mrf.mxu0
      %v463 = vadd.f32 0.0, %v462
      %v464 = vpop.f32.mrf.mxu0
      %v465 = vpop.f32.mrf.mxu0
      %v466 = vadd.f32 0.0, %v465
      %v467 = vpop.f32.mrf.mxu0
      %468 = vmatprep.mubr.bf16.mxu0 0
      %469 = vmatmul.mubr.bf16.gmra.mxu0 %v272
      %v470 = vpop.f32.mrf.mxu0
      %v471 = vadd.f32 0.0, %v470
      %v472 = vpop.f32.mrf.mxu0
      %v473 = vpop.f32.mrf.mxu0
      %v474 = vadd.f32 0.0, %v473
      %v475 = vpop.f32.mrf.mxu0
      %476 = vmatprep.mubr.bf16.mxu0 0
      %477 = vmatmul.mubr.bf16.gmra.mxu0 %v273
      %v478 = vpop.f32.mrf.mxu0
      %v479 = vadd.f32 0.0, %v478
      %v480 = vpop.f32.mrf.mxu0
      %v481 = vpop.f32.mrf.mxu0
      %v482 = vadd.f32 0.0, %v481
      %v483 = vpop.f32.mrf.mxu0
      %484 = vmatprep.mubr.bf16.mxu0 0
      %485 = vmatmul.mubr.bf16.gmra.mxu0 %v274
      %v486 = vpop.f32.mrf.mxu0
      %v487 = vadd.f32 0.0, %v486
      %v488 = vpop.f32.mrf.mxu0
      %v489 = vpop.f32.mrf.mxu0
      %v490 = vadd.f32 0.0, %v489
      %v491 = vpop.f32.mrf.mxu0
      %492 = vmatprep.mubr.bf16.mxu0 0
      %493 = vmatmul.mubr.bf16.gmra.mxu0 %v275
      %v494 = vpop.f32.mrf.mxu0
      %v495 = vadd.f32 0.0, %v494
      %v496 = vpop.f32.mrf.mxu0
      %v497 = vpop.f32.mrf.mxu0
      %v498 = vadd.f32 0.0, %v497
      %v499 = vpop.f32.mrf.mxu0
      %500 = vdwg.mxu0
      %vm501 = vcmp.gt.f32.partialorder %v375, 0.0
      %vm502 = vcmp.gt.f32.partialorder %v378, 0.0
      %vm503 = vcmp.gt.f32.partialorder %v383, 0.0
      %vm504 = vcmp.gt.f32.partialorder %v386, 0.0
      %vm505 = vcmp.gt.f32.partialorder %v391, 0.0
      %vm506 = vcmp.gt.f32.partialorder %v394, 0.0
      %vm507 = vcmp.gt.f32.partialorder %v399, 0.0
      %vm508 = vcmp.gt.f32.partialorder %v402, 0.0
      %vm509 = vcmp.gt.f32.partialorder %v407, 0.0
      %vm510 = vcmp.gt.f32.partialorder %v410, 0.0
      %vm511 = vcmp.gt.f32.partialorder %v415, 0.0
      %vm512 = vcmp.gt.f32.partialorder %v418, 0.0
      %vm513 = vcmp.gt.f32.partialorder %v423, 0.0
      %vm514 = vcmp.gt.f32.partialorder %v426, 0.0
      %vm515 = vcmp.gt.f32.partialorder %v431, 0.0
      %vm516 = vcmp.gt.f32.partialorder %v434, 0.0
      %vm517 = vcmp.gt.f32.partialorder %v439, 0.0
      %vm518 = vcmp.gt.f32.partialorder %v442, 0.0
      %vm519 = vcmp.gt.f32.partialorder %v447, 0.0
      %vm520 = vcmp.gt.f32.partialorder %v450, 0.0
      %vm521 = vcmp.gt.f32.partialorder %v455, 0.0
      %vm522 = vcmp.gt.f32.partialorder %v458, 0.0
      %vm523 = vcmp.gt.f32.partialorder %v463, 0.0
      %vm524 = vcmp.gt.f32.partialorder %v466, 0.0
      %vm525 = vcmp.gt.f32.partialorder %v471, 0.0
      %vm526 = vcmp.gt.f32.partialorder %v474, 0.0
      %vm527 = vcmp.gt.f32.partialorder %v479, 0.0
      %vm528 = vcmp.gt.f32.partialorder %v482, 0.0
      %vm529 = vcmp.gt.f32.partialorder %v487, 0.0
      %vm530 = vcmp.gt.f32.partialorder %v490, 0.0
      %vm531 = vcmp.gt.f32.partialorder %v495, 0.0
      %vm532 = vcmp.gt.f32.partialorder %v498, 0.0
      %v533 = vmul.f32 %v375, 0.2
      %v534 = vmul.f32 %v378, 0.2
      %v535 = vmul.f32 %v383, 0.2
      %v536 = vmul.f32 %v386, 0.2
      %v537 = vmul.f32 %v391, 0.2
      %v538 = vmul.f32 %v394, 0.2
      %v539 = vmul.f32 %v399, 0.2
      %v540 = vmul.f32 %v402, 0.2
      %v541 = vmul.f32 %v407, 0.2
      %v542 = vmul.f32 %v410, 0.2
      %v543 = vmul.f32 %v415, 0.2
      %v544 = vmul.f32 %v418, 0.2
      %v545 = vmul.f32 %v423, 0.2
      %v546 = vmul.f32 %v426, 0.2
      %v547 = vmul.f32 %v431, 0.2
      %v548 = vmul.f32 %v434, 0.2
      %v549 = vmul.f32 %v439, 0.2
      %v550 = vmul.f32 %v442, 0.2
      %v551 = vmul.f32 %v447, 0.2
      %v552 = vmul.f32 %v450, 0.2
      %v553 = vmul.f32 %v455, 0.2
      %v554 = vmul.f32 %v458, 0.2
      %v555 = vmul.f32 %v463, 0.2
      %v556 = vmul.f32 %v466, 0.2
      %v557 = vmul.f32 %v471, 0.2
      %v558 = vmul.f32 %v474, 0.2
      %v559 = vmul.f32 %v479, 0.2
      %v560 = vmul.f32 %v482, 0.2
      %v561 = vmul.f32 %v487, 0.2
      %v562 = vmul.f32 %v490, 0.2
      %v563 = vmul.f32 %v495, 0.2
      %v564 = vmul.f32 %v498, 0.2
      %v565 = vsel %vm501, %v375, %v533
      %v566 = vsel %vm502, %v378, %v534
      %v567 = vsel %vm503, %v383, %v535
      %v568 = vsel %vm504, %v386, %v536
      %v569 = vsel %vm505, %v391, %v537
      %v570 = vsel %vm506, %v394, %v538
      %v571 = vsel %vm507, %v399, %v539
      %v572 = vsel %vm508, %v402, %v540
      %v573 = vsel %vm509, %v407, %v541
      %v574 = vsel %vm510, %v410, %v542
      %v575 = vsel %vm511, %v415, %v543
      %v576 = vsel %vm512, %v418, %v544
      %v577 = vsel %vm513, %v423, %v545
      %v578 = vsel %vm514, %v426, %v546
      %v579 = vsel %vm515, %v431, %v547
      %v580 = vsel %vm516, %v434, %v548
      %v581 = vsel %vm517, %v439, %v549
      %v582 = vsel %vm518, %v442, %v550
      %v583 = vsel %vm519, %v447, %v551
      %v584 = vsel %vm520, %v450, %v552
      %v585 = vsel %vm521, %v455, %v553
      %v586 = vsel %vm522, %v458, %v554
      %v587 = vsel %vm523, %v463, %v555
      %v588 = vsel %vm524, %v466, %v556
      %v589 = vsel %vm525, %v471, %v557
      %v590 = vsel %vm526, %v474, %v558
      %v591 = vsel %vm527, %v479, %v559
      %v592 = vsel %vm528, %v482, %v560
      %v593 = vsel %vm529, %v487, %v561
      %v594 = vsel %vm530, %v490, %v562
      %v595 = vsel %vm531, %v495, %v563
      %v596 = vsel %vm532, %v498, %v564
      %v597 = vpack.c.bf16 %v566, %v565
      %v598 = vpack.c.bf16 %v568, %v567
      %v599 = vpack.c.bf16 %v570, %v569
      %v600 = vpack.c.bf16 %v572, %v571
      %v601 = vpack.c.bf16 %v574, %v573
      %v602 = vpack.c.bf16 %v576, %v575
      %v603 = vpack.c.bf16 %v578, %v577
      %v604 = vpack.c.bf16 %v580, %v579
      %v605 = vpack.c.bf16 %v582, %v581
      %v606 = vpack.c.bf16 %v584, %v583
      %v607 = vpack.c.bf16 %v586, %v585
      %v608 = vpack.c.bf16 %v588, %v587
      %v609 = vpack.c.bf16 %v590, %v589
      %v610 = vpack.c.bf16 %v592, %v591
      %v611 = vpack.c.bf16 %v594, %v593
      %v612 = vpack.c.bf16 %v596, %v595
      %v629 = vunpack.c.l.b16 %v597
      %v630 = vunpack.c.h.b16 %v597
      %v631 = vunpack.c.l.b16 %v598
      %v632 = vunpack.c.h.b16 %v598
      %v633 = vunpack.c.l.b16 %v599
      %v634 = vunpack.c.h.b16 %v599
      %v635 = vunpack.c.l.b16 %v600
      %v636 = vunpack.c.h.b16 %v600
      %v637 = vunpack.c.l.b16 %v601
      %v638 = vunpack.c.h.b16 %v601
      %v639 = vunpack.c.l.b16 %v602
      %v640 = vunpack.c.h.b16 %v602
      %v641 = vunpack.c.l.b16 %v603
      %v642 = vunpack.c.h.b16 %v603
      %v643 = vunpack.c.l.b16 %v604
      %v644 = vunpack.c.h.b16 %v604
      %v645 = vunpack.c.l.b16 %v605
      %v646 = vunpack.c.h.b16 %v605
      %v647 = vunpack.c.l.b16 %v606
      %v648 = vunpack.c.h.b16 %v606
      %v649 = vunpack.c.l.b16 %v607
      %v650 = vunpack.c.h.b16 %v607
      %v651 = vunpack.c.l.b16 %v608
      %v652 = vunpack.c.h.b16 %v608
      %v653 = vunpack.c.l.b16 %v609
      %v654 = vunpack.c.h.b16 %v609
      %v655 = vunpack.c.l.b16 %v610
      %v656 = vunpack.c.h.b16 %v610
      %v657 = vunpack.c.l.b16 %v611
      %v658 = vunpack.c.h.b16 %v611
      %v659 = vunpack.c.l.b16 %v612
      %v660 = vunpack.c.h.b16 %v612
      %v661 = vpack.c.b16 %v629, %v629
      %v662 = vpack.c.b16 %v630, %v630
      %v663 = vpack.c.b16 %v631, %v631
      %v664 = vpack.c.b16 %v632, %v632
      %v665 = vpack.c.b16 %v633, %v633
      %v666 = vpack.c.b16 %v634, %v634
      %v667 = vpack.c.b16 %v635, %v635
      %v668 = vpack.c.b16 %v636, %v636
      %v669 = vpack.c.b16 %v637, %v637
      %v670 = vpack.c.b16 %v638, %v638
      %v671 = vpack.c.b16 %v639, %v639
      %v672 = vpack.c.b16 %v640, %v640
      %v673 = vpack.c.b16 %v641, %v641
      %v674 = vpack.c.b16 %v642, %v642
      %v675 = vpack.c.b16 %v643, %v643
      %v676 = vpack.c.b16 %v644, %v644
      %v677 = vpack.c.b16 %v645, %v645
      %v678 = vpack.c.b16 %v646, %v646
      %v679 = vpack.c.b16 %v647, %v647
      %v680 = vpack.c.b16 %v648, %v648
      %v681 = vpack.c.b16 %v649, %v649
      %v682 = vpack.c.b16 %v650, %v650
      %v683 = vpack.c.b16 %v651, %v651
      %v684 = vpack.c.b16 %v652, %v652
      %v685 = vpack.c.b16 %v653, %v653
      %v686 = vpack.c.b16 %v654, %v654
      %v687 = vpack.c.b16 %v655, %v655
      %v688 = vpack.c.b16 %v656, %v656
      %v689 = vpack.c.b16 %v657, %v657
      %v690 = vpack.c.b16 %v658, %v658
      %v691 = vpack.c.b16 %v659, %v659
      %v692 = vpack.c.b16 %v660, %v660
      %vm725 = vcmask 60416
      %726 = vst.msk [vmem:[%s145] sm:$0xf] %vm725, %v661
      %727 = vst.msk [vmem:[%s145 + $0x4] sm:$0xf] %vm725, %v662
      %728 = vst.msk [vmem:[%s145 + $0x8] sm:$0xf] %vm725, %v663
      %729 = vst.msk [vmem:[%s145 + $0xc] sm:$0xf] %vm725, %v664
      %730 = vst.msk [vmem:[%s145 + $0x10] sm:$0xf] %vm725, %v665
      %731 = vst.msk [vmem:[%s145 + $0x14] sm:$0xf] %vm725, %v666
      %732 = vst.msk [vmem:[%s145 + $0x18] sm:$0xf] %vm725, %v667
      %733 = vst.msk [vmem:[%s145 + $0x1c] sm:$0xf] %vm725, %v668
      %734 = vst.msk [vmem:[%s145 + $0x20] sm:$0xf] %vm725, %v669
      %735 = vst.msk [vmem:[%s145 + $0x24] sm:$0xf] %vm725, %v670
      %736 = vst.msk [vmem:[%s145 + $0x28] sm:$0xf] %vm725, %v671
      %737 = vst.msk [vmem:[%s145 + $0x2c] sm:$0xf] %vm725, %v672
      %738 = vst.msk [vmem:[%s145 + $0x30] sm:$0xf] %vm725, %v673
      %739 = vst.msk [vmem:[%s145 + $0x34] sm:$0xf] %vm725, %v674
      %740 = vst.msk [vmem:[%s145 + $0x38] sm:$0xf] %vm725, %v675
      %741 = vst.msk [vmem:[%s145 + $0x3c] sm:$0xf] %vm725, %v676
      %742 = vst.msk [vmem:[%s145 + $0x40] sm:$0xf] %vm725, %v677
      %743 = vst.msk [vmem:[%s145 + $0x44] sm:$0xf] %vm725, %v678
      %744 = vst.msk [vmem:[%s145 + $0x48] sm:$0xf] %vm725, %v679
      %745 = vst.msk [vmem:[%s145 + $0x4c] sm:$0xf] %vm725, %v680
      %746 = vst.msk [vmem:[%s145 + $0x50] sm:$0xf] %vm725, %v681
      %747 = vst.msk [vmem:[%s145 + $0x54] sm:$0xf] %vm725, %v682
      %748 = vst.msk [vmem:[%s145 + $0x58] sm:$0xf] %vm725, %v683
      %749 = vst.msk [vmem:[%s145 + $0x5c] sm:$0xf] %vm725, %v684
      %750 = vst.msk [vmem:[%s145 + $0x60] sm:$0xf] %vm725, %v685
      %751 = vst.msk [vmem:[%s145 + $0x64] sm:$0xf] %vm725, %v686
      %752 = vst.msk [vmem:[%s145 + $0x68] sm:$0xf] %vm725, %v687
      %753 = vst.msk [vmem:[%s145 + $0x6c] sm:$0xf] %vm725, %v688
      %754 = vst.msk [vmem:[%s145 + $0x70] sm:$0xf] %vm725, %v689
      %755 = vst.msk [vmem:[%s145 + $0x74] sm:$0xf] %vm725, %v690
      %756 = vst.msk [vmem:[%s145 + $0x78] sm:$0xf] %vm725, %v691
      %757 = vst.msk [vmem:[%s145 + $0x7c] sm:$0xf] %vm725, %v692
      %s758 = smul.u32 32, %s13
      %p759 = scmp.lt.s32.totalorder %s758, 255
      %s760 = scalar_select %p759, %s758, 255
      %s761 = smul.addr %s760, 4
      %s762 = scalar_lea.vmem %s2, %s761
      // Predicated region
      $region29: #{discriminator_forward.8} parent=27 // pred_check
        %p763 = pneg %p78
      $region30: #{discriminator_forward.8} parent=27 // pred_check_branch
        %765 = sbr.rel (%p763) target = $region32
      $region31: #{discriminator_forward.8} parent=27 // pred_region
        %s766 = smul.u32 32, %s13
      $region32: #{discriminator_forward.8} parent=27 // pred_fallthru
        _
    $region28: #{discriminator_forward.8} parent=5 // pred_fallthru
      _
    %p767 = scmp.le.s32.totalorder 2, %s8
    // Predicated region
    $region33: #{discriminator_forward.8} parent=5 // pred_check
      %p768 = pneg %p767
    $region34: #{discriminator_forward.8} parent=5 // pred_check_branch
      %770 = sbr.rel (%p768) target = $region36
    $region35: #{discriminator_forward.8} parent=5 // pred_region
      %s771 = ssub.s32 %s8, 2
      // Predicated region
      $region37: #{discriminator_forward.8} parent=35 // pred_check
        %p772 = pneg %p84
      $region38: #{discriminator_forward.8} parent=35 // pred_check_branch
        %774 = sbr.rel (%p772) target = $region40
      $region39: #{discriminator_forward.8} parent=35 // pred_region
        %s775 = smul.u32 32, %s14
        %p776 = scmp.lt.s32.totalorder %s775, 255
        %s777 = scalar_select %p776, %s775, 255
        %s778 = smul.addr %s777, 4
        %s779 = scalar_lea.vmem %s2, %s778
      $region40: #{discriminator_forward.8} parent=35 // pred_fallthru
        _
    $region36: #{discriminator_forward.8} parent=5 // pred_fallthru
      _
  $region6: #{discriminator_forward.8} parent=0 // loop_footer
    %s12 = sadd.s32 1, %s8
  $region7: #{discriminator_forward.8} parent=0 // loop_footer_branch
    %7 = sbr.rel target = $region3
  $region8: #{discriminator_forward.8} parent=0 // loop_exit
    _

// kernel: discriminator_forward.9
$region0: #{discriminator_forward.9}
  #allocation0 [shape = 'u32[]', space=smem, size = 0x4, offset = 0x4, fixed_abs, tag = 'smem constant byte address 0x4 - core index']
  #allocation1 [shape = 'u32[144,128]{1,0:T(1,128)}', space=vmem, size = 0x12000, scoped, tag = 'internal scratch']
  %s0 = inlined_call_operand.vmem [shape: bf16[512,128], index: 0, kind: input, shape index: {}]
  %s1 = inlined_call_operand.vmem [shape: bf16[128,16], index: 1, kind: input, shape index: {}]
  %s2 = inlined_call_operand.vmem [shape: f32[512,16], index: 2, kind: output, shape index: {0}]
  %s3 = inlined_call_operand.vmem [shape: f32[2,16], index: 3, kind: output, shape index: {1}]
  %4 = xla_tuple %s2, %s3
  %s5 = sld [smem:[#allocation0]]
  $region57: #{discriminator_forward.9} parent=0
    _
  %s7 = ssub.s32 1, %s5
  %s8 = scalar_select 0, %s7, %s5
  loop: start=0, step=1, limit=4
  $region2: #{discriminator_forward.9} parent=0 // loop_pre_header
    _
  $region3: #{discriminator_forward.9} parent=0 // loop_header
    %s10 = sphi 0, %s14
    %p11 = scmp.ge.s32.totalorder %s10, 4
    %s20 = sphi 0, %s22
    %s23 = sphi 0, %s20
    %s24 = sphi 0, %s23
    %s40 = sphi 0, %s24
    %s44 = sphi 0, %s44
    %s46 = sphi 0, %s44
    %s47 = sphi 0, %s46
    %s61 = sphi 0, %s47
    %s67 = sphi 0, %s69
    %s70 = sphi 0, %s67
    %s71 = sphi 0, %s70
    %s87 = sphi 0, %s71
    %s91 = sphi 0, %s91
    %s93 = sphi 0, %s91
    %s94 = sphi 0, %s93
    %s108 = sphi 0, %s94
  $region4: #{discriminator_forward.9} parent=0 // loop_header_branch
    %13 = sbr.rel (%p11) target = $region8
  $region5: #{discriminator_forward.9} parent=0 // loop_body
    %s15 = ssub.s32 %s10, 1
    %s16 = ssub.s32 %s10, 2
    %s17 = sadd.s32 %s10, 1
    %s18 = ssub.s32 %s10, %s17
    %p19 = scmp.eq.s32.totalorder %s18, 0
    %s21 = sadd.s32 %s20, 1
    %s22 = scalar_select %p19, %s20, %s21
    %p25 = pneg %p19
    %p26 = scmp.eq.s32.totalorder %s10, 1
    %p27 = por %p25, %p26
    %p28 = scmp.ne.s32.totalorder %s20, %s23
    %p29 = scmp.eq.s32.totalorder %s10, 0
    %p30 = por %p28, %p29
    %p31 = scmp.ne.s32.totalorder %s20, %s23
    %p32 = scmp.eq.s32.totalorder %s15, 1
    %p33 = por %p31, %p32
    %p34 = scmp.ne.s32.totalorder %s23, %s24
    %p35 = scmp.eq.s32.totalorder %s15, 0
    %p36 = por %p34, %p35
    %p37 = scmp.ne.s32.totalorder %s23, %s24
    %p38 = scmp.eq.s32.totalorder %s16, 1
    %p39 = por %p37, %p38
    %p41 = scmp.ne.s32.totalorder %s24, %s40
    %p42 = scmp.eq.s32.totalorder %s16, 0
    %p43 = por %p41, %p42
    %s45 = sadd.s32 %s44, 1
    %p48 = scmp.eq.s32.totalorder %s10, 1
    %p49 = scmp.ne.s32.totalorder %s44, %s46
    %p50 = scmp.eq.s32.totalorder %s10, 0
    %p51 = por %p49, %p50
    %p52 = scmp.ne.s32.totalorder %s44, %s46
    %p53 = scmp.eq.s32.totalorder %s15, 1
    %p54 = por %p52, %p53
    %p55 = scmp.ne.s32.totalorder %s46, %s47
    %p56 = scmp.eq.s32.totalorder %s15, 0
    %p57 = por %p55, %p56
    %p58 = scmp.ne.s32.totalorder %s46, %s47
    %p59 = scmp.eq.s32.totalorder %s16, 1
    %p60 = por %p58, %p59
    %p62 = scmp.ne.s32.totalorder %s47, %s61
    %p63 = scmp.eq.s32.totalorder %s16, 0
    %p64 = por %p62, %p63
    %s65 = ssub.s32 %s10, %s17
    %p66 = scmp.eq.s32.totalorder %s65, 0
    %s68 = sadd.s32 %s67, 1
    %s69 = scalar_select %p66, %s67, %s68
    %p72 = pneg %p66
    %p73 = scmp.eq.s32.totalorder %s10, 1
    %p74 = por %p72, %p73
    %p75 = scmp.ne.s32.totalorder %s67, %s70
    %p76 = scmp.eq.s32.totalorder %s10, 0
    %p77 = por %p75, %p76
    %p78 = scmp.ne.s32.totalorder %s67, %s70
    %p79 = scmp.eq.s32.totalorder %s15, 1
    %p80 = por %p78, %p79
    %p81 = scmp.ne.s32.totalorder %s70, %s71
    %p82 = scmp.eq.s32.totalorder %s15, 0
    %p83 = por %p81, %p82
    %p84 = scmp.ne.s32.totalorder %s70, %s71
    %p85 = scmp.eq.s32.totalorder %s16, 1
    %p86 = por %p84, %p85
    %p88 = scmp.ne.s32.totalorder %s71, %s87
    %p89 = scmp.eq.s32.totalorder %s16, 0
    %p90 = por %p88, %p89
    %s92 = sadd.s32 %s91, 1
    %p95 = scmp.eq.s32.totalorder %s10, 1
    %p96 = scmp.ne.s32.totalorder %s91, %s93
    %p97 = scmp.eq.s32.totalorder %s10, 0
    %p98 = por %p96, %p97
    %p99 = scmp.ne.s32.totalorder %s91, %s93
    %p100 = scmp.eq.s32.totalorder %s15, 1
    %p101 = por %p99, %p100
    %p102 = scmp.ne.s32.totalorder %s93, %s94
    %p103 = scmp.eq.s32.totalorder %s15, 0
    %p104 = por %p102, %p103
    %p105 = scmp.ne.s32.totalorder %s93, %s94
    %p106 = scmp.eq.s32.totalorder %s16, 1
    %p107 = por %p105, %p106
    %p109 = scmp.ne.s32.totalorder %s94, %s108
    %p110 = scmp.eq.s32.totalorder %s16, 0
    %p111 = por %p109, %p110
    %p112 = scmp.le.s32.totalorder 1, %s10
    %p113 = scmp.lt.s32.totalorder %s10, 3
    %p114 = pnand %p112, %p113
    %p115 = pneg %p114
    // Predicated region
    $region9: #{discriminator_forward.9} parent=5 // pred_check
      _
    $region10: #{discriminator_forward.9} parent=5 // pred_check_branch
      %117 = sbr.rel (%p114) target = $region12
    $region11: #{discriminator_forward.9} parent=5 // pred_region
      %s118 = ssub.s32 %s10, 1
      // Predicated region
      $region13: #{discriminator_forward.9} parent=11 // pred_check
        %p119 = pneg %p57
      $region14: #{discriminator_forward.9} parent=11 // pred_check_branch
        %121 = sbr.rel (%p119) target = $region16
      $region15: #{discriminator_forward.9} parent=11 // pred_region
        _
      $region16: #{discriminator_forward.9} parent=11 // pred_fallthru
        _
    $region12: #{discriminator_forward.9} parent=5 // pred_fallthru
      _
    %p122 = scmp.lt.s32.totalorder %s10, 2
    // Predicated region
    $region17: #{discriminator_forward.9} parent=5 // pred_check
      %p123 = pneg %p122
    $region18: #{discriminator_forward.9} parent=5 // pred_check_branch
      %125 = sbr.rel (%p123) target = $region20
    $region19: #{discriminator_forward.9} parent=5 // pred_region
      // Predicated region
      $region21: #{discriminator_forward.9} parent=19 // pred_check
        %p126 = pneg %p30
      $region22: #{discriminator_forward.9} parent=19 // pred_check_branch
        %128 = sbr.rel (%p126) target = $region24
      $region23: #{discriminator_forward.9} parent=19 // pred_region
        %s129 = smul.u32 32, %s10
        %p130 = scmp.lt.s32.totalorder %s129, 63
        %s131 = scalar_select %p130, %s129, 63
        %s132 = smul.addr %s131, 4
        %s133 = scalar_lea.vmem %s0, %s132
        %s134 = smul.u32 32, %s10
      $region24: #{discriminator_forward.9} parent=19 // pred_fallthru
        _
    $region20: #{discriminator_forward.9} parent=5 // pred_fallthru
      _
    %p135 = scmp.le.s32.totalorder 1, %s10
    %p136 = scmp.lt.s32.totalorder %s10, 3
    %p137 = pnand %p135, %p136
    %p138 = pneg %p137
    // Predicated region
    $region25: #{discriminator_forward.9} parent=5 // pred_check
      _
    $region26: #{discriminator_forward.9} parent=5 // pred_check_branch
      %140 = sbr.rel (%p137) target = $region28
    $region27: #{discriminator_forward.9} parent=5 // pred_region
      %s141 = ssub.s32 %s10, 1
      %s142 = smul.u32 32, %s15
      %p143 = scmp.lt.s32.totalorder %s142, 63
      %s144 = scalar_select %p143, %s142, 63
      %s145 = smul.addr %s144, 4
      %s146 = scalar_lea.vmem %s0, %s145
      %p147 = pneg %p36
      %p148 = pneg %p33
      %p149 = pneg %p57
      %p150 = pneg %p54
      %p151 = pneg %p83
      %p152 = pneg %p80
      %s153 = smul.u32 32, %s15
      %p154 = scmp.lt.s32.totalorder %s153, 63
      %s155 = scalar_select %p154, %s153, 63
      %s156 = smul.addr %s155, 8
      %s157 = scalar_lea.vmem %s2, %s156
      %p158 = pneg %p104
      %p159 = pneg %p101
      %s160 = smul.u32 32, %s15
      %p161 = scmp.lt.s32.totalorder %s160, 63
      %s162 = scalar_select %p161, %s160, 63
      %s163 = smul.addr %s162, 4
      %s164 = scalar_lea.vmem %s0, %s163
      %s165 = smul.u32 32, %s15
      %s166 = smul.u32 32, %s15
      %p167 = scmp.lt.s32.totalorder %s166, 63
      %s168 = scalar_select %p167, %s166, 63
      %s169 = smul.addr %s168, 8
      %s170 = scalar_lea.vmem %s2, %s169
      %s171 = smul.u32 32, %s15
      %v173 = vld [vmem:[%s164] sm:$0xf]
      %v174 = vld [vmem:[%s164 + $0x4] sm:$0xf]
      %v175 = vld [vmem:[%s164 + $0x8] sm:$0xf]
      %v176 = vld [vmem:[%s164 + $0xc] sm:$0xf]
      %v177 = vld [vmem:[%s164 + $0x10] sm:$0xf]
      %v178 = vld [vmem:[%s164 + $0x14] sm:$0xf]
      %v179 = vld [vmem:[%s164 + $0x18] sm:$0xf]
      %v180 = vld [vmem:[%s164 + $0x1c] sm:$0xf]
      %v181 = vld [vmem:[%s164 + $0x20] sm:$0xf]
      %v182 = vld [vmem:[%s164 + $0x24] sm:$0xf]
      %v183 = vld [vmem:[%s164 + $0x28] sm:$0xf]
      %v184 = vld [vmem:[%s164 + $0x2c] sm:$0xf]
      %v185 = vld [vmem:[%s164 + $0x30] sm:$0xf]
      %v186 = vld [vmem:[%s164 + $0x34] sm:$0xf]
      %v187 = vld [vmem:[%s164 + $0x38] sm:$0xf]
      %v188 = vld [vmem:[%s164 + $0x3c] sm:$0xf]
      %v189 = vld [vmem:[%s164 + $0x40] sm:$0xf]
      %v190 = vld [vmem:[%s164 + $0x44] sm:$0xf]
      %v191 = vld [vmem:[%s164 + $0x48] sm:$0xf]
      %v192 = vld [vmem:[%s164 + $0x4c] sm:$0xf]
      %v193 = vld [vmem:[%s164 + $0x50] sm:$0xf]
      %v194 = vld [vmem:[%s164 + $0x54] sm:$0xf]
      %v195 = vld [vmem:[%s164 + $0x58] sm:$0xf]
      %v196 = vld [vmem:[%s164 + $0x5c] sm:$0xf]
      %v197 = vld [vmem:[%s164 + $0x60] sm:$0xf]
      %v198 = vld [vmem:[%s164 + $0x64] sm:$0xf]
      %v199 = vld [vmem:[%s164 + $0x68] sm:$0xf]
      %v200 = vld [vmem:[%s164 + $0x6c] sm:$0xf]
      %v201 = vld [vmem:[%s164 + $0x70] sm:$0xf]
      %v202 = vld [vmem:[%s164 + $0x74] sm:$0xf]
      %v203 = vld [vmem:[%s164 + $0x78] sm:$0xf]
      %v204 = vld [vmem:[%s164 + $0x7c] sm:$0xf]
      %v205 = vld [vmem:[%s1] sm:$0xf]
      %v206 = vld [vmem:[%s1 + $0x4] sm:$0xf]
      %v207 = vld [vmem:[%s1 + $0x8] sm:$0xf]
      %v208 = vld [vmem:[%s1 + $0xc] sm:$0xf]
      %v209 = vld [vmem:[%s1 + $0x10] sm:$0xf]
      %v210 = vld [vmem:[%s1 + $0x14] sm:$0xf]
      %v211 = vld [vmem:[%s1 + $0x18] sm:$0xf]
      %v212 = vld [vmem:[%s1 + $0x1c] sm:$0xf]
      %v213 = vld [vmem:[%s1 + $0x20] sm:$0xf]
      %v214 = vld [vmem:[%s1 + $0x24] sm:$0xf]
      %v215 = vld [vmem:[%s1 + $0x28] sm:$0xf]
      %v216 = vld [vmem:[%s1 + $0x2c] sm:$0xf]
      %v217 = vld [vmem:[%s1 + $0x30] sm:$0xf]
      %v218 = vld [vmem:[%s1 + $0x34] sm:$0xf]
      %v219 = vld [vmem:[%s1 + $0x38] sm:$0xf]
      %v220 = vld [vmem:[%s1 + $0x3c] sm:$0xf]
      %v253 = vunpack.c.l.b16 %v173
      %v254 = vunpack.c.l.b16 %v174
      %v255 = vunpack.c.l.b16 %v175
      %v256 = vunpack.c.l.b16 %v176
      %v257 = vunpack.c.l.b16 %v177
      %v258 = vunpack.c.l.b16 %v178
      %v259 = vunpack.c.l.b16 %v179
      %v260 = vunpack.c.l.b16 %v180
      %v261 = vunpack.c.l.b16 %v181
      %v262 = vunpack.c.l.b16 %v182
      %v263 = vunpack.c.l.b16 %v183
      %v264 = vunpack.c.l.b16 %v184
      %v265 = vunpack.c.l.b16 %v185
      %v266 = vunpack.c.l.b16 %v186
      %v267 = vunpack.c.l.b16 %v187
      %v268 = vunpack.c.l.b16 %v188
      %v269 = vunpack.c.l.b16 %v189
      %v270 = vunpack.c.l.b16 %v190
      %v271 = vunpack.c.l.b16 %v191
      %v272 = vunpack.c.l.b16 %v192
      %v273 = vunpack.c.l.b16 %v193
      %v274 = vunpack.c.l.b16 %v194
      %v275 = vunpack.c.l.b16 %v195
      %v276 = vunpack.c.l.b16 %v196
      %v277 = vunpack.c.l.b16 %v197
      %v278 = vunpack.c.l.b16 %v198
      %v279 = vunpack.c.l.b16 %v199
      %v280 = vunpack.c.l.b16 %v200
      %v281 = vunpack.c.l.b16 %v201
      %v282 = vunpack.c.l.b16 %v202
      %v283 = vunpack.c.l.b16 %v203
      %v284 = vunpack.c.l.b16 %v204
      %v285 = vpack.c.b16 %v254, %v253
      %v286 = vpack.c.b16 %v256, %v255
      %v287 = vpack.c.b16 %v258, %v257
      %v288 = vpack.c.b16 %v260, %v259
      %v289 = vpack.c.b16 %v262, %v261
      %v290 = vpack.c.b16 %v264, %v263
      %v291 = vpack.c.b16 %v266, %v265
      %v292 = vpack.c.b16 %v268, %v267
      %v293 = vpack.c.b16 %v270, %v269
      %v294 = vpack.c.b16 %v272, %v271
      %v295 = vpack.c.b16 %v274, %v273
      %v296 = vpack.c.b16 %v276, %v275
      %v297 = vpack.c.b16 %v278, %v277
      %v298 = vpack.c.b16 %v280, %v279
      %v299 = vpack.c.b16 %v282, %v281
      %v300 = vpack.c.b16 %v284, %v283
      %v333 = vunpack.c.l.b16 %v205
      %v334 = vunpack.c.l.b16 %v206
      %v335 = vunpack.c.l.b16 %v207
      %v336 = vunpack.c.l.b16 %v208
      %v337 = vunpack.c.l.b16 %v209
      %v338 = vunpack.c.l.b16 %v210
      %v339 = vunpack.c.l.b16 %v211
      %v340 = vunpack.c.l.b16 %v212
      %v341 = vunpack.c.l.b16 %v213
      %v342 = vunpack.c.l.b16 %v214
      %v343 = vunpack.c.l.b16 %v215
      %v344 = vunpack.c.l.b16 %v216
      %v345 = vunpack.c.l.b16 %v217
      %v346 = vunpack.c.l.b16 %v218
      %v347 = vunpack.c.l.b16 %v219
      %v348 = vunpack.c.l.b16 %v220
      %v349 = vpack.c.b16 %v334, %v333
      %v350 = vpack.c.b16 %v336, %v335
      %v351 = vpack.c.b16 %v338, %v337
      %v352 = vpack.c.b16 %v340, %v339
      %v353 = vpack.c.b16 %v342, %v341
      %v354 = vpack.c.b16 %v344, %v343
      %v355 = vpack.c.b16 %v346, %v345
      %v356 = vpack.c.b16 %v348, %v347
      %365 = vmatprep.subr.bf16.mxu0 0
      %366 = vmatpush1.bf16.msra.mxu0 %v356
      %367 = vmatprep.subr.bf16.mxu0 0
      %368 = vmatpush1.bf16.msra.mxu0 %v355
      %369 = vmatprep.subr.bf16.mxu0 0
      %370 = vmatpush1.bf16.msra.mxu0 %v354
      %371 = vmatprep.subr.bf16.mxu0 0
      %372 = vmatpush1.bf16.msra.mxu0 %v353
      %373 = vmatprep.subr.bf16.mxu0 0
      %374 = vmatpush1.bf16.msra.mxu0 %v352
      %375 = vmatprep.subr.bf16.mxu0 0
      %376 = vmatpush1.bf16.msra.mxu0 %v351
      %377 = vmatprep.subr.bf16.mxu0 0
      %378 = vmatpush1.bf16.msra.mxu0 %v350
      %379 = vmatprep.subr.bf16.mxu0 0
      %380 = vmatpush1.bf16.msra.mxu0 %v349
      %381 = vmatprep.subr.bf16.mxu0 0
      %382 = vmatpush2.bf16.msra.mxu0 0
      %383 = vmatprep.subr.bf16.mxu0 0
      %384 = vmatpush2.bf16.msra.mxu0 0
      %385 = vmatprep.subr.bf16.mxu0 0
      %386 = vmatpush2.bf16.msra.mxu0 0
      %387 = vmatprep.subr.bf16.mxu0 0
      %388 = vmatpush2.bf16.msra.mxu0 0
      %389 = vmatprep.subr.bf16.mxu0 0
      %390 = vmatpush2.bf16.msra.mxu0 0
      %391 = vmatprep.subr.bf16.mxu0 0
      %392 = vmatpush2.bf16.msra.mxu0 0
      %393 = vmatprep.subr.bf16.mxu0 0
      %394 = vmatpush2.bf16.msra.mxu0 0
      %395 = vmatprep.subr.bf16.mxu0 0
      %396 = vmatpush2.bf16.msra.mxu0 0
      %397 = vmatprep.mubr.bf16.mxu0 0
      %398 = vmatmul.mubr.bf16.gmra.mxu0 %v285
      %v399 = vpop.f32.mrf.mxu0
      %v400 = vadd.f32 0.0, %v399
      %v401 = vpop.f32.mrf.mxu0
      %v402 = vpop.f32.mrf.mxu0
      %v403 = vadd.f32 0.0, %v402
      %v404 = vpop.f32.mrf.mxu0
      %405 = vmatprep.mubr.bf16.mxu0 0
      %406 = vmatmul.mubr.bf16.gmra.mxu0 %v286
      %v407 = vpop.f32.mrf.mxu0
      %v408 = vadd.f32 0.0, %v407
      %v409 = vpop.f32.mrf.mxu0
      %v410 = vpop.f32.mrf.mxu0
      %v411 = vadd.f32 0.0, %v410
      %v412 = vpop.f32.mrf.mxu0
      %413 = vmatprep.mubr.bf16.mxu0 0
      %414 = vmatmul.mubr.bf16.gmra.mxu0 %v287
      %v415 = vpop.f32.mrf.mxu0
      %v416 = vadd.f32 0.0, %v415
      %v417 = vpop.f32.mrf.mxu0
      %v418 = vpop.f32.mrf.mxu0
      %v419 = vadd.f32 0.0, %v418
      %v420 = vpop.f32.mrf.mxu0
      %421 = vmatprep.mubr.bf16.mxu0 0
      %422 = vmatmul.mubr.bf16.gmra.mxu0 %v288
      %v423 = vpop.f32.mrf.mxu0
      %v424 = vadd.f32 0.0, %v423
      %v425 = vpop.f32.mrf.mxu0
      %v426 = vpop.f32.mrf.mxu0
      %v427 = vadd.f32 0.0, %v426
      %v428 = vpop.f32.mrf.mxu0
      %429 = vmatprep.mubr.bf16.mxu0 0
      %430 = vmatmul.mubr.bf16.gmra.mxu0 %v289
      %v431 = vpop.f32.mrf.mxu0
      %v432 = vadd.f32 0.0, %v431
      %v433 = vpop.f32.mrf.mxu0
      %v434 = vpop.f32.mrf.mxu0
      %v435 = vadd.f32 0.0, %v434
      %v436 = vpop.f32.mrf.mxu0
      %437 = vmatprep.mubr.bf16.mxu0 0
      %438 = vmatmul.mubr.bf16.gmra.mxu0 %v290
      %v439 = vpop.f32.mrf.mxu0
      %v440 = vadd.f32 0.0, %v439
      %v441 = vpop.f32.mrf.mxu0
      %v442 = vpop.f32.mrf.mxu0
      %v443 = vadd.f32 0.0, %v442
      %v444 = vpop.f32.mrf.mxu0
      %445 = vmatprep.mubr.bf16.mxu0 0
      %446 = vmatmul.mubr.bf16.gmra.mxu0 %v291
      %v447 = vpop.f32.mrf.mxu0
      %v448 = vadd.f32 0.0, %v447
      %v449 = vpop.f32.mrf.mxu0
      %v450 = vpop.f32.mrf.mxu0
      %v451 = vadd.f32 0.0, %v450
      %v452 = vpop.f32.mrf.mxu0
      %453 = vmatprep.mubr.bf16.mxu0 0
      %454 = vmatmul.mubr.bf16.gmra.mxu0 %v292
      %v455 = vpop.f32.mrf.mxu0
      %v456 = vadd.f32 0.0, %v455
      %v457 = vpop.f32.mrf.mxu0
      %v458 = vpop.f32.mrf.mxu0
      %v459 = vadd.f32 0.0, %v458
      %v460 = vpop.f32.mrf.mxu0
      %461 = vmatprep.mubr.bf16.mxu0 0
      %462 = vmatmul.mubr.bf16.gmra.mxu0 %v293
      %v463 = vpop.f32.mrf.mxu0
      %v464 = vadd.f32 0.0, %v463
      %v465 = vpop.f32.mrf.mxu0
      %v466 = vpop.f32.mrf.mxu0
      %v467 = vadd.f32 0.0, %v466
      %v468 = vpop.f32.mrf.mxu0
      %469 = vmatprep.mubr.bf16.mxu0 0
      %470 = vmatmul.mubr.bf16.gmra.mxu0 %v294
      %v471 = vpop.f32.mrf.mxu0
      %v472 = vadd.f32 0.0, %v471
      %v473 = vpop.f32.mrf.mxu0
      %v474 = vpop.f32.mrf.mxu0
      %v475 = vadd.f32 0.0, %v474
      %v476 = vpop.f32.mrf.mxu0
      %477 = vmatprep.mubr.bf16.mxu0 0
      %478 = vmatmul.mubr.bf16.gmra.mxu0 %v295
      %v479 = vpop.f32.mrf.mxu0
      %v480 = vadd.f32 0.0, %v479
      %v481 = vpop.f32.mrf.mxu0
      %v482 = vpop.f32.mrf.mxu0
      %v483 = vadd.f32 0.0, %v482
      %v484 = vpop.f32.mrf.mxu0
      %485 = vmatprep.mubr.bf16.mxu0 0
      %486 = vmatmul.mubr.bf16.gmra.mxu0 %v296
      %v487 = vpop.f32.mrf.mxu0
      %v488 = vadd.f32 0.0, %v487
      %v489 = vpop.f32.mrf.mxu0
      %v490 = vpop.f32.mrf.mxu0
      %v491 = vadd.f32 0.0, %v490
      %v492 = vpop.f32.mrf.mxu0
      %493 = vmatprep.mubr.bf16.mxu0 0
      %494 = vmatmul.mubr.bf16.gmra.mxu0 %v297
      %v495 = vpop.f32.mrf.mxu0
      %v496 = vadd.f32 0.0, %v495
      %v497 = vpop.f32.mrf.mxu0
      %v498 = vpop.f32.mrf.mxu0
      %v499 = vadd.f32 0.0, %v498
      %v500 = vpop.f32.mrf.mxu0
      %501 = vmatprep.mubr.bf16.mxu0 0
      %502 = vmatmul.mubr.bf16.gmra.mxu0 %v298
      %v503 = vpop.f32.mrf.mxu0
      %v504 = vadd.f32 0.0, %v503
      %v505 = vpop.f32.mrf.mxu0
      %v506 = vpop.f32.mrf.mxu0
      %v507 = vadd.f32 0.0, %v506
      %v508 = vpop.f32.mrf.mxu0
      %509 = vmatprep.mubr.bf16.mxu0 0
      %510 = vmatmul.mubr.bf16.gmra.mxu0 %v299
      %v511 = vpop.f32.mrf.mxu0
      %v512 = vadd.f32 0.0, %v511
      %v513 = vpop.f32.mrf.mxu0
      %v514 = vpop.f32.mrf.mxu0
      %v515 = vadd.f32 0.0, %v514
      %v516 = vpop.f32.mrf.mxu0
      %517 = vmatprep.mubr.bf16.mxu0 0
      %518 = vmatmul.mubr.bf16.gmra.mxu0 %v300
      %v519 = vpop.f32.mrf.mxu0
      %v520 = vadd.f32 0.0, %v519
      %v521 = vpop.f32.mrf.mxu0
      %v522 = vpop.f32.mrf.mxu0
      %v523 = vadd.f32 0.0, %v522
      %v524 = vpop.f32.mrf.mxu0
      %525 = vdwg.mxu0
      %vm526 = vcmask 130048
      %527 = vst.msk [vmem:[%s170] sm:$0xff] %vm526, %v400
      %528 = vst.msk [vmem:[%s170 + $0x8] sm:$0xff] %vm526, %v403
      %529 = vst.msk [vmem:[%s170 + $0x10] sm:$0xff] %vm526, %v408
      %530 = vst.msk [vmem:[%s170 + $0x18] sm:$0xff] %vm526, %v411
      %531 = vst.msk [vmem:[%s170 + $0x20] sm:$0xff] %vm526, %v416
      %532 = vst.msk [vmem:[%s170 + $0x28] sm:$0xff] %vm526, %v419
      %533 = vst.msk [vmem:[%s170 + $0x30] sm:$0xff] %vm526, %v424
      %534 = vst.msk [vmem:[%s170 + $0x38] sm:$0xff] %vm526, %v427
      %535 = vst.msk [vmem:[%s170 + $0x40] sm:$0xff] %vm526, %v432
      %536 = vst.msk [vmem:[%s170 + $0x48] sm:$0xff] %vm526, %v435
      %537 = vst.msk [vmem:[%s170 + $0x50] sm:$0xff] %vm526, %v440
      %538 = vst.msk [vmem:[%s170 + $0x58] sm:$0xff] %vm526, %v443
      %539 = vst.msk [vmem:[%s170 + $0x60] sm:$0xff] %vm526, %v448
      %540 = vst.msk [vmem:[%s170 + $0x68] sm:$0xff] %vm526, %v451
      %541 = vst.msk [vmem:[%s170 + $0x70] sm:$0xff] %vm526, %v456
      %542 = vst.msk [vmem:[%s170 + $0x78] sm:$0xff] %vm526, %v459
      %543 = vst.msk [vmem:[%s170 + $0x80] sm:$0xff] %vm526, %v464
      %544 = vst.msk [vmem:[%s170 + $0x88] sm:$0xff] %vm526, %v467
      %545 = vst.msk [vmem:[%s170 + $0x90] sm:$0xff] %vm526, %v472
      %546 = vst.msk [vmem:[%s170 + $0x98] sm:$0xff] %vm526, %v475
      %547 = vst.msk [vmem:[%s170 + $0xa0] sm:$0xff] %vm526, %v480
      %548 = vst.msk [vmem:[%s170 + $0xa8] sm:$0xff] %vm526, %v483
      %549 = vst.msk [vmem:[%s170 + $0xb0] sm:$0xff] %vm526, %v488
      %550 = vst.msk [vmem:[%s170 + $0xb8] sm:$0xff] %vm526, %v491
      %551 = vst.msk [vmem:[%s170 + $0xc0] sm:$0xff] %vm526, %v496
      %552 = vst.msk [vmem:[%s170 + $0xc8] sm:$0xff] %vm526, %v499
      %553 = vst.msk [vmem:[%s170 + $0xd0] sm:$0xff] %vm526, %v504
      %554 = vst.msk [vmem:[%s170 + $0xd8] sm:$0xff] %vm526, %v507
      %555 = vst.msk [vmem:[%s170 + $0xe0] sm:$0xff] %vm526, %v512
      %556 = vst.msk [vmem:[%s170 + $0xe8] sm:$0xff] %vm526, %v515
      %557 = vst.msk [vmem:[%s170 + $0xf0] sm:$0xff] %vm526, %v520
      %558 = vst.msk [vmem:[%s170 + $0xf8] sm:$0xff] %vm526, %v523
      %v559 = vsel %vm526, %v400, 0.0
      %v560 = vsel %vm526, %v403, 0.0
      %v561 = vadd.f32 %v559, %v560
      %v562 = vsel %vm526, %v408, 0.0
      %v563 = vadd.f32 %v561, %v562
      %v564 = vsel %vm526, %v411, 0.0
      %v565 = vadd.f32 %v563, %v564
      %v566 = vsel %vm526, %v416, 0.0
      %v567 = vadd.f32 %v565, %v566
      %v568 = vsel %vm526, %v419, 0.0
      %v569 = vadd.f32 %v567, %v568
      %v570 = vsel %vm526, %v424, 0.0
      %v571 = vadd.f32 %v569, %v570
      %v572 = vsel %vm526, %v427, 0.0
      %v573 = vadd.f32 %v571, %v572
      %v574 = vsel %vm526, %v432, 0.0
      %v575 = vadd.f32 %v573, %v574
      %v576 = vsel %vm526, %v435, 0.0
      %v577 = vadd.f32 %v575, %v576
      %v578 = vsel %vm526, %v440, 0.0
      %v579 = vadd.f32 %v577, %v578
      %v580 = vsel %vm526, %v443, 0.0
      %v581 = vadd.f32 %v579, %v580
      %v582 = vsel %vm526, %v448, 0.0
      %v583 = vadd.f32 %v581, %v582
      %v584 = vsel %vm526, %v451, 0.0
      %v585 = vadd.f32 %v583, %v584
      %v586 = vsel %vm526, %v456, 0.0
      %v587 = vadd.f32 %v585, %v586
      %v588 = vsel %vm526, %v459, 0.0
      %v589 = vadd.f32 %v587, %v588
      %v590 = vsel %vm526, %v464, 0.0
      %v591 = vadd.f32 %v589, %v590
      %v592 = vsel %vm526, %v467, 0.0
      %v593 = vadd.f32 %v591, %v592
      %v594 = vsel %vm526, %v472, 0.0
      %v595 = vadd.f32 %v593, %v594
      %v596 = vsel %vm526, %v475, 0.0
      %v597 = vadd.f32 %v595, %v596
      %v598 = vsel %vm526, %v480, 0.0
      %v599 = vadd.f32 %v597, %v598
      %v600 = vsel %vm526, %v483, 0.0
      %v601 = vadd.f32 %v599, %v600
      %v602 = vsel %vm526, %v488, 0.0
      %v603 = vadd.f32 %v601, %v602
      %v604 = vsel %vm526, %v491, 0.0
      %v605 = vadd.f32 %v603, %v604
      %v606 = vsel %vm526, %v496, 0.0
      %v607 = vadd.f32 %v605, %v606
      %v608 = vsel %vm526, %v499, 0.0
      %v609 = vadd.f32 %v607, %v608
      %v610 = vsel %vm526, %v504, 0.0
      %v611 = vadd.f32 %v609, %v610
      %v612 = vsel %vm526, %v507, 0.0
      %v613 = vadd.f32 %v611, %v612
      %v614 = vsel %vm526, %v512, 0.0
      %v615 = vadd.f32 %v613, %v614
      %v616 = vsel %vm526, %v515, 0.0
      %v617 = vadd.f32 %v615, %v616
      %v618 = vsel %vm526, %v520, 0.0
      %v619 = vadd.f32 %v617, %v618
      %v620 = vsel %vm526, %v523, 0.0
      %v621 = vadd.f32 %v619, %v620
      %v622 = vrot.slane %v621, 4
      %v623 = vadd.f32 %v621, %v622
      %v624 = vrot.slane %v623, 2
      %v625 = vadd.f32 %v623, %v624
      %v626 = vrot.slane %v625, 1
      %v627 = vadd.f32 %v625, %v626
      %v628 = vmul.f32 %v400, %v400
      %v629 = vmul.f32 %v403, %v403
      %v630 = vmul.f32 %v408, %v408
      %v631 = vmul.f32 %v411, %v411
      %v632 = vmul.f32 %v416, %v416
      %v633 = vmul.f32 %v419, %v419
      %v634 = vmul.f32 %v424, %v424
      %v635 = vmul.f32 %v427, %v427
      %v636 = vmul.f32 %v432, %v432
      %v637 = vmul.f32 %v435, %v435
      %v638 = vmul.f32 %v440, %v440
      %v639 = vmul.f32 %v443, %v443
      %v640 = vmul.f32 %v448, %v448
      %v641 = vmul.f32 %v451, %v451
      %v642 = vmul.f32 %v456, %v456
      %v643 = vmul.f32 %v459, %v459
      %v644 = vmul.f32 %v464, %v464
      %v645 = vmul.f32 %v467, %v467
      %v646 = vmul.f32 %v472, %v472
      %v647 = vmul.f32 %v475, %v475
      %v648 = vmul.f32 %v480, %v480
      %v649 = vmul.f32 %v483, %v483
      %v650 = vmul.f32 %v488, %v488
      %v651 = vmul.f32 %v491, %v491
      %v652 = vmul.f32 %v496, %v496
      %v653 = vmul.f32 %v499, %v499
      %v654 = vmul.f32 %v504, %v504
      %v655 = vmul.f32 %v507, %v507
      %v656 = vmul.f32 %v512, %v512
      %v657 = vmul.f32 %v515, %v515
      %v658 = vmul.f32 %v520, %v520
      %v659 = vmul.f32 %v523, %v523
      %v660 = vsel %vm526, %v628, 0.0
      %v661 = vsel %vm526, %v629, 0.0
      %v662 = vadd.f32 %v660, %v661
      %v663 = vsel %vm526, %v630, 0.0
      %v664 = vadd.f32 %v662, %v663
      %v665 = vsel %vm526, %v631, 0.0
      %v666 = vadd.f32 %v664, %v665
      %v667 = vsel %vm526, %v632, 0.0
      %v668 = vadd.f32 %v666, %v667
      %v669 = vsel %vm526, %v633, 0.0
      %v670 = vadd.f32 %v668, %v669
      %v671 = vsel %vm526, %v634, 0.0
      %v672 = vadd.f32 %v670, %v671
      %v673 = vsel %vm526, %v635, 0.0
      %v674 = vadd.f32 %v672, %v673
      %v675 = vsel %vm526, %v636, 0.0
      %v676 = vadd.f32 %v674, %v675
      %v677 = vsel %vm526, %v637, 0.0
      %v678 = vadd.f32 %v676, %v677
      %v679 = vsel %vm526, %v638, 0.0
      %v680 = vadd.f32 %v678, %v679
      %v681 = vsel %vm526, %v639, 0.0
      %v682 = vadd.f32 %v680, %v681
      %v683 = vsel %vm526, %v640, 0.0
      %v684 = vadd.f32 %v682, %v683
      %v685 = vsel %vm526, %v641, 0.0
      %v686 = vadd.f32 %v684, %v685
      %v687 = vsel %vm526, %v642, 0.0
      %v688 = vadd.f32 %v686, %v687
      %v689 = vsel %vm526, %v643, 0.0
      %v690 = vadd.f32 %v688, %v689
      %v691 = vsel %vm526, %v644, 0.0
      %v692 = vadd.f32 %v690, %v691
      %v693 = vsel %vm526, %v645, 0.0
      %v694 = vadd.f32 %v692, %v693
      %v695 = vsel %vm526, %v646, 0.0
      %v696 = vadd.f32 %v694, %v695
      %v697 = vsel %vm526, %v647, 0.0
      %v698 = vadd.f32 %v696, %v697
      %v699 = vsel %vm526, %v648, 0.0
      %v700 = vadd.f32 %v698, %v699
      %v701 = vsel %vm526, %v649, 0.0
      %v702 = vadd.f32 %v700, %v701
      %v703 = vsel %vm526, %v650, 0.0
      %v704 = vadd.f32 %v702, %v703
      %v705 = vsel %vm526, %v651, 0.0
      %v706 = vadd.f32 %v704, %v705
      %v707 = vsel %vm526, %v652, 0.0
      %v708 = vadd.f32 %v706, %v707
      %v709 = vsel %vm526, %v653, 0.0
      %v710 = vadd.f32 %v708, %v709
      %v711 = vsel %vm526, %v654, 0.0
      %v712 = vadd.f32 %v710, %v711
      %v713 = vsel %vm526, %v655, 0.0
      %v714 = vadd.f32 %v712, %v713
      %v715 = vsel %vm526, %v656, 0.0
      %v716 = vadd.f32 %v714, %v715
      %v717 = vsel %vm526, %v657, 0.0
      %v718 = vadd.f32 %v716, %v717
      %v719 = vsel %vm526, %v658, 0.0
      %v720 = vadd.f32 %v718, %v719
      %v721 = vsel %vm526, %v659, 0.0
      %v722 = vadd.f32 %v720, %v721
      %v723 = vrot.slane %v722, 4
      %v724 = vadd.f32 %v722, %v723
      %v725 = vrot.slane %v724, 2
      %v726 = vadd.f32 %v724, %v725
      %v727 = vrot.slane %v726, 1
      %v728 = vadd.f32 %v726, %v727
      %vm729 = vcmask 1040384
      %v730 = vsel %vm729, %v627, %v728
      %p731 = scmp.eq.s32.totalorder %s15, 0
      // Predicated region
      $region29: #{discriminator_forward.9} parent=27 // pred_check
        %p732 = pneg %p731
      $region30: #{discriminator_forward.9} parent=27 // pred_check_branch
        %734 = sbr.rel (%p732) target = $region32
      $region31: #{discriminator_forward.9} parent=27 // pred_region
        %vm735 = vcmask 123904
        %736 = vst.msk [vmem:[%s3] sm:$0x3] %vm735, %v730
      $region32: #{discriminator_forward.9} parent=27 // pred_fallthru
        _
      %p737 = scmp.gt.s32.totalorder %s15, 0
      // Predicated region
      $region33: #{discriminator_forward.9} parent=27 // pred_check
        %p738 = pneg %p737
      $region34: #{discriminator_forward.9} parent=27 // pred_check_branch
        %740 = sbr.rel (%p738) target = $region36
      $region35: #{discriminator_forward.9} parent=27 // pred_region
        %v741 = vld [vmem:[%s3] sm:$0x3]
        %v742 = vadd.f32 %v741, %v730
        %vm743 = vcmask 123904
        %744 = vst.msk [vmem:[%s3] sm:$0x3] %vm743, %v742
      $region36: #{discriminator_forward.9} parent=27 // pred_fallthru
        _
      %s745 = smul.u32 32, %s15
      %p746 = scmp.lt.s32.totalorder %s745, 63
      %s747 = scalar_select %p746, %s745, 63
      %s748 = smul.addr %s747, 8
      %s749 = scalar_lea.vmem %s2, %s748
      // Predicated region
      $region37: #{discriminator_forward.9} parent=27 // pred_check
        %p750 = pneg %p80
      $region38: #{discriminator_forward.9} parent=27 // pred_check_branch
        %752 = sbr.rel (%p750) target = $region40
      $region39: #{discriminator_forward.9} parent=27 // pred_region
        %s753 = smul.u32 32, %s15
      $region40: #{discriminator_forward.9} parent=27 // pred_fallthru
        _
      // Predicated region
      $region41: #{discriminator_forward.9} parent=27 // pred_check
        %p754 = pneg %p101
      $region42: #{discriminator_forward.9} parent=27 // pred_check_branch
        %756 = sbr.rel (%p754) target = $region44
      $region43: #{discriminator_forward.9} parent=27 // pred_region
        _
      $region44: #{discriminator_forward.9} parent=27 // pred_fallthru
        _
      // Predicated region
      $region45: #{discriminator_forward.9} parent=27 // pred_check
        %p757 = pneg %p101
      $region46: #{discriminator_forward.9} parent=27 // pred_check_branch
        %759 = sbr.rel (%p757) target = $region48
      $region47: #{discriminator_forward.9} parent=27 // pred_region
        _
      $region48: #{discriminator_forward.9} parent=27 // pred_fallthru
        _
    $region28: #{discriminator_forward.9} parent=5 // pred_fallthru
      _
    %p760 = scmp.le.s32.totalorder 2, %s10
    // Predicated region
    $region49: #{discriminator_forward.9} parent=5 // pred_check
      %p761 = pneg %p760
    $region50: #{discriminator_forward.9} parent=5 // pred_check_branch
      %763 = sbr.rel (%p761) target = $region52
    $region51: #{discriminator_forward.9} parent=5 // pred_region
      %s764 = ssub.s32 %s10, 2
      // Predicated region
      $region53: #{discriminator_forward.9} parent=51 // pred_check
        %p765 = pneg %p86
      $region54: #{discriminator_forward.9} parent=51 // pred_check_branch
        %767 = sbr.rel (%p765) target = $region56
      $region55: #{discriminator_forward.9} parent=51 // pred_region
        %s768 = smul.u32 32, %s16
        %p769 = scmp.lt.s32.totalorder %s768, 63
        %s770 = scalar_select %p769, %s768, 63
        %s771 = smul.addr %s770, 8
        %s772 = scalar_lea.vmem %s2, %s771
      $region56: #{discriminator_forward.9} parent=51 // pred_fallthru
        _
    $region52: #{discriminator_forward.9} parent=5 // pred_fallthru
      _
  $region6: #{discriminator_forward.9} parent=0 // loop_footer
    %s14 = sadd.s32 1, %s10
  $region7: #{discriminator_forward.9} parent=0 // loop_footer_branch
    %9 = sbr.rel target = $region3
  $region8: #{discriminator_forward.9} parent=0 // loop_exit
    _

// kernel: discriminator_forward.10
$region0: #{discriminator_forward.10}
  #allocation0 [shape = 'u32[]', space=smem, size = 0x4, offset = 0x4, fixed_abs, tag = 'smem constant byte address 0x4 - core index']
  #allocation1 [shape = 'u32[144,128]{1,0:T(1,128)}', space=vmem, size = 0x12000, scoped, tag = 'internal scratch']
  %s0 = inlined_call_operand.vmem [shape: f32[512,16], index: 0, kind: input, shape index: {}]
  %s1 = inlined_call_operand.vmem [shape: f32[1,16], index: 1, kind: input, shape index: {}]
  %s2 = inlined_call_operand.vmem [shape: f32[1,16], index: 2, kind: input, shape index: {}]
  %s3 = inlined_call_operand.vmem [shape: bf16[512,16], index: 3, kind: output, shape index: {}]
  %s4 = sld [smem:[#allocation0]]
  $region45: #{discriminator_forward.10} parent=0
    _
  %s6 = ssub.s32 1, %s4
  %s7 = scalar_select 0, %s6, %s4
  loop: start=0, step=1, limit=4
  $region2: #{discriminator_forward.10} parent=0 // loop_pre_header
    _
  $region3: #{discriminator_forward.10} parent=0 // loop_header
    %s9 = sphi 0, %s13
    %p10 = scmp.ge.s32.totalorder %s9, 4
    %s19 = sphi 0, %s21
    %s22 = sphi 0, %s19
    %s23 = sphi 0, %s22
    %s39 = sphi 0, %s23
    %s43 = sphi 0, %s43
    %s45 = sphi 0, %s43
    %s46 = sphi 0, %s45
    %s60 = sphi 0, %s46
    %s64 = sphi 0, %s64
    %s66 = sphi 0, %s64
    %s67 = sphi 0, %s66
    %s81 = sphi 0, %s67
    %s87 = sphi 0, %s89
    %s90 = sphi 0, %s87
    %s91 = sphi 0, %s90
    %s107 = sphi 0, %s91
  $region4: #{discriminator_forward.10} parent=0 // loop_header_branch
    %12 = sbr.rel (%p10) target = $region8
  $region5: #{discriminator_forward.10} parent=0 // loop_body
    %s14 = ssub.s32 %s9, 1
    %s15 = ssub.s32 %s9, 2
    %s16 = sadd.s32 %s9, 1
    %s17 = ssub.s32 %s9, %s16
    %p18 = scmp.eq.s32.totalorder %s17, 0
    %s20 = sadd.s32 %s19, 1
    %s21 = scalar_select %p18, %s19, %s20
    %p24 = pneg %p18
    %p25 = scmp.eq.s32.totalorder %s9, 1
    %p26 = por %p24, %p25
    %p27 = scmp.ne.s32.totalorder %s19, %s22
    %p28 = scmp.eq.s32.totalorder %s9, 0
    %p29 = por %p27, %p28
    %p30 = scmp.ne.s32.totalorder %s19, %s22
    %p31 = scmp.eq.s32.totalorder %s14, 1
    %p32 = por %p30, %p31
    %p33 = scmp.ne.s32.totalorder %s22, %s23
    %p34 = scmp.eq.s32.totalorder %s14, 0
    %p35 = por %p33, %p34
    %p36 = scmp.ne.s32.totalorder %s22, %s23
    %p37 = scmp.eq.s32.totalorder %s15, 1
    %p38 = por %p36, %p37
    %p40 = scmp.ne.s32.totalorder %s23, %s39
    %p41 = scmp.eq.s32.totalorder %s15, 0
    %p42 = por %p40, %p41
    %s44 = sadd.s32 %s43, 1
    %p47 = scmp.eq.s32.totalorder %s9, 1
    %p48 = scmp.ne.s32.totalorder %s43, %s45
    %p49 = scmp.eq.s32.totalorder %s9, 0
    %p50 = por %p48, %p49
    %p51 = scmp.ne.s32.totalorder %s43, %s45
    %p52 = scmp.eq.s32.totalorder %s14, 1
    %p53 = por %p51, %p52
    %p54 = scmp.ne.s32.totalorder %s45, %s46
    %p55 = scmp.eq.s32.totalorder %s14, 0
    %p56 = por %p54, %p55
    %p57 = scmp.ne.s32.totalorder %s45, %s46
    %p58 = scmp.eq.s32.totalorder %s15, 1
    %p59 = por %p57, %p58
    %p61 = scmp.ne.s32.totalorder %s46, %s60
    %p62 = scmp.eq.s32.totalorder %s15, 0
    %p63 = por %p61, %p62
    %s65 = sadd.s32 %s64, 1
    %p68 = scmp.eq.s32.totalorder %s9, 1
    %p69 = scmp.ne.s32.totalorder %s64, %s66
    %p70 = scmp.eq.s32.totalorder %s9, 0
    %p71 = por %p69, %p70
    %p72 = scmp.ne.s32.totalorder %s64, %s66
    %p73 = scmp.eq.s32.totalorder %s14, 1
    %p74 = por %p72, %p73
    %p75 = scmp.ne.s32.totalorder %s66, %s67
    %p76 = scmp.eq.s32.totalorder %s14, 0
    %p77 = por %p75, %p76
    %p78 = scmp.ne.s32.totalorder %s66, %s67
    %p79 = scmp.eq.s32.totalorder %s15, 1
    %p80 = por %p78, %p79
    %p82 = scmp.ne.s32.totalorder %s67, %s81
    %p83 = scmp.eq.s32.totalorder %s15, 0
    %p84 = por %p82, %p83
    %s85 = ssub.s32 %s9, %s16
    %p86 = scmp.eq.s32.totalorder %s85, 0
    %s88 = sadd.s32 %s87, 1
    %s89 = scalar_select %p86, %s87, %s88
    %p92 = pneg %p86
    %p93 = scmp.eq.s32.totalorder %s9, 1
    %p94 = por %p92, %p93
    %p95 = scmp.ne.s32.totalorder %s87, %s90
    %p96 = scmp.eq.s32.totalorder %s9, 0
    %p97 = por %p95, %p96
    %p98 = scmp.ne.s32.totalorder %s87, %s90
    %p99 = scmp.eq.s32.totalorder %s14, 1
    %p100 = por %p98, %p99
    %p101 = scmp.ne.s32.totalorder %s90, %s91
    %p102 = scmp.eq.s32.totalorder %s14, 0
    %p103 = por %p101, %p102
    %p104 = scmp.ne.s32.totalorder %s90, %s91
    %p105 = scmp.eq.s32.totalorder %s15, 1
    %p106 = por %p104, %p105
    %p108 = scmp.ne.s32.totalorder %s91, %s107
    %p109 = scmp.eq.s32.totalorder %s15, 0
    %p110 = por %p108, %p109
    %p111 = scmp.le.s32.totalorder 1, %s9
    %p112 = scmp.lt.s32.totalorder %s9, 3
    %p113 = pnand %p111, %p112
    %p114 = pneg %p113
    // Predicated region
    $region9: #{discriminator_forward.10} parent=5 // pred_check
      _
    $region10: #{discriminator_forward.10} parent=5 // pred_check_branch
      %116 = sbr.rel (%p113) target = $region12
    $region11: #{discriminator_forward.10} parent=5 // pred_region
      %s117 = ssub.s32 %s9, 1
      // Predicated region
      $region13: #{discriminator_forward.10} parent=11 // pred_check
        %p118 = pneg %p56
      $region14: #{discriminator_forward.10} parent=11 // pred_check_branch
        %120 = sbr.rel (%p118) target = $region16
      $region15: #{discriminator_forward.10} parent=11 // pred_region
        _
      $region16: #{discriminator_forward.10} parent=11 // pred_fallthru
        _
      // Predicated region
      $region17: #{discriminator_forward.10} parent=11 // pred_check
        %p121 = pneg %p77
      $region18: #{discriminator_forward.10} parent=11 // pred_check_branch
        %123 = sbr.rel (%p121) target = $region20
      $region19: #{discriminator_forward.10} parent=11 // pred_region
        _
      $region20: #{discriminator_forward.10} parent=11 // pred_fallthru
        _
    $region12: #{discriminator_forward.10} parent=5 // pred_fallthru
      _
    %p124 = scmp.lt.s32.totalorder %s9, 2
    // Predicated region
    $region21: #{discriminator_forward.10} parent=5 // pred_check
      %p125 = pneg %p124
    $region22: #{discriminator_forward.10} parent=5 // pred_check_branch
      %127 = sbr.rel (%p125) target = $region24
    $region23: #{discriminator_forward.10} parent=5 // pred_region
      // Predicated region
      $region25: #{discriminator_forward.10} parent=23 // pred_check
        %p128 = pneg %p29
      $region26: #{discriminator_forward.10} parent=23 // pred_check_branch
        %130 = sbr.rel (%p128) target = $region28
      $region27: #{discriminator_forward.10} parent=23 // pred_region
        %s131 = smul.u32 32, %s9
        %p132 = scmp.lt.s32.totalorder %s131, 63
        %s133 = scalar_select %p132, %s131, 63
        %s134 = smul.addr %s133, 8
        %s135 = scalar_lea.vmem %s0, %s134
        %s136 = smul.u32 32, %s9
      $region28: #{discriminator_forward.10} parent=23 // pred_fallthru
        _
    $region24: #{discriminator_forward.10} parent=5 // pred_fallthru
      _
    %p137 = scmp.le.s32.totalorder 1, %s9
    %p138 = scmp.lt.s32.totalorder %s9, 3
    %p139 = pnand %p137, %p138
    %p140 = pneg %p139
    // Predicated region
    $region29: #{discriminator_forward.10} parent=5 // pred_check
      _
    $region30: #{discriminator_forward.10} parent=5 // pred_check_branch
      %142 = sbr.rel (%p139) target = $region32
    $region31: #{discriminator_forward.10} parent=5 // pred_region
      %s143 = ssub.s32 %s9, 1
      %s144 = smul.u32 32, %s14
      %p145 = scmp.lt.s32.totalorder %s144, 63
      %s146 = scalar_select %p145, %s144, 63
      %s147 = smul.addr %s146, 8
      %s148 = scalar_lea.vmem %s0, %s147
      %p149 = pneg %p35
      %p150 = pneg %p32
      %p151 = pneg %p56
      %p152 = pneg %p53
      %p153 = pneg %p77
      %p154 = pneg %p74
      %p155 = pneg %p103
      %p156 = pneg %p100
      %s157 = smul.u32 32, %s14
      %p158 = scmp.lt.s32.totalorder %s157, 63
      %s159 = scalar_select %p158, %s157, 63
      %s160 = smul.addr %s159, 4
      %s161 = scalar_lea.vmem %s3, %s160
      %s162 = smul.u32 32, %s14
      %p163 = scmp.lt.s32.totalorder %s162, 63
      %s164 = scalar_select %p163, %s162, 63
      %s165 = smul.addr %s164, 8
      %s166 = scalar_lea.vmem %s0, %s165
      %s167 = smul.u32 32, %s14
      %s168 = smul.u32 32, %s14
      %p169 = scmp.lt.s32.totalorder %s168, 63
      %s170 = scalar_select %p169, %s168, 63
      %s171 = smul.addr %s170, 4
      %s172 = scalar_lea.vmem %s3, %s171
      %s173 = smul.u32 32, %s14
      %v174 = vld [vmem:[%s166] sm:$0xff]
      %v175 = vld [vmem:[%s166 + $0x8] sm:$0xff]
      %v176 = vld [vmem:[%s166 + $0x10] sm:$0xff]
      %v177 = vld [vmem:[%s166 + $0x18] sm:$0xff]
      %v178 = vld [vmem:[%s166 + $0x20] sm:$0xff]
      %v179 = vld [vmem:[%s166 + $0x28] sm:$0xff]
      %v180 = vld [vmem:[%s166 + $0x30] sm:$0xff]
      %v181 = vld [vmem:[%s166 + $0x38] sm:$0xff]
      %v182 = vld [vmem:[%s166 + $0x40] sm:$0xff]
      %v183 = vld [vmem:[%s166 + $0x48] sm:$0xff]
      %v184 = vld [vmem:[%s166 + $0x50] sm:$0xff]
      %v185 = vld [vmem:[%s166 + $0x58] sm:$0xff]
      %v186 = vld [vmem:[%s166 + $0x60] sm:$0xff]
      %v187 = vld [vmem:[%s166 + $0x68] sm:$0xff]
      %v188 = vld [vmem:[%s166 + $0x70] sm:$0xff]
      %v189 = vld [vmem:[%s166 + $0x78] sm:$0xff]
      %v190 = vld [vmem:[%s166 + $0x80] sm:$0xff]
      %v191 = vld [vmem:[%s166 + $0x88] sm:$0xff]
      %v192 = vld [vmem:[%s166 + $0x90] sm:$0xff]
      %v193 = vld [vmem:[%s166 + $0x98] sm:$0xff]
      %v194 = vld [vmem:[%s166 + $0xa0] sm:$0xff]
      %v195 = vld [vmem:[%s166 + $0xa8] sm:$0xff]
      %v196 = vld [vmem:[%s166 + $0xb0] sm:$0xff]
      %v197 = vld [vmem:[%s166 + $0xb8] sm:$0xff]
      %v198 = vld [vmem:[%s166 + $0xc0] sm:$0xff]
      %v199 = vld [vmem:[%s166 + $0xc8] sm:$0xff]
      %v200 = vld [vmem:[%s166 + $0xd0] sm:$0xff]
      %v201 = vld [vmem:[%s166 + $0xd8] sm:$0xff]
      %v202 = vld [vmem:[%s166 + $0xe0] sm:$0xff]
      %v203 = vld [vmem:[%s166 + $0xe8] sm:$0xff]
      %v204 = vld [vmem:[%s166 + $0xf0] sm:$0xff]
      %v205 = vld [vmem:[%s166 + $0xf8] sm:$0xff]
      %v206 = vld [vmem:[%s1] sm:$0x1]
      %v208 = vlaneseq
      %v209 = vshrl.u32 %v208, 7
      %v210 = vsub.s32 0, %v209
      %v211 = vrot.slane %v206, %v210
      %v213 = vmul.f32 %v174, %v211
      %v214 = vmul.f32 %v175, %v211
      %v215 = vmul.f32 %v176, %v211
      %v216 = vmul.f32 %v177, %v211
      %v217 = vmul.f32 %v178, %v211
      %v218 = vmul.f32 %v179, %v211
      %v219 = vmul.f32 %v180, %v211
      %v220 = vmul.f32 %v181, %v211
      %v221 = vmul.f32 %v182, %v211
      %v222 = vmul.f32 %v183, %v211
      %v223 = vmul.f32 %v184, %v211
      %v224 = vmul.f32 %v185, %v211
      %v225 = vmul.f32 %v186, %v211
      %v226 = vmul.f32 %v187, %v211
      %v227 = vmul.f32 %v188, %v211
      %v228 = vmul.f32 %v189, %v211
      %v229 = vmul.f32 %v190, %v211
      %v230 = vmul.f32 %v191, %v211
      %v231 = vmul.f32 %v192, %v211
      %v232 = vmul.f32 %v193, %v211
      %v233 = vmul.f32 %v194, %v211
      %v234 = vmul.f32 %v195, %v211
      %v235 = vmul.f32 %v196, %v211
      %v236 = vmul.f32 %v197, %v211
      %v237 = vmul.f32 %v198, %v211
      %v238 = vmul.f32 %v199, %v211
      %v239 = vmul.f32 %v200, %v211
      %v240 = vmul.f32 %v201, %v211
      %v241 = vmul.f32 %v202, %v211
      %v242 = vmul.f32 %v203, %v211
      %v243 = vmul.f32 %v204, %v211
      %v244 = vmul.f32 %v205, %v211
      %v245 = vld [vmem:[%s2] sm:$0x1]
      %v247 = vlaneseq
      %v248 = vshrl.u32 %v247, 7
      %v249 = vsub.s32 0, %v248
      %v250 = vrot.slane %v245, %v249
      %v252 = vadd.f32 %v213, %v250
      %v253 = vadd.f32 %v214, %v250
      %v254 = vadd.f32 %v215, %v250
      %v255 = vadd.f32 %v216, %v250
      %v256 = vadd.f32 %v217, %v250
      %v257 = vadd.f32 %v218, %v250
      %v258 = vadd.f32 %v219, %v250
      %v259 = vadd.f32 %v220, %v250
      %v260 = vadd.f32 %v221, %v250
      %v261 = vadd.f32 %v222, %v250
      %v262 = vadd.f32 %v223, %v250
      %v263 = vadd.f32 %v224, %v250
      %v264 = vadd.f32 %v225, %v250
      %v265 = vadd.f32 %v226, %v250
      %v266 = vadd.f32 %v227, %v250
      %v267 = vadd.f32 %v228, %v250
      %v268 = vadd.f32 %v229, %v250
      %v269 = vadd.f32 %v230, %v250
      %v270 = vadd.f32 %v231, %v250
      %v271 = vadd.f32 %v232, %v250
      %v272 = vadd.f32 %v233, %v250
      %v273 = vadd.f32 %v234, %v250
      %v274 = vadd.f32 %v235, %v250
      %v275 = vadd.f32 %v236, %v250
      %v276 = vadd.f32 %v237, %v250
      %v277 = vadd.f32 %v238, %v250
      %v278 = vadd.f32 %v239, %v250
      %v279 = vadd.f32 %v240, %v250
      %v280 = vadd.f32 %v241, %v250
      %v281 = vadd.f32 %v242, %v250
      %v282 = vadd.f32 %v243, %v250
      %v283 = vadd.f32 %v244, %v250
      %vm284 = vcmp.gt.f32.partialorder %v252, 0.0
      %vm285 = vcmp.gt.f32.partialorder %v253, 0.0
      %vm286 = vcmp.gt.f32.partialorder %v254, 0.0
      %vm287 = vcmp.gt.f32.partialorder %v255, 0.0
      %vm288 = vcmp.gt.f32.partialorder %v256, 0.0
      %vm289 = vcmp.gt.f32.partialorder %v257, 0.0
      %vm290 = vcmp.gt.f32.partialorder %v258, 0.0
      %vm291 = vcmp.gt.f32.partialorder %v259, 0.0
      %vm292 = vcmp.gt.f32.partialorder %v260, 0.0
      %vm293 = vcmp.gt.f32.partialorder %v261, 0.0
      %vm294 = vcmp.gt.f32.partialorder %v262, 0.0
      %vm295 = vcmp.gt.f32.partialorder %v263, 0.0
      %vm296 = vcmp.gt.f32.partialorder %v264, 0.0
      %vm297 = vcmp.gt.f32.partialorder %v265, 0.0
      %vm298 = vcmp.gt.f32.partialorder %v266, 0.0
      %vm299 = vcmp.gt.f32.partialorder %v267, 0.0
      %vm300 = vcmp.gt.f32.partialorder %v268, 0.0
      %vm301 = vcmp.gt.f32.partialorder %v269, 0.0
      %vm302 = vcmp.gt.f32.partialorder %v270, 0.0
      %vm303 = vcmp.gt.f32.partialorder %v271, 0.0
      %vm304 = vcmp.gt.f32.partialorder %v272, 0.0
      %vm305 = vcmp.gt.f32.partialorder %v273, 0.0
      %vm306 = vcmp.gt.f32.partialorder %v274, 0.0
      %vm307 = vcmp.gt.f32.partialorder %v275, 0.0
      %vm308 = vcmp.gt.f32.partialorder %v276, 0.0
      %vm309 = vcmp.gt.f32.partialorder %v277, 0.0
      %vm310 = vcmp.gt.f32.partialorder %v278, 0.0
      %vm311 = vcmp.gt.f32.partialorder %v279, 0.0
      %vm312 = vcmp.gt.f32.partialorder %v280, 0.0
      %vm313 = vcmp.gt.f32.partialorder %v281, 0.0
      %vm314 = vcmp.gt.f32.partialorder %v282, 0.0
      %vm315 = vcmp.gt.f32.partialorder %v283, 0.0
      %v316 = vmul.f32 %v252, 0.2
      %v317 = vmul.f32 %v253, 0.2
      %v318 = vmul.f32 %v254, 0.2
      %v319 = vmul.f32 %v255, 0.2
      %v320 = vmul.f32 %v256, 0.2
      %v321 = vmul.f32 %v257, 0.2
      %v322 = vmul.f32 %v258, 0.2
      %v323 = vmul.f32 %v259, 0.2
      %v324 = vmul.f32 %v260, 0.2
      %v325 = vmul.f32 %v261, 0.2
      %v326 = vmul.f32 %v262, 0.2
      %v327 = vmul.f32 %v263, 0.2
      %v328 = vmul.f32 %v264, 0.2
      %v329 = vmul.f32 %v265, 0.2
      %v330 = vmul.f32 %v266, 0.2
      %v331 = vmul.f32 %v267, 0.2
      %v332 = vmul.f32 %v268, 0.2
      %v333 = vmul.f32 %v269, 0.2
      %v334 = vmul.f32 %v270, 0.2
      %v335 = vmul.f32 %v271, 0.2
      %v336 = vmul.f32 %v272, 0.2
      %v337 = vmul.f32 %v273, 0.2
      %v338 = vmul.f32 %v274, 0.2
      %v339 = vmul.f32 %v275, 0.2
      %v340 = vmul.f32 %v276, 0.2
      %v341 = vmul.f32 %v277, 0.2
      %v342 = vmul.f32 %v278, 0.2
      %v343 = vmul.f32 %v279, 0.2
      %v344 = vmul.f32 %v280, 0.2
      %v345 = vmul.f32 %v281, 0.2
      %v346 = vmul.f32 %v282, 0.2
      %v347 = vmul.f32 %v283, 0.2
      %v348 = vsel %vm284, %v252, %v316
      %v349 = vsel %vm285, %v253, %v317
      %v350 = vsel %vm286, %v254, %v318
      %v351 = vsel %vm287, %v255, %v319
      %v352 = vsel %vm288, %v256, %v320
      %v353 = vsel %vm289, %v257, %v321
      %v354 = vsel %vm290, %v258, %v322
      %v355 = vsel %vm291, %v259, %v323
      %v356 = vsel %vm292, %v260, %v324
      %v357 = vsel %vm293, %v261, %v325
      %v358 = vsel %vm294, %v262, %v326
      %v359 = vsel %vm295, %v263, %v327
      %v360 = vsel %vm296, %v264, %v328
      %v361 = vsel %vm297, %v265, %v329
      %v362 = vsel %vm298, %v266, %v330
      %v363 = vsel %vm299, %v267, %v331
      %v364 = vsel %vm300, %v268, %v332
      %v365 = vsel %vm301, %v269, %v333
      %v366 = vsel %vm302, %v270, %v334
      %v367 = vsel %vm303, %v271, %v335
      %v368 = vsel %vm304, %v272, %v336
      %v369 = vsel %vm305, %v273, %v337
      %v370 = vsel %vm306, %v274, %v338
      %v371 = vsel %vm307, %v275, %v339
      %v372 = vsel %vm308, %v276, %v340
      %v373 = vsel %vm309, %v277, %v341
      %v374 = vsel %vm310, %v278, %v342
      %v375 = vsel %vm311, %v279, %v343
      %v376 = vsel %vm312, %v280, %v344
      %v377 = vsel %vm313, %v281, %v345
      %v378 = vsel %vm314, %v282, %v346
      %v379 = vsel %vm315, %v283, %v347
      %v380 = vpack.c.bf16 %v349, %v348
      %v381 = vpack.c.bf16 %v351, %v350
      %v382 = vpack.c.bf16 %v353, %v352
      %v383 = vpack.c.bf16 %v355, %v354
      %v384 = vpack.c.bf16 %v357, %v356
      %v385 = vpack.c.bf16 %v359, %v358
      %v386 = vpack.c.bf16 %v361, %v360
      %v387 = vpack.c.bf16 %v363, %v362
      %v388 = vpack.c.bf16 %v365, %v364
      %v389 = vpack.c.bf16 %v367, %v366
      %v390 = vpack.c.bf16 %v369, %v368
      %v391 = vpack.c.bf16 %v371, %v370
      %v392 = vpack.c.bf16 %v373, %v372
      %v393 = vpack.c.bf16 %v375, %v374
      %v394 = vpack.c.bf16 %v377, %v376
      %v395 = vpack.c.bf16 %v379, %v378
      %v412 = vunpack.c.l.b16 %v380
      %v413 = vunpack.c.h.b16 %v380
      %v414 = vunpack.c.l.b16 %v381
      %v415 = vunpack.c.h.b16 %v381
      %v416 = vunpack.c.l.b16 %v382
      %v417 = vunpack.c.h.b16 %v382
      %v418 = vunpack.c.l.b16 %v383
      %v419 = vunpack.c.h.b16 %v383
      %v420 = vunpack.c.l.b16 %v384
      %v421 = vunpack.c.h.b16 %v384
      %v422 = vunpack.c.l.b16 %v385
      %v423 = vunpack.c.h.b16 %v385
      %v424 = vunpack.c.l.b16 %v386
      %v425 = vunpack.c.h.b16 %v386
      %v426 = vunpack.c.l.b16 %v387
      %v427 = vunpack.c.h.b16 %v387
      %v428 = vunpack.c.l.b16 %v388
      %v429 = vunpack.c.h.b16 %v388
      %v430 = vunpack.c.l.b16 %v389
      %v431 = vunpack.c.h.b16 %v389
      %v432 = vunpack.c.l.b16 %v390
      %v433 = vunpack.c.h.b16 %v390
      %v434 = vunpack.c.l.b16 %v391
      %v435 = vunpack.c.h.b16 %v391
      %v436 = vunpack.c.l.b16 %v392
      %v437 = vunpack.c.h.b16 %v392
      %v438 = vunpack.c.l.b16 %v393
      %v439 = vunpack.c.h.b16 %v393
      %v440 = vunpack.c.l.b16 %v394
      %v441 = vunpack.c.h.b16 %v394
      %v442 = vunpack.c.l.b16 %v395
      %v443 = vunpack.c.h.b16 %v395
      %v444 = vpack.c.b16 %v412, %v412
      %v445 = vpack.c.b16 %v413, %v413
      %v446 = vpack.c.b16 %v414, %v414
      %v447 = vpack.c.b16 %v415, %v415
      %v448 = vpack.c.b16 %v416, %v416
      %v449 = vpack.c.b16 %v417, %v417
      %v450 = vpack.c.b16 %v418, %v418
      %v451 = vpack.c.b16 %v419, %v419
      %v452 = vpack.c.b16 %v420, %v420
      %v453 = vpack.c.b16 %v421, %v421
      %v454 = vpack.c.b16 %v422, %v422
      %v455 = vpack.c.b16 %v423, %v423
      %v456 = vpack.c.b16 %v424, %v424
      %v457 = vpack.c.b16 %v425, %v425
      %v458 = vpack.c.b16 %v426, %v426
      %v459 = vpack.c.b16 %v427, %v427
      %v460 = vpack.c.b16 %v428, %v428
      %v461 = vpack.c.b16 %v429, %v429
      %v462 = vpack.c.b16 %v430, %v430
      %v463 = vpack.c.b16 %v431, %v431
      %v464 = vpack.c.b16 %v432, %v432
      %v465 = vpack.c.b16 %v433, %v433
      %v466 = vpack.c.b16 %v434, %v434
      %v467 = vpack.c.b16 %v435, %v435
      %v468 = vpack.c.b16 %v436, %v436
      %v469 = vpack.c.b16 %v437, %v437
      %v470 = vpack.c.b16 %v438, %v438
      %v471 = vpack.c.b16 %v439, %v439
      %v472 = vpack.c.b16 %v440, %v440
      %v473 = vpack.c.b16 %v441, %v441
      %v474 = vpack.c.b16 %v442, %v442
      %v475 = vpack.c.b16 %v443, %v443
      %vm508 = vcmask 125952
      %509 = vst.msk [vmem:[%s172] sm:$0xf] %vm508, %v444
      %510 = vst.msk [vmem:[%s172 + $0x4] sm:$0xf] %vm508, %v445
      %511 = vst.msk [vmem:[%s172 + $0x8] sm:$0xf] %vm508, %v446
      %512 = vst.msk [vmem:[%s172 + $0xc] sm:$0xf] %vm508, %v447
      %513 = vst.msk [vmem:[%s172 + $0x10] sm:$0xf] %vm508, %v448
      %514 = vst.msk [vmem:[%s172 + $0x14] sm:$0xf] %vm508, %v449
      %515 = vst.msk [vmem:[%s172 + $0x18] sm:$0xf] %vm508, %v450
      %516 = vst.msk [vmem:[%s172 + $0x1c] sm:$0xf] %vm508, %v451
      %517 = vst.msk [vmem:[%s172 + $0x20] sm:$0xf] %vm508, %v452
      %518 = vst.msk [vmem:[%s172 + $0x24] sm:$0xf] %vm508, %v453
      %519 = vst.msk [vmem:[%s172 + $0x28] sm:$0xf] %vm508, %v454
      %520 = vst.msk [vmem:[%s172 + $0x2c] sm:$0xf] %vm508, %v455
      %521 = vst.msk [vmem:[%s172 + $0x30] sm:$0xf] %vm508, %v456
      %522 = vst.msk [vmem:[%s172 + $0x34] sm:$0xf] %vm508, %v457
      %523 = vst.msk [vmem:[%s172 + $0x38] sm:$0xf] %vm508, %v458
      %524 = vst.msk [vmem:[%s172 + $0x3c] sm:$0xf] %vm508, %v459
      %525 = vst.msk [vmem:[%s172 + $0x40] sm:$0xf] %vm508, %v460
      %526 = vst.msk [vmem:[%s172 + $0x44] sm:$0xf] %vm508, %v461
      %527 = vst.msk [vmem:[%s172 + $0x48] sm:$0xf] %vm508, %v462
      %528 = vst.msk [vmem:[%s172 + $0x4c] sm:$0xf] %vm508, %v463
      %529 = vst.msk [vmem:[%s172 + $0x50] sm:$0xf] %vm508, %v464
      %530 = vst.msk [vmem:[%s172 + $0x54] sm:$0xf] %vm508, %v465
      %531 = vst.msk [vmem:[%s172 + $0x58] sm:$0xf] %vm508, %v466
      %532 = vst.msk [vmem:[%s172 + $0x5c] sm:$0xf] %vm508, %v467
      %533 = vst.msk [vmem:[%s172 + $0x60] sm:$0xf] %vm508, %v468
      %534 = vst.msk [vmem:[%s172 + $0x64] sm:$0xf] %vm508, %v469
      %535 = vst.msk [vmem:[%s172 + $0x68] sm:$0xf] %vm508, %v470
      %536 = vst.msk [vmem:[%s172 + $0x6c] sm:$0xf] %vm508, %v471
      %537 = vst.msk [vmem:[%s172 + $0x70] sm:$0xf] %vm508, %v472
      %538 = vst.msk [vmem:[%s172 + $0x74] sm:$0xf] %vm508, %v473
      %539 = vst.msk [vmem:[%s172 + $0x78] sm:$0xf] %vm508, %v474
      %540 = vst.msk [vmem:[%s172 + $0x7c] sm:$0xf] %vm508, %v475
      %s541 = smul.u32 32, %s14
      %p542 = scmp.lt.s32.totalorder %s541, 63
      %s543 = scalar_select %p542, %s541, 63
      %s544 = smul.addr %s543, 4
      %s545 = scalar_lea.vmem %s3, %s544
      // Predicated region
      $region33: #{discriminator_forward.10} parent=31 // pred_check
        %p546 = pneg %p100
      $region34: #{discriminator_forward.10} parent=31 // pred_check_branch
        %548 = sbr.rel (%p546) target = $region36
      $region35: #{discriminator_forward.10} parent=31 // pred_region
        %s549 = smul.u32 32, %s14
      $region36: #{discriminator_forward.10} parent=31 // pred_fallthru
        _
    $region32: #{discriminator_forward.10} parent=5 // pred_fallthru
      _
    %p550 = scmp.le.s32.totalorder 2, %s9
    // Predicated region
    $region37: #{discriminator_forward.10} parent=5 // pred_check
      %p551 = pneg %p550
    $region38: #{discriminator_forward.10} parent=5 // pred_check_branch
      %553 = sbr.rel (%p551) target = $region40
    $region39: #{discriminator_forward.10} parent=5 // pred_region
      %s554 = ssub.s32 %s9, 2
      // Predicated region
      $region41: #{discriminator_forward.10} parent=39 // pred_check
        %p555 = pneg %p106
      $region42: #{discriminator_forward.10} parent=39 // pred_check_branch
        %557 = sbr.rel (%p555) target = $region44
      $region43: #{discriminator_forward.10} parent=39 // pred_region
        %s558 = smul.u32 32, %s15
        %p559 = scmp.lt.s32.totalorder %s558, 63
        %s560 = scalar_select %p559, %s558, 63
        %s561 = smul.addr %s560, 4
        %s562 = scalar_lea.vmem %s3, %s561
      $region44: #{discriminator_forward.10} parent=39 // pred_fallthru
        _
    $region40: #{discriminator_forward.10} parent=5 // pred_fallthru
      _
  $region6: #{discriminator_forward.10} parent=0 // loop_footer
    %s13 = sadd.s32 1, %s9
  $region7: #{discriminator_forward.10} parent=0 // loop_footer_branch
    %8 = sbr.rel target = $region3
  $region8: #{discriminator_forward.10} parent=0 // loop_exit
    _

// kernel: discriminator_forward.11
$region0: #{discriminator_forward.11}
  #allocation0 [shape = 'u32[]', space=smem, size = 0x4, offset = 0x4, fixed_abs, tag = 'smem constant byte address 0x4 - core index']
  #allocation1 [shape = 'u32[144,128]{1,0:T(1,128)}', space=vmem, size = 0x12000, scoped, tag = 'internal scratch']
  %s0 = inlined_call_operand.vmem [shape: bf16[128,256], index: 0, kind: input, shape index: {}]
  %s1 = inlined_call_operand.vmem [shape: bf16[256,32], index: 1, kind: input, shape index: {}]
  %s2 = inlined_call_operand.vmem [shape: f32[128,32], index: 2, kind: output, shape index: {0}]
  %s3 = inlined_call_operand.vmem [shape: f32[2,32], index: 3, kind: output, shape index: {1}]
  %4 = xla_tuple %s2, %s3
  %s5 = sld [smem:[#allocation0]]
  $region34: #{discriminator_forward.11} parent=0
    _
  %s7 = ssub.s32 1, %s5
  %s8 = scalar_select 0, %s7, %s5
  // Predicated region
  $region2: #{discriminator_forward.11} parent=0 // pred_check
    _
  $region3: #{discriminator_forward.11} parent=0 // pred_check_branch
    %10 = sbr.rel (0) target = $region5
  $region4: #{discriminator_forward.11} parent=0 // pred_region
    _
  $region5: #{discriminator_forward.11} parent=0 // pred_fallthru
    _
  // Predicated region
  $region6: #{discriminator_forward.11} parent=0 // pred_check
    _
  $region7: #{discriminator_forward.11} parent=0 // pred_check_branch
    %12 = sbr.rel (0) target = $region9
  $region8: #{discriminator_forward.11} parent=0 // pred_region
    _
  $region9: #{discriminator_forward.11} parent=0 // pred_fallthru
    _
  %v14 = vld [vmem:[%s0] sm:$0xff]
  %v15 = vld [vmem:[%s0 + $0x8] sm:$0xff]
  %v16 = vld [vmem:[%s0 + $0x10] sm:$0xff]
  %v17 = vld [vmem:[%s0 + $0x18] sm:$0xff]
  %v18 = vld [vmem:[%s0 + $0x20] sm:$0xff]
  %v19 = vld [vmem:[%s0 + $0x28] sm:$0xff]
  %v20 = vld [vmem:[%s0 + $0x30] sm:$0xff]
  %v21 = vld [vmem:[%s0 + $0x38] sm:$0xff]
  %v22 = vld [vmem:[%s0 + $0x40] sm:$0xff]
  %v23 = vld [vmem:[%s0 + $0x48] sm:$0xff]
  %v24 = vld [vmem:[%s0 + $0x50] sm:$0xff]
  %v25 = vld [vmem:[%s0 + $0x58] sm:$0xff]
  %v26 = vld [vmem:[%s0 + $0x60] sm:$0xff]
  %v27 = vld [vmem:[%s0 + $0x68] sm:$0xff]
  %v28 = vld [vmem:[%s0 + $0x70] sm:$0xff]
  %v29 = vld [vmem:[%s0 + $0x78] sm:$0xff]
  %v30 = vld [vmem:[%s1] sm:$0xf]
  %v31 = vld [vmem:[%s1 + $0x4] sm:$0xf]
  %v32 = vld [vmem:[%s1 + $0x8] sm:$0xf]
  %v33 = vld [vmem:[%s1 + $0xc] sm:$0xf]
  %v34 = vld [vmem:[%s1 + $0x10] sm:$0xf]
  %v35 = vld [vmem:[%s1 + $0x14] sm:$0xf]
  %v36 = vld [vmem:[%s1 + $0x18] sm:$0xf]
  %v37 = vld [vmem:[%s1 + $0x1c] sm:$0xf]
  %v38 = vld [vmem:[%s1 + $0x20] sm:$0xf]
  %v39 = vld [vmem:[%s1 + $0x24] sm:$0xf]
  %v40 = vld [vmem:[%s1 + $0x28] sm:$0xf]
  %v41 = vld [vmem:[%s1 + $0x2c] sm:$0xf]
  %v42 = vld [vmem:[%s1 + $0x30] sm:$0xf]
  %v43 = vld [vmem:[%s1 + $0x34] sm:$0xf]
  %v44 = vld [vmem:[%s1 + $0x38] sm:$0xf]
  %v45 = vld [vmem:[%s1 + $0x3c] sm:$0xf]
  %v46 = vld [vmem:[%s1 + $0x40] sm:$0xf]
  %v47 = vld [vmem:[%s1 + $0x44] sm:$0xf]
  %v48 = vld [vmem:[%s1 + $0x48] sm:$0xf]
  %v49 = vld [vmem:[%s1 + $0x4c] sm:$0xf]
  %v50 = vld [vmem:[%s1 + $0x50] sm:$0xf]
  %v51 = vld [vmem:[%s1 + $0x54] sm:$0xf]
  %v52 = vld [vmem:[%s1 + $0x58] sm:$0xf]
  %v53 = vld [vmem:[%s1 + $0x5c] sm:$0xf]
  %v54 = vld [vmem:[%s1 + $0x60] sm:$0xf]
  %v55 = vld [vmem:[%s1 + $0x64] sm:$0xf]
  %v56 = vld [vmem:[%s1 + $0x68] sm:$0xf]
  %v57 = vld [vmem:[%s1 + $0x6c] sm:$0xf]
  %v58 = vld [vmem:[%s1 + $0x70] sm:$0xf]
  %v59 = vld [vmem:[%s1 + $0x74] sm:$0xf]
  %v60 = vld [vmem:[%s1 + $0x78] sm:$0xf]
  %v61 = vld [vmem:[%s1 + $0x7c] sm:$0xf]
  %v78 = vunpack.c.l.b16 %v14
  %v79 = vunpack.c.h.b16 %v14
  %v80 = vunpack.c.l.b16 %v15
  %v81 = vunpack.c.h.b16 %v15
  %v82 = vunpack.c.l.b16 %v16
  %v83 = vunpack.c.h.b16 %v16
  %v84 = vunpack.c.l.b16 %v17
  %v85 = vunpack.c.h.b16 %v17
  %v86 = vunpack.c.l.b16 %v18
  %v87 = vunpack.c.h.b16 %v18
  %v88 = vunpack.c.l.b16 %v19
  %v89 = vunpack.c.h.b16 %v19
  %v90 = vunpack.c.l.b16 %v20
  %v91 = vunpack.c.h.b16 %v20
  %v92 = vunpack.c.l.b16 %v21
  %v93 = vunpack.c.h.b16 %v21
  %v94 = vunpack.c.l.b16 %v22
  %v95 = vunpack.c.h.b16 %v22
  %v96 = vunpack.c.l.b16 %v23
  %v97 = vunpack.c.h.b16 %v23
  %v98 = vunpack.c.l.b16 %v24
  %v99 = vunpack.c.h.b16 %v24
  %v100 = vunpack.c.l.b16 %v25
  %v101 = vunpack.c.h.b16 %v25
  %v102 = vunpack.c.l.b16 %v26
  %v103 = vunpack.c.h.b16 %v26
  %v104 = vunpack.c.l.b16 %v27
  %v105 = vunpack.c.h.b16 %v27
  %v106 = vunpack.c.l.b16 %v28
  %v107 = vunpack.c.h.b16 %v28
  %v108 = vunpack.c.l.b16 %v29
  %v109 = vunpack.c.h.b16 %v29
  %v110 = vpack.c.b16 %v80, %v78
  %v111 = vpack.c.b16 %v81, %v79
  %v112 = vpack.c.b16 %v84, %v82
  %v113 = vpack.c.b16 %v85, %v83
  %v114 = vpack.c.b16 %v88, %v86
  %v115 = vpack.c.b16 %v89, %v87
  %v116 = vpack.c.b16 %v92, %v90
  %v117 = vpack.c.b16 %v93, %v91
  %v118 = vpack.c.b16 %v96, %v94
  %v119 = vpack.c.b16 %v97, %v95
  %v120 = vpack.c.b16 %v100, %v98
  %v121 = vpack.c.b16 %v101, %v99
  %v122 = vpack.c.b16 %v104, %v102
  %v123 = vpack.c.b16 %v105, %v103
  %v124 = vpack.c.b16 %v108, %v106
  %v125 = vpack.c.b16 %v109, %v107
  %v174 = vunpack.c.l.b16 %v30
  %v175 = vunpack.c.l.b16 %v31
  %v176 = vunpack.c.l.b16 %v32
  %v177 = vunpack.c.l.b16 %v33
  %v178 = vunpack.c.l.b16 %v34
  %v179 = vunpack.c.l.b16 %v35
  %v180 = vunpack.c.l.b16 %v36
  %v181 = vunpack.c.l.b16 %v37
  %v182 = vunpack.c.l.b16 %v38
  %v183 = vunpack.c.l.b16 %v39
  %v184 = vunpack.c.l.b16 %v40
  %v185 = vunpack.c.l.b16 %v41
  %v186 = vunpack.c.l.b16 %v42
  %v187 = vunpack.c.l.b16 %v43
  %v188 = vunpack.c.l.b16 %v44
  %v189 = vunpack.c.l.b16 %v45
  %v190 = vunpack.c.l.b16 %v46
  %v191 = vunpack.c.l.b16 %v47
  %v192 = vunpack.c.l.b16 %v48
  %v193 = vunpack.c.l.b16 %v49
  %v194 = vunpack.c.l.b16 %v50
  %v195 = vunpack.c.l.b16 %v51
  %v196 = vunpack.c.l.b16 %v52
  %v197 = vunpack.c.l.b16 %v53
  %v198 = vunpack.c.l.b16 %v54
  %v199 = vunpack.c.l.b16 %v55
  %v200 = vunpack.c.l.b16 %v56
  %v201 = vunpack.c.l.b16 %v57
  %v202 = vunpack.c.l.b16 %v58
  %v203 = vunpack.c.l.b16 %v59
  %v204 = vunpack.c.l.b16 %v60
  %v205 = vunpack.c.l.b16 %v61
  %v206 = vpack.c.b16 %v175, %v174
  %v207 = vpack.c.b16 %v177, %v176
  %v208 = vpack.c.b16 %v179, %v178
  %v209 = vpack.c.b16 %v181, %v180
  %v210 = vpack.c.b16 %v183, %v182
  %v211 = vpack.c.b16 %v185, %v184
  %v212 = vpack.c.b16 %v187, %v186
  %v213 = vpack.c.b16 %v189, %v188
  %v214 = vpack.c.b16 %v191, %v190
  %v215 = vpack.c.b16 %v193, %v192
  %v216 = vpack.c.b16 %v195, %v194
  %v217 = vpack.c.b16 %v197, %v196
  %v218 = vpack.c.b16 %v199, %v198
  %v219 = vpack.c.b16 %v201, %v200
  %v220 = vpack.c.b16 %v203, %v202
  %v221 = vpack.c.b16 %v205, %v204
  %238 = vmatprep.subr.bf16.mxu0 0
  %239 = vmatpush1.bf16.msra.mxu0 %v213
  %240 = vmatprep.subr.bf16.mxu0 0
  %241 = vmatpush1.bf16.msra.mxu0 %v212
  %242 = vmatprep.subr.bf16.mxu0 0
  %243 = vmatpush1.bf16.msra.mxu0 %v211
  %244 = vmatprep.subr.bf16.mxu0 0
  %245 = vmatpush1.bf16.msra.mxu0 %v210
  %246 = vmatprep.subr.bf16.mxu0 0
  %247 = vmatpush1.bf16.msra.mxu0 %v209
  %248 = vmatprep.subr.bf16.mxu0 0
  %249 = vmatpush1.bf16.msra.mxu0 %v208
  %250 = vmatprep.subr.bf16.mxu0 0
  %251 = vmatpush1.bf16.msra.mxu0 %v207
  %252 = vmatprep.subr.bf16.mxu0 0
  %253 = vmatpush1.bf16.msra.mxu0 %v206
  %254 = vmatprep.subr.bf16.mxu0 0
  %255 = vmatpush2.bf16.msra.mxu0 %v221
  %256 = vmatprep.subr.bf16.mxu0 0
  %257 = vmatpush2.bf16.msra.mxu0 %v220
  %258 = vmatprep.subr.bf16.mxu0 0
  %259 = vmatpush2.bf16.msra.mxu0 %v219
  %260 = vmatprep.subr.bf16.mxu0 0
  %261 = vmatpush2.bf16.msra.mxu0 %v218
  %262 = vmatprep.subr.bf16.mxu0 0
  %263 = vmatpush2.bf16.msra.mxu0 %v217
  %264 = vmatprep.subr.bf16.mxu0 0
  %265 = vmatpush2.bf16.msra.mxu0 %v216
  %266 = vmatprep.subr.bf16.mxu0 0
  %267 = vmatpush2.bf16.msra.mxu0 %v215
  %268 = vmatprep.subr.bf16.mxu0 0
  %269 = vmatpush2.bf16.msra.mxu0 %v214
  %270 = vmatprep.mubr.bf16.mxu0 %v111
  %271 = vmatmul.mubr.bf16.gmra.mxu0 %v110
  %v272 = vpop.f32.mrf.mxu0
  %v273 = vadd.f32 0.0, %v272
  %v274 = vpop.f32.mrf.mxu0
  %v275 = vpop.f32.mrf.mxu0
  %v276 = vadd.f32 0.0, %v275
  %v277 = vpop.f32.mrf.mxu0
  %278 = vmatprep.mubr.bf16.mxu0 %v113
  %279 = vmatmul.mubr.bf16.gmra.mxu0 %v112
  %v280 = vpop.f32.mrf.mxu0
  %v281 = vadd.f32 0.0, %v280
  %v282 = vpop.f32.mrf.mxu0
  %v283 = vpop.f32.mrf.mxu0
  %v284 = vadd.f32 0.0, %v283
  %v285 = vpop.f32.mrf.mxu0
  %286 = vmatprep.mubr.bf16.mxu0 %v115
  %287 = vmatmul.mubr.bf16.gmra.mxu0 %v114
  %v288 = vpop.f32.mrf.mxu0
  %v289 = vadd.f32 0.0, %v288
  %v290 = vpop.f32.mrf.mxu0
  %v291 = vpop.f32.mrf.mxu0
  %v292 = vadd.f32 0.0, %v291
  %v293 = vpop.f32.mrf.mxu0
  %294 = vmatprep.mubr.bf16.mxu0 %v117
  %295 = vmatmul.mubr.bf16.gmra.mxu0 %v116
  %v296 = vpop.f32.mrf.mxu0
  %v297 = vadd.f32 0.0, %v296
  %v298 = vpop.f32.mrf.mxu0
  %v299 = vpop.f32.mrf.mxu0
  %v300 = vadd.f32 0.0, %v299
  %v301 = vpop.f32.mrf.mxu0
  %302 = vmatprep.mubr.bf16.mxu0 %v119
  %303 = vmatmul.mubr.bf16.gmra.mxu0 %v118
  %v304 = vpop.f32.mrf.mxu0
  %v305 = vadd.f32 0.0, %v304
  %v306 = vpop.f32.mrf.mxu0
  %v307 = vpop.f32.mrf.mxu0
  %v308 = vadd.f32 0.0, %v307
  %v309 = vpop.f32.mrf.mxu0
  %310 = vmatprep.mubr.bf16.mxu0 %v121
  %311 = vmatmul.mubr.bf16.gmra.mxu0 %v120
  %v312 = vpop.f32.mrf.mxu0
  %v313 = vadd.f32 0.0, %v312
  %v314 = vpop.f32.mrf.mxu0
  %v315 = vpop.f32.mrf.mxu0
  %v316 = vadd.f32 0.0, %v315
  %v317 = vpop.f32.mrf.mxu0
  %318 = vmatprep.mubr.bf16.mxu0 %v123
  %319 = vmatmul.mubr.bf16.gmra.mxu0 %v122
  %v320 = vpop.f32.mrf.mxu0
  %v321 = vadd.f32 0.0, %v320
  %v322 = vpop.f32.mrf.mxu0
  %v323 = vpop.f32.mrf.mxu0
  %v324 = vadd.f32 0.0, %v323
  %v325 = vpop.f32.mrf.mxu0
  %326 = vmatprep.mubr.bf16.mxu0 %v125
  %327 = vmatmul.mubr.bf16.gmra.mxu0 %v124
  %v328 = vpop.f32.mrf.mxu0
  %v329 = vadd.f32 0.0, %v328
  %v330 = vpop.f32.mrf.mxu0
  %v331 = vpop.f32.mrf.mxu0
  %v332 = vadd.f32 0.0, %v331
  %v333 = vpop.f32.mrf.mxu0
  %334 = vdwg.mxu0
  %vm335 = vcmask 261120
  %336 = vst.msk [vmem:[%s2] sm:$0xff] %vm335, %v273
  %337 = vst.msk [vmem:[%s2 + $0x8] sm:$0xff] %vm335, %v276
  %338 = vst.msk [vmem:[%s2 + $0x10] sm:$0xff] %vm335, %v281
  %339 = vst.msk [vmem:[%s2 + $0x18] sm:$0xff] %vm335, %v284
  %340 = vst.msk [vmem:[%s2 + $0x20] sm:$0xff] %vm335, %v289
  %341 = vst.msk [vmem:[%s2 + $0x28] sm:$0xff] %vm335, %v292
  %342 = vst.msk [vmem:[%s2 + $0x30] sm:$0xff] %vm335, %v297
  %343 = vst.msk [vmem:[%s2 + $0x38] sm:$0xff] %vm335, %v300
  %344 = vst.msk [vmem:[%s2 + $0x40] sm:$0xff] %vm335, %v305
  %345 = vst.msk [vmem:[%s2 + $0x48] sm:$0xff] %vm335, %v308
  %346 = vst.msk [vmem:[%s2 + $0x50] sm:$0xff] %vm335, %v313
  %347 = vst.msk [vmem:[%s2 + $0x58] sm:$0xff] %vm335, %v316
  %348 = vst.msk [vmem:[%s2 + $0x60] sm:$0xff] %vm335, %v321
  %349 = vst.msk [vmem:[%s2 + $0x68] sm:$0xff] %vm335, %v324
  %350 = vst.msk [vmem:[%s2 + $0x70] sm:$0xff] %vm335, %v329
  %351 = vst.msk [vmem:[%s2 + $0x78] sm:$0xff] %vm335, %v332
  %v352 = vsel %vm335, %v273, 0.0
  %v353 = vsel %vm335, %v276, 0.0
  %v354 = vadd.f32 %v352, %v353
  %v355 = vsel %vm335, %v281, 0.0
  %v356 = vadd.f32 %v354, %v355
  %v357 = vsel %vm335, %v284, 0.0
  %v358 = vadd.f32 %v356, %v357
  %v359 = vsel %vm335, %v289, 0.0
  %v360 = vadd.f32 %v358, %v359
  %v361 = vsel %vm335, %v292, 0.0
  %v362 = vadd.f32 %v360, %v361
  %v363 = vsel %vm335, %v297, 0.0
  %v364 = vadd.f32 %v362, %v363
  %v365 = vsel %vm335, %v300, 0.0
  %v366 = vadd.f32 %v364, %v365
  %v367 = vsel %vm335, %v305, 0.0
  %v368 = vadd.f32 %v366, %v367
  %v369 = vsel %vm335, %v308, 0.0
  %v370 = vadd.f32 %v368, %v369
  %v371 = vsel %vm335, %v313, 0.0
  %v372 = vadd.f32 %v370, %v371
  %v373 = vsel %vm335, %v316, 0.0
  %v374 = vadd.f32 %v372, %v373
  %v375 = vsel %vm335, %v321, 0.0
  %v376 = vadd.f32 %v374, %v375
  %v377 = vsel %vm335, %v324, 0.0
  %v378 = vadd.f32 %v376, %v377
  %v379 = vsel %vm335, %v329, 0.0
  %v380 = vadd.f32 %v378, %v379
  %v381 = vsel %vm335, %v332, 0.0
  %v382 = vadd.f32 %v380, %v381
  %v383 = vrot.slane %v382, 4
  %v384 = vadd.f32 %v382, %v383
  %v385 = vrot.slane %v384, 2
  %v386 = vadd.f32 %v384, %v385
  %v387 = vrot.slane %v386, 1
  %v388 = vadd.f32 %v386, %v387
  %v389 = vmul.f32 %v273, %v273
  %v390 = vmul.f32 %v276, %v276
  %v391 = vmul.f32 %v281, %v281
  %v392 = vmul.f32 %v284, %v284
  %v393 = vmul.f32 %v289, %v289
  %v394 = vmul.f32 %v292, %v292
  %v395 = vmul.f32 %v297, %v297
  %v396 = vmul.f32 %v300, %v300
  %v397 = vmul.f32 %v305, %v305
  %v398 = vmul.f32 %v308, %v308
  %v399 = vmul.f32 %v313, %v313
  %v400 = vmul.f32 %v316, %v316
  %v401 = vmul.f32 %v321, %v321
  %v402 = vmul.f32 %v324, %v324
  %v403 = vmul.f32 %v329, %v329
  %v404 = vmul.f32 %v332, %v332
  %v405 = vsel %vm335, %v389, 0.0
  %v406 = vsel %vm335, %v390, 0.0
  %v407 = vadd.f32 %v405, %v406
  %v408 = vsel %vm335, %v391, 0.0
  %v409 = vadd.f32 %v407, %v408
  %v410 = vsel %vm335, %v392, 0.0
  %v411 = vadd.f32 %v409, %v410
  %v412 = vsel %vm335, %v393, 0.0
  %v413 = vadd.f32 %v411, %v412
  %v414 = vsel %vm335, %v394, 0.0
  %v415 = vadd.f32 %v413, %v414
  %v416 = vsel %vm335, %v395, 0.0
  %v417 = vadd.f32 %v415, %v416
  %v418 = vsel %vm335, %v396, 0.0
  %v419 = vadd.f32 %v417, %v418
  %v420 = vsel %vm335, %v397, 0.0
  %v421 = vadd.f32 %v419, %v420
  %v422 = vsel %vm335, %v398, 0.0
  %v423 = vadd.f32 %v421, %v422
  %v424 = vsel %vm335, %v399, 0.0
  %v425 = vadd.f32 %v423, %v424
  %v426 = vsel %vm335, %v400, 0.0
  %v427 = vadd.f32 %v425, %v426
  %v428 = vsel %vm335, %v401, 0.0
  %v429 = vadd.f32 %v427, %v428
  %v430 = vsel %vm335, %v402, 0.0
  %v431 = vadd.f32 %v429, %v430
  %v432 = vsel %vm335, %v403, 0.0
  %v433 = vadd.f32 %v431, %v432
  %v434 = vsel %vm335, %v404, 0.0
  %v435 = vadd.f32 %v433, %v434
  %v436 = vrot.slane %v435, 4
  %v437 = vadd.f32 %v435, %v436
  %v438 = vrot.slane %v437, 2
  %v439 = vadd.f32 %v437, %v438
  %v440 = vrot.slane %v439, 1
  %v441 = vadd.f32 %v439, %v440
  %vm442 = vcmask 1040384
  %v443 = vsel %vm442, %v388, %v441
  %p444 = scmp.eq.s32.totalorder 0, 0
  // Predicated region
  $region10: #{discriminator_forward.11} parent=0 // pred_check
    %p445 = pneg %p444
  $region11: #{discriminator_forward.11} parent=0 // pred_check_branch
    %447 = sbr.rel (%p445) target = $region13
  $region12: #{discriminator_forward.11} parent=0 // pred_region
    %vm448 = vcmask 254976
    %449 = vst.msk [vmem:[%s3] sm:$0x3] %vm448, %v443
  $region13: #{discriminator_forward.11} parent=0 // pred_fallthru
    _
  %p450 = scmp.gt.s32.totalorder 0, 0
  // Predicated region
  $region14: #{discriminator_forward.11} parent=0 // pred_check
    %p451 = pneg %p450
  $region15: #{discriminator_forward.11} parent=0 // pred_check_branch
    %453 = sbr.rel (%p451) target = $region17
  $region16: #{discriminator_forward.11} parent=0 // pred_region
    %v454 = vld [vmem:[%s3] sm:$0x3]
    %v455 = vadd.f32 %v454, %v443
    %vm456 = vcmask 254976
    %457 = vst.msk [vmem:[%s3] sm:$0x3] %vm456, %v455
  $region17: #{discriminator_forward.11} parent=0 // pred_fallthru
    _
  // Predicated region
  $region18: #{discriminator_forward.11} parent=0 // pred_check
    _
  $region19: #{discriminator_forward.11} parent=0 // pred_check_branch
    %459 = sbr.rel (0) target = $region21
  $region20: #{discriminator_forward.11} parent=0 // pred_region
    _
  $region21: #{discriminator_forward.11} parent=0 // pred_fallthru
    _
  // Predicated region
  $region22: #{discriminator_forward.11} parent=0 // pred_check
    _
  $region23: #{discriminator_forward.11} parent=0 // pred_check_branch
    %461 = sbr.rel (0) target = $region25
  $region24: #{discriminator_forward.11} parent=0 // pred_region
    _
  $region25: #{discriminator_forward.11} parent=0 // pred_fallthru
    _
  // Predicated region
  $region26: #{discriminator_forward.11} parent=0 // pred_check
    _
  $region27: #{discriminator_forward.11} parent=0 // pred_check_branch
    %463 = sbr.rel (0) target = $region29
  $region28: #{discriminator_forward.11} parent=0 // pred_region
    _
  $region29: #{discriminator_forward.11} parent=0 // pred_fallthru
    _
  // Predicated region
  $region30: #{discriminator_forward.11} parent=0 // pred_check
    _
  $region31: #{discriminator_forward.11} parent=0 // pred_check_branch
    %465 = sbr.rel (0) target = $region33
  $region32: #{discriminator_forward.11} parent=0 // pred_region
    _
  $region33: #{discriminator_forward.11} parent=0 // pred_fallthru
    _

// kernel: discriminator_forward.12
$region0: #{discriminator_forward.12}
  #allocation0 [shape = 'u32[]', space=smem, size = 0x4, offset = 0x4, fixed_abs, tag = 'smem constant byte address 0x4 - core index']
  #allocation1 [shape = 'u32[144,128]{1,0:T(1,128)}', space=vmem, size = 0x12000, scoped, tag = 'internal scratch']
  %s0 = inlined_call_operand.vmem [shape: f32[128,32], index: 0, kind: input, shape index: {}]
  %s1 = inlined_call_operand.vmem [shape: f32[1,32], index: 1, kind: input, shape index: {}]
  %s2 = inlined_call_operand.vmem [shape: f32[1,32], index: 2, kind: input, shape index: {}]
  %s3 = inlined_call_operand.vmem [shape: bf16[128,32], index: 3, kind: output, shape index: {}]
  %s4 = sld [smem:[#allocation0]]
  $region22: #{discriminator_forward.12} parent=0
    _
  %s6 = ssub.s32 1, %s4
  %s7 = scalar_select 0, %s6, %s4
  // Predicated region
  $region2: #{discriminator_forward.12} parent=0 // pred_check
    _
  $region3: #{discriminator_forward.12} parent=0 // pred_check_branch
    %9 = sbr.rel (0) target = $region5
  $region4: #{discriminator_forward.12} parent=0 // pred_region
    _
  $region5: #{discriminator_forward.12} parent=0 // pred_fallthru
    _
  // Predicated region
  $region6: #{discriminator_forward.12} parent=0 // pred_check
    _
  $region7: #{discriminator_forward.12} parent=0 // pred_check_branch
    %11 = sbr.rel (0) target = $region9
  $region8: #{discriminator_forward.12} parent=0 // pred_region
    _
  $region9: #{discriminator_forward.12} parent=0 // pred_fallthru
    _
  // Predicated region
  $region10: #{discriminator_forward.12} parent=0 // pred_check
    _
  $region11: #{discriminator_forward.12} parent=0 // pred_check_branch
    %13 = sbr.rel (0) target = $region13
  $region12: #{discriminator_forward.12} parent=0 // pred_region
    _
  $region13: #{discriminator_forward.12} parent=0 // pred_fallthru
    _
  %v14 = vld [vmem:[%s0] sm:$0xff]
  %v15 = vld [vmem:[%s0 + $0x8] sm:$0xff]
  %v16 = vld [vmem:[%s0 + $0x10] sm:$0xff]
  %v17 = vld [vmem:[%s0 + $0x18] sm:$0xff]
  %v18 = vld [vmem:[%s0 + $0x20] sm:$0xff]
  %v19 = vld [vmem:[%s0 + $0x28] sm:$0xff]
  %v20 = vld [vmem:[%s0 + $0x30] sm:$0xff]
  %v21 = vld [vmem:[%s0 + $0x38] sm:$0xff]
  %v22 = vld [vmem:[%s0 + $0x40] sm:$0xff]
  %v23 = vld [vmem:[%s0 + $0x48] sm:$0xff]
  %v24 = vld [vmem:[%s0 + $0x50] sm:$0xff]
  %v25 = vld [vmem:[%s0 + $0x58] sm:$0xff]
  %v26 = vld [vmem:[%s0 + $0x60] sm:$0xff]
  %v27 = vld [vmem:[%s0 + $0x68] sm:$0xff]
  %v28 = vld [vmem:[%s0 + $0x70] sm:$0xff]
  %v29 = vld [vmem:[%s0 + $0x78] sm:$0xff]
  %v30 = vld [vmem:[%s1] sm:$0x1]
  %v32 = vlaneseq
  %v33 = vshrl.u32 %v32, 7
  %v34 = vsub.s32 0, %v33
  %v35 = vrot.slane %v30, %v34
  %v37 = vmul.f32 %v14, %v35
  %v38 = vmul.f32 %v15, %v35
  %v39 = vmul.f32 %v16, %v35
  %v40 = vmul.f32 %v17, %v35
  %v41 = vmul.f32 %v18, %v35
  %v42 = vmul.f32 %v19, %v35
  %v43 = vmul.f32 %v20, %v35
  %v44 = vmul.f32 %v21, %v35
  %v45 = vmul.f32 %v22, %v35
  %v46 = vmul.f32 %v23, %v35
  %v47 = vmul.f32 %v24, %v35
  %v48 = vmul.f32 %v25, %v35
  %v49 = vmul.f32 %v26, %v35
  %v50 = vmul.f32 %v27, %v35
  %v51 = vmul.f32 %v28, %v35
  %v52 = vmul.f32 %v29, %v35
  %v53 = vld [vmem:[%s2] sm:$0x1]
  %v55 = vlaneseq
  %v56 = vshrl.u32 %v55, 7
  %v57 = vsub.s32 0, %v56
  %v58 = vrot.slane %v53, %v57
  %v60 = vadd.f32 %v37, %v58
  %v61 = vadd.f32 %v38, %v58
  %v62 = vadd.f32 %v39, %v58
  %v63 = vadd.f32 %v40, %v58
  %v64 = vadd.f32 %v41, %v58
  %v65 = vadd.f32 %v42, %v58
  %v66 = vadd.f32 %v43, %v58
  %v67 = vadd.f32 %v44, %v58
  %v68 = vadd.f32 %v45, %v58
  %v69 = vadd.f32 %v46, %v58
  %v70 = vadd.f32 %v47, %v58
  %v71 = vadd.f32 %v48, %v58
  %v72 = vadd.f32 %v49, %v58
  %v73 = vadd.f32 %v50, %v58
  %v74 = vadd.f32 %v51, %v58
  %v75 = vadd.f32 %v52, %v58
  %vm76 = vcmp.gt.f32.partialorder %v60, 0.0
  %vm77 = vcmp.gt.f32.partialorder %v61, 0.0
  %vm78 = vcmp.gt.f32.partialorder %v62, 0.0
  %vm79 = vcmp.gt.f32.partialorder %v63, 0.0
  %vm80 = vcmp.gt.f32.partialorder %v64, 0.0
  %vm81 = vcmp.gt.f32.partialorder %v65, 0.0
  %vm82 = vcmp.gt.f32.partialorder %v66, 0.0
  %vm83 = vcmp.gt.f32.partialorder %v67, 0.0
  %vm84 = vcmp.gt.f32.partialorder %v68, 0.0
  %vm85 = vcmp.gt.f32.partialorder %v69, 0.0
  %vm86 = vcmp.gt.f32.partialorder %v70, 0.0
  %vm87 = vcmp.gt.f32.partialorder %v71, 0.0
  %vm88 = vcmp.gt.f32.partialorder %v72, 0.0
  %vm89 = vcmp.gt.f32.partialorder %v73, 0.0
  %vm90 = vcmp.gt.f32.partialorder %v74, 0.0
  %vm91 = vcmp.gt.f32.partialorder %v75, 0.0
  %v92 = vmul.f32 %v60, 0.2
  %v93 = vmul.f32 %v61, 0.2
  %v94 = vmul.f32 %v62, 0.2
  %v95 = vmul.f32 %v63, 0.2
  %v96 = vmul.f32 %v64, 0.2
  %v97 = vmul.f32 %v65, 0.2
  %v98 = vmul.f32 %v66, 0.2
  %v99 = vmul.f32 %v67, 0.2
  %v100 = vmul.f32 %v68, 0.2
  %v101 = vmul.f32 %v69, 0.2
  %v102 = vmul.f32 %v70, 0.2
  %v103 = vmul.f32 %v71, 0.2
  %v104 = vmul.f32 %v72, 0.2
  %v105 = vmul.f32 %v73, 0.2
  %v106 = vmul.f32 %v74, 0.2
  %v107 = vmul.f32 %v75, 0.2
  %v108 = vsel %vm76, %v60, %v92
  %v109 = vsel %vm77, %v61, %v93
  %v110 = vsel %vm78, %v62, %v94
  %v111 = vsel %vm79, %v63, %v95
  %v112 = vsel %vm80, %v64, %v96
  %v113 = vsel %vm81, %v65, %v97
  %v114 = vsel %vm82, %v66, %v98
  %v115 = vsel %vm83, %v67, %v99
  %v116 = vsel %vm84, %v68, %v100
  %v117 = vsel %vm85, %v69, %v101
  %v118 = vsel %vm86, %v70, %v102
  %v119 = vsel %vm87, %v71, %v103
  %v120 = vsel %vm88, %v72, %v104
  %v121 = vsel %vm89, %v73, %v105
  %v122 = vsel %vm90, %v74, %v106
  %v123 = vsel %vm91, %v75, %v107
  %v124 = vpack.c.bf16 %v109, %v108
  %v125 = vpack.c.bf16 %v111, %v110
  %v126 = vpack.c.bf16 %v113, %v112
  %v127 = vpack.c.bf16 %v115, %v114
  %v128 = vpack.c.bf16 %v117, %v116
  %v129 = vpack.c.bf16 %v119, %v118
  %v130 = vpack.c.bf16 %v121, %v120
  %v131 = vpack.c.bf16 %v123, %v122
  %v140 = vunpack.c.l.b16 %v124
  %v141 = vunpack.c.h.b16 %v124
  %v142 = vunpack.c.l.b16 %v125
  %v143 = vunpack.c.h.b16 %v125
  %v144 = vunpack.c.l.b16 %v126
  %v145 = vunpack.c.h.b16 %v126
  %v146 = vunpack.c.l.b16 %v127
  %v147 = vunpack.c.h.b16 %v127
  %v148 = vunpack.c.l.b16 %v128
  %v149 = vunpack.c.h.b16 %v128
  %v150 = vunpack.c.l.b16 %v129
  %v151 = vunpack.c.h.b16 %v129
  %v152 = vunpack.c.l.b16 %v130
  %v153 = vunpack.c.h.b16 %v130
  %v154 = vunpack.c.l.b16 %v131
  %v155 = vunpack.c.h.b16 %v131
  %v156 = vpack.c.b16 %v140, %v140
  %v157 = vpack.c.b16 %v141, %v141
  %v158 = vpack.c.b16 %v142, %v142
  %v159 = vpack.c.b16 %v143, %v143
  %v160 = vpack.c.b16 %v144, %v144
  %v161 = vpack.c.b16 %v145, %v145
  %v162 = vpack.c.b16 %v146, %v146
  %v163 = vpack.c.b16 %v147, %v147
  %v164 = vpack.c.b16 %v148, %v148
  %v165 = vpack.c.b16 %v149, %v149
  %v166 = vpack.c.b16 %v150, %v150
  %v167 = vpack.c.b16 %v151, %v151
  %v168 = vpack.c.b16 %v152, %v152
  %v169 = vpack.c.b16 %v153, %v153
  %v170 = vpack.c.b16 %v154, %v154
  %v171 = vpack.c.b16 %v155, %v155
  %vm188 = vcmask 257024
  %189 = vst.msk [vmem:[%s3] sm:$0xf] %vm188, %v156
  %190 = vst.msk [vmem:[%s3 + $0x4] sm:$0xf] %vm188, %v157
  %191 = vst.msk [vmem:[%s3 + $0x8] sm:$0xf] %vm188, %v158
  %192 = vst.msk [vmem:[%s3 + $0xc] sm:$0xf] %vm188, %v159
  %193 = vst.msk [vmem:[%s3 + $0x10] sm:$0xf] %vm188, %v160
  %194 = vst.msk [vmem:[%s3 + $0x14] sm:$0xf] %vm188, %v161
  %195 = vst.msk [vmem:[%s3 + $0x18] sm:$0xf] %vm188, %v162
  %196 = vst.msk [vmem:[%s3 + $0x1c] sm:$0xf] %vm188, %v163
  %197 = vst.msk [vmem:[%s3 + $0x20] sm:$0xf] %vm188, %v164
  %198 = vst.msk [vmem:[%s3 + $0x24] sm:$0xf] %vm188, %v165
  %199 = vst.msk [vmem:[%s3 + $0x28] sm:$0xf] %vm188, %v166
  %200 = vst.msk [vmem:[%s3 + $0x2c] sm:$0xf] %vm188, %v167
  %201 = vst.msk [vmem:[%s3 + $0x30] sm:$0xf] %vm188, %v168
  %202 = vst.msk [vmem:[%s3 + $0x34] sm:$0xf] %vm188, %v169
  %203 = vst.msk [vmem:[%s3 + $0x38] sm:$0xf] %vm188, %v170
  %204 = vst.msk [vmem:[%s3 + $0x3c] sm:$0xf] %vm188, %v171
  // Predicated region
  $region14: #{discriminator_forward.12} parent=0 // pred_check
    _
  $region15: #{discriminator_forward.12} parent=0 // pred_check_branch
    %206 = sbr.rel (0) target = $region17
  $region16: #{discriminator_forward.12} parent=0 // pred_region
    _
  $region17: #{discriminator_forward.12} parent=0 // pred_fallthru
    _
  // Predicated region
  $region18: #{discriminator_forward.12} parent=0 // pred_check
    _
  $region19: #{discriminator_forward.12} parent=0 // pred_check_branch
    %208 = sbr.rel (0) target = $region21
  $region20: #{discriminator_forward.12} parent=0 // pred_region
    _
  $region21: #{discriminator_forward.12} parent=0 // pred_fallthru
    _

// kernel: discriminator_forward.13
$region0: #{discriminator_forward.13}
  #allocation0 [shape = 'u32[]', space=smem, size = 0x4, offset = 0x4, fixed_abs, tag = 'smem constant byte address 0x4 - core index']
  #allocation1 [shape = 'u32[144,128]{1,0:T(1,128)}', space=vmem, size = 0x12000, scoped, tag = 'internal scratch']
  %s0 = inlined_call_operand.vmem [shape: bf16[32,512], index: 0, kind: input, shape index: {}]
  %s1 = inlined_call_operand.vmem [shape: bf16[512,64], index: 1, kind: input, shape index: {}]
  %s2 = inlined_call_operand.vmem [shape: f32[32,64], index: 2, kind: output, shape index: {0}]
  %s3 = inlined_call_operand.vmem [shape: f32[2,64], index: 3, kind: output, shape index: {1}]
  %4 = xla_tuple %s2, %s3
  %s5 = sld [smem:[#allocation0]]
  $region34: #{discriminator_forward.13} parent=0
    _
  %s7 = ssub.s32 1, %s5
  %s8 = scalar_select 0, %s7, %s5
  // Predicated region
  $region2: #{discriminator_forward.13} parent=0 // pred_check
    _
  $region3: #{discriminator_forward.13} parent=0 // pred_check_branch
    %10 = sbr.rel (0) target = $region5
  $region4: #{discriminator_forward.13} parent=0 // pred_region
    _
  $region5: #{discriminator_forward.13} parent=0 // pred_fallthru
    _
  // Predicated region
  $region6: #{discriminator_forward.13} parent=0 // pred_check
    _
  $region7: #{discriminator_forward.13} parent=0 // pred_check_branch
    %12 = sbr.rel (0) target = $region9
  $region8: #{discriminator_forward.13} parent=0 // pred_region
    _
  $region9: #{discriminator_forward.13} parent=0 // pred_fallthru
    _
  %v14 = vld [vmem:[%s0] sm:$0xff]
  %v15 = vld [vmem:[%s0 + $0x8] sm:$0xff]
  %v16 = vld [vmem:[%s0 + $0x10] sm:$0xff]
  %v17 = vld [vmem:[%s0 + $0x18] sm:$0xff]
  %v18 = vld [vmem:[%s0 + $0x20] sm:$0xff]
  %v19 = vld [vmem:[%s0 + $0x28] sm:$0xff]
  %v20 = vld [vmem:[%s0 + $0x30] sm:$0xff]
  %v21 = vld [vmem:[%s0 + $0x38] sm:$0xff]
  %v22 = vld [vmem:[%s1] sm:$0xf]
  %v23 = vld [vmem:[%s1 + $0x4] sm:$0xf]
  %v24 = vld [vmem:[%s1 + $0x8] sm:$0xf]
  %v25 = vld [vmem:[%s1 + $0xc] sm:$0xf]
  %v26 = vld [vmem:[%s1 + $0x10] sm:$0xf]
  %v27 = vld [vmem:[%s1 + $0x14] sm:$0xf]
  %v28 = vld [vmem:[%s1 + $0x18] sm:$0xf]
  %v29 = vld [vmem:[%s1 + $0x1c] sm:$0xf]
  %v30 = vld [vmem:[%s1 + $0x20] sm:$0xf]
  %v31 = vld [vmem:[%s1 + $0x24] sm:$0xf]
  %v32 = vld [vmem:[%s1 + $0x28] sm:$0xf]
  %v33 = vld [vmem:[%s1 + $0x2c] sm:$0xf]
  %v34 = vld [vmem:[%s1 + $0x30] sm:$0xf]
  %v35 = vld [vmem:[%s1 + $0x34] sm:$0xf]
  %v36 = vld [vmem:[%s1 + $0x38] sm:$0xf]
  %v37 = vld [vmem:[%s1 + $0x3c] sm:$0xf]
  %v38 = vld [vmem:[%s1 + $0x40] sm:$0xf]
  %v39 = vld [vmem:[%s1 + $0x44] sm:$0xf]
  %v40 = vld [vmem:[%s1 + $0x48] sm:$0xf]
  %v41 = vld [vmem:[%s1 + $0x4c] sm:$0xf]
  %v42 = vld [vmem:[%s1 + $0x50] sm:$0xf]
  %v43 = vld [vmem:[%s1 + $0x54] sm:$0xf]
  %v44 = vld [vmem:[%s1 + $0x58] sm:$0xf]
  %v45 = vld [vmem:[%s1 + $0x5c] sm:$0xf]
  %v46 = vld [vmem:[%s1 + $0x60] sm:$0xf]
  %v47 = vld [vmem:[%s1 + $0x64] sm:$0xf]
  %v48 = vld [vmem:[%s1 + $0x68] sm:$0xf]
  %v49 = vld [vmem:[%s1 + $0x6c] sm:$0xf]
  %v50 = vld [vmem:[%s1 + $0x70] sm:$0xf]
  %v51 = vld [vmem:[%s1 + $0x74] sm:$0xf]
  %v52 = vld [vmem:[%s1 + $0x78] sm:$0xf]
  %v53 = vld [vmem:[%s1 + $0x7c] sm:$0xf]
  %v54 = vld [vmem:[%s1 + $0x80] sm:$0xf]
  %v55 = vld [vmem:[%s1 + $0x84] sm:$0xf]
  %v56 = vld [vmem:[%s1 + $0x88] sm:$0xf]
  %v57 = vld [vmem:[%s1 + $0x8c] sm:$0xf]
  %v58 = vld [vmem:[%s1 + $0x90] sm:$0xf]
  %v59 = vld [vmem:[%s1 + $0x94] sm:$0xf]
  %v60 = vld [vmem:[%s1 + $0x98] sm:$0xf]
  %v61 = vld [vmem:[%s1 + $0x9c] sm:$0xf]
  %v62 = vld [vmem:[%s1 + $0xa0] sm:$0xf]
  %v63 = vld [vmem:[%s1 + $0xa4] sm:$0xf]
  %v64 = vld [vmem:[%s1 + $0xa8] sm:$0xf]
  %v65 = vld [vmem:[%s1 + $0xac] sm:$0xf]
  %v66 = vld [vmem:[%s1 + $0xb0] sm:$0xf]
  %v67 = vld [vmem:[%s1 + $0xb4] sm:$0xf]
  %v68 = vld [vmem:[%s1 + $0xb8] sm:$0xf]
  %v69 = vld [vmem:[%s1 + $0xbc] sm:$0xf]
  %v70 = vld [vmem:[%s1 + $0xc0] sm:$0xf]
  %v71 = vld [vmem:[%s1 + $0xc4] sm:$0xf]
  %v72 = vld [vmem:[%s1 + $0xc8] sm:$0xf]
  %v73 = vld [vmem:[%s1 + $0xcc] sm:$0xf]
  %v74 = vld [vmem:[%s1 + $0xd0] sm:$0xf]
  %v75 = vld [vmem:[%s1 + $0xd4] sm:$0xf]
  %v76 = vld [vmem:[%s1 + $0xd8] sm:$0xf]
  %v77 = vld [vmem:[%s1 + $0xdc] sm:$0xf]
  %v78 = vld [vmem:[%s1 + $0xe0] sm:$0xf]
  %v79 = vld [vmem:[%s1 + $0xe4] sm:$0xf]
  %v80 = vld [vmem:[%s1 + $0xe8] sm:$0xf]
  %v81 = vld [vmem:[%s1 + $0xec] sm:$0xf]
  %v82 = vld [vmem:[%s1 + $0xf0] sm:$0xf]
  %v83 = vld [vmem:[%s1 + $0xf4] sm:$0xf]
  %v84 = vld [vmem:[%s1 + $0xf8] sm:$0xf]
  %v85 = vld [vmem:[%s1 + $0xfc] sm:$0xf]
  %v94 = vunpack.c.l.b16 %v14
  %v95 = vunpack.c.h.b16 %v14
  %v96 = vunpack.c.l.b16 %v15
  %v97 = vunpack.c.h.b16 %v15
  %v98 = vunpack.c.l.b16 %v16
  %v99 = vunpack.c.h.b16 %v16
  %v100 = vunpack.c.l.b16 %v17
  %v101 = vunpack.c.h.b16 %v17
  %v102 = vunpack.c.l.b16 %v18
  %v103 = vunpack.c.h.b16 %v18
  %v104 = vunpack.c.l.b16 %v19
  %v105 = vunpack.c.h.b16 %v19
  %v106 = vunpack.c.l.b16 %v20
  %v107 = vunpack.c.h.b16 %v20
  %v108 = vunpack.c.l.b16 %v21
  %v109 = vunpack.c.h.b16 %v21
  %v110 = vpack.c.b16 %v98, %v94
  %v111 = vpack.c.b16 %v99, %v95
  %v112 = vpack.c.b16 %v100, %v96
  %v113 = vpack.c.b16 %v101, %v97
  %v114 = vpack.c.b16 %v106, %v102
  %v115 = vpack.c.b16 %v107, %v103
  %v116 = vpack.c.b16 %v108, %v104
  %v117 = vpack.c.b16 %v109, %v105
  %v190 = vunpack.c.l.b16 %v22
  %v191 = vunpack.c.l.b16 %v23
  %v192 = vunpack.c.l.b16 %v24
  %v193 = vunpack.c.l.b16 %v25
  %v194 = vunpack.c.l.b16 %v26
  %v195 = vunpack.c.l.b16 %v27
  %v196 = vunpack.c.l.b16 %v28
  %v197 = vunpack.c.l.b16 %v29
  %v198 = vunpack.c.l.b16 %v30
  %v199 = vunpack.c.l.b16 %v31
  %v200 = vunpack.c.l.b16 %v32
  %v201 = vunpack.c.l.b16 %v33
  %v202 = vunpack.c.l.b16 %v34
  %v203 = vunpack.c.l.b16 %v35
  %v204 = vunpack.c.l.b16 %v36
  %v205 = vunpack.c.l.b16 %v37
  %v206 = vunpack.c.l.b16 %v38
  %v207 = vunpack.c.l.b16 %v39
  %v208 = vunpack.c.l.b16 %v40
  %v209 = vunpack.c.l.b16 %v41
  %v210 = vunpack.c.l.b16 %v42
  %v211 = vunpack.c.l.b16 %v43
  %v212 = vunpack.c.l.b16 %v44
  %v213 = vunpack.c.l.b16 %v45
  %v214 = vunpack.c.l.b16 %v46
  %v215 = vunpack.c.l.b16 %v47
  %v216 = vunpack.c.l.b16 %v48
  %v217 = vunpack.c.l.b16 %v49
  %v218 = vunpack.c.l.b16 %v50
  %v219 = vunpack.c.l.b16 %v51
  %v220 = vunpack.c.l.b16 %v52
  %v221 = vunpack.c.l.b16 %v53
  %v222 = vunpack.c.l.b16 %v54
  %v223 = vunpack.c.l.b16 %v55
  %v224 = vunpack.c.l.b16 %v56
  %v225 = vunpack.c.l.b16 %v57
  %v226 = vunpack.c.l.b16 %v58
  %v227 = vunpack.c.l.b16 %v59
  %v228 = vunpack.c.l.b16 %v60
  %v229 = vunpack.c.l.b16 %v61
  %v230 = vunpack.c.l.b16 %v62
  %v231 = vunpack.c.l.b16 %v63
  %v232 = vunpack.c.l.b16 %v64
  %v233 = vunpack.c.l.b16 %v65
  %v234 = vunpack.c.l.b16 %v66
  %v235 = vunpack.c.l.b16 %v67
  %v236 = vunpack.c.l.b16 %v68
  %v237 = vunpack.c.l.b16 %v69
  %v238 = vunpack.c.l.b16 %v70
  %v239 = vunpack.c.l.b16 %v71
  %v240 = vunpack.c.l.b16 %v72
  %v241 = vunpack.c.l.b16 %v73
  %v242 = vunpack.c.l.b16 %v74
  %v243 = vunpack.c.l.b16 %v75
  %v244 = vunpack.c.l.b16 %v76
  %v245 = vunpack.c.l.b16 %v77
  %v246 = vunpack.c.l.b16 %v78
  %v247 = vunpack.c.l.b16 %v79
  %v248 = vunpack.c.l.b16 %v80
  %v249 = vunpack.c.l.b16 %v81
  %v250 = vunpack.c.l.b16 %v82
  %v251 = vunpack.c.l.b16 %v83
  %v252 = vunpack.c.l.b16 %v84
  %v253 = vunpack.c.l.b16 %v85
  %v254 = vpack.c.b16 %v191, %v190
  %v255 = vpack.c.b16 %v193, %v192
  %v256 = vpack.c.b16 %v195, %v194
  %v257 = vpack.c.b16 %v197, %v196
  %v258 = vpack.c.b16 %v199, %v198
  %v259 = vpack.c.b16 %v201, %v200
  %v260 = vpack.c.b16 %v203, %v202
  %v261 = vpack.c.b16 %v205, %v204
  %v262 = vpack.c.b16 %v207, %v206
  %v263 = vpack.c.b16 %v209, %v208
  %v264 = vpack.c.b16 %v211, %v210
  %v265 = vpack.c.b16 %v213, %v212
  %v266 = vpack.c.b16 %v215, %v214
  %v267 = vpack.c.b16 %v217, %v216
  %v268 = vpack.c.b16 %v219, %v218
  %v269 = vpack.c.b16 %v221, %v220
  %v270 = vpack.c.b16 %v223, %v222
  %v271 = vpack.c.b16 %v225, %v224
  %v272 = vpack.c.b16 %v227, %v226
  %v273 = vpack.c.b16 %v229, %v228
  %v274 = vpack.c.b16 %v231, %v230
  %v275 = vpack.c.b16 %v233, %v232
  %v276 = vpack.c.b16 %v235, %v234
  %v277 = vpack.c.b16 %v237, %v236
  %v278 = vpack.c.b16 %v239, %v238
  %v279 = vpack.c.b16 %v241, %v240
  %v280 = vpack.c.b16 %v243, %v242
  %v281 = vpack.c.b16 %v245, %v244
  %v282 = vpack.c.b16 %v247, %v246
  %v283 = vpack.c.b16 %v249, %v248
  %v284 = vpack.c.b16 %v251, %v250
  %v285 = vpack.c.b16 %v253, %v252
  %318 = vmatprep.subr.bf16.mxu0 0
  %319 = vmatpush1.bf16.msra.mxu0 %v261
  %320 = vmatprep.subr.bf16.mxu0 0
  %321 = vmatpush1.bf16.msra.mxu0 %v260
  %322 = vmatprep.subr.bf16.mxu0 0
  %323 = vmatpush1.bf16.msra.mxu0 %v259
  %324 = vmatprep.subr.bf16.mxu0 0
  %325 = vmatpush1.bf16.msra.mxu0 %v258
  %326 = vmatprep.subr.bf16.mxu0 0
  %327 = vmatpush1.bf16.msra.mxu0 %v257
  %328 = vmatprep.subr.bf16.mxu0 0
  %329 = vmatpush1.bf16.msra.mxu0 %v256
  %330 = vmatprep.subr.bf16.mxu0 0
  %331 = vmatpush1.bf16.msra.mxu0 %v255
  %332 = vmatprep.subr.bf16.mxu0 0
  %333 = vmatpush1.bf16.msra.mxu0 %v254
  %334 = vmatprep.subr.bf16.mxu0 0
  %335 = vmatpush2.bf16.msra.mxu0 %v269
  %336 = vmatprep.subr.bf16.mxu0 0
  %337 = vmatpush2.bf16.msra.mxu0 %v268
  %338 = vmatprep.subr.bf16.mxu0 0
  %339 = vmatpush2.bf16.msra.mxu0 %v267
  %340 = vmatprep.subr.bf16.mxu0 0
  %341 = vmatpush2.bf16.msra.mxu0 %v266
  %342 = vmatprep.subr.bf16.mxu0 0
  %343 = vmatpush2.bf16.msra.mxu0 %v265
  %344 = vmatprep.subr.bf16.mxu0 0
  %345 = vmatpush2.bf16.msra.mxu0 %v264
  %346 = vmatprep.subr.bf16.mxu0 0
  %347 = vmatpush2.bf16.msra.mxu0 %v263
  %348 = vmatprep.subr.bf16.mxu0 0
  %349 = vmatpush2.bf16.msra.mxu0 %v262
  %350 = vmatprep.mubr.bf16.mxu0 %v111
  %351 = vmatmul.mubr.bf16.gmra.mxu0 %v110
  %v352 = vpop.f32.mrf.mxu0
  %v353 = vadd.f32 0.0, %v352
  %v354 = vpop.f32.mrf.mxu0
  %v355 = vpop.f32.mrf.mxu0
  %v356 = vadd.f32 0.0, %v355
  %v357 = vpop.f32.mrf.mxu0
  %358 = vmatprep.mubr.bf16.mxu0 %v115
  %359 = vmatmul.mubr.bf16.gmra.mxu0 %v114
  %v360 = vpop.f32.mrf.mxu0
  %v361 = vadd.f32 0.0, %v360
  %v362 = vpop.f32.mrf.mxu0
  %v363 = vpop.f32.mrf.mxu0
  %v364 = vadd.f32 0.0, %v363
  %v365 = vpop.f32.mrf.mxu0
  %366 = vdwg.mxu0
  %367 = vmatprep.subr.bf16.mxu0 0
  %368 = vmatpush1.bf16.msra.mxu0 %v277
  %369 = vmatprep.subr.bf16.mxu0 0
  %370 = vmatpush1.bf16.msra.mxu0 %v276
  %371 = vmatprep.subr.bf16.mxu0 0
  %372 = vmatpush1.bf16.msra.mxu0 %v275
  %373 = vmatprep.subr.bf16.mxu0 0
  %374 = vmatpush1.bf16.msra.mxu0 %v274
  %375 = vmatprep.subr.bf16.mxu0 0
  %376 = vmatpush1.bf16.msra.mxu0 %v273
  %377 = vmatprep.subr.bf16.mxu0 0
  %378 = vmatpush1.bf16.msra.mxu0 %v272
  %379 = vmatprep.subr.bf16.mxu0 0
  %380 = vmatpush1.bf16.msra.mxu0 %v271
  %381 = vmatprep.subr.bf16.mxu0 0
  %382 = vmatpush1.bf16.msra.mxu0 %v270
  %383 = vmatprep.subr.bf16.mxu0 0
  %384 = vmatpush2.bf16.msra.mxu0 %v285
  %385 = vmatprep.subr.bf16.mxu0 0
  %386 = vmatpush2.bf16.msra.mxu0 %v284
  %387 = vmatprep.subr.bf16.mxu0 0
  %388 = vmatpush2.bf16.msra.mxu0 %v283
  %389 = vmatprep.subr.bf16.mxu0 0
  %390 = vmatpush2.bf16.msra.mxu0 %v282
  %391 = vmatprep.subr.bf16.mxu0 0
  %392 = vmatpush2.bf16.msra.mxu0 %v281
  %393 = vmatprep.subr.bf16.mxu0 0
  %394 = vmatpush2.bf16.msra.mxu0 %v280
  %395 = vmatprep.subr.bf16.mxu0 0
  %396 = vmatpush2.bf16.msra.mxu0 %v279
  %397 = vmatprep.subr.bf16.mxu0 0
  %398 = vmatpush2.bf16.msra.mxu0 %v278
  %399 = vmatprep.mubr.bf16.mxu0 %v113
  %400 = vmatmul.mubr.bf16.gmra.mxu0 %v112
  %v401 = vpop.f32.mrf.mxu0
  %v402 = vadd.f32 %v353, %v401
  %v403 = vpop.f32.mrf.mxu0
  %v404 = vpop.f32.mrf.mxu0
  %v405 = vadd.f32 %v356, %v404
  %v406 = vpop.f32.mrf.mxu0
  %407 = vmatprep.mubr.bf16.mxu0 %v117
  %408 = vmatmul.mubr.bf16.gmra.mxu0 %v116
  %v409 = vpop.f32.mrf.mxu0
  %v410 = vadd.f32 %v361, %v409
  %v411 = vpop.f32.mrf.mxu0
  %v412 = vpop.f32.mrf.mxu0
  %v413 = vadd.f32 %v364, %v412
  %v414 = vpop.f32.mrf.mxu0
  %415 = vdwg.mxu0
  %vm416 = vcmask 523264
  %417 = vst.msk [vmem:[%s2] sm:$0xff] %vm416, %v402
  %418 = vst.msk [vmem:[%s2 + $0x8] sm:$0xff] %vm416, %v405
  %419 = vst.msk [vmem:[%s2 + $0x10] sm:$0xff] %vm416, %v410
  %420 = vst.msk [vmem:[%s2 + $0x18] sm:$0xff] %vm416, %v413
  %v421 = vsel %vm416, %v402, 0.0
  %v422 = vsel %vm416, %v405, 0.0
  %v423 = vadd.f32 %v421, %v422
  %v424 = vsel %vm416, %v410, 0.0
  %v425 = vadd.f32 %v423, %v424
  %v426 = vsel %vm416, %v413, 0.0
  %v427 = vadd.f32 %v425, %v426
  %v428 = vrot.slane %v427, 4
  %v429 = vadd.f32 %v427, %v428
  %v430 = vrot.slane %v429, 2
  %v431 = vadd.f32 %v429, %v430
  %v432 = vrot.slane %v431, 1
  %v433 = vadd.f32 %v431, %v432
  %v434 = vmul.f32 %v402, %v402
  %v435 = vmul.f32 %v405, %v405
  %v436 = vmul.f32 %v410, %v410
  %v437 = vmul.f32 %v413, %v413
  %v438 = vsel %vm416, %v434, 0.0
  %v439 = vsel %vm416, %v435, 0.0
  %v440 = vadd.f32 %v438, %v439
  %v441 = vsel %vm416, %v436, 0.0
  %v442 = vadd.f32 %v440, %v441
  %v443 = vsel %vm416, %v437, 0.0
  %v444 = vadd.f32 %v442, %v443
  %v445 = vrot.slane %v444, 4
  %v446 = vadd.f32 %v444, %v445
  %v447 = vrot.slane %v446, 2
  %v448 = vadd.f32 %v446, %v447
  %v449 = vrot.slane %v448, 1
  %v450 = vadd.f32 %v448, %v449
  %vm451 = vcmask 1040384
  %v452 = vsel %vm451, %v433, %v450
  %p453 = scmp.eq.s32.totalorder 0, 0
  // Predicated region
  $region10: #{discriminator_forward.13} parent=0 // pred_check
    %p454 = pneg %p453
  $region11: #{discriminator_forward.13} parent=0 // pred_check_branch
    %456 = sbr.rel (%p454) target = $region13
  $region12: #{discriminator_forward.13} parent=0 // pred_region
    %vm457 = vcmask 517120
    %458 = vst.msk [vmem:[%s3] sm:$0x3] %vm457, %v452
  $region13: #{discriminator_forward.13} parent=0 // pred_fallthru
    _
  %p459 = scmp.gt.s32.totalorder 0, 0
  // Predicated region
  $region14: #{discriminator_forward.13} parent=0 // pred_check
    %p460 = pneg %p459
  $region15: #{discriminator_forward.13} parent=0 // pred_check_branch
    %462 = sbr.rel (%p460) target = $region17
  $region16: #{discriminator_forward.13} parent=0 // pred_region
    %v463 = vld [vmem:[%s3] sm:$0x3]
    %v464 = vadd.f32 %v463, %v452
    %vm465 = vcmask 517120
    %466 = vst.msk [vmem:[%s3] sm:$0x3] %vm465, %v464
  $region17: #{discriminator_forward.13} parent=0 // pred_fallthru
    _
  // Predicated region
  $region18: #{discriminator_forward.13} parent=0 // pred_check
    _
  $region19: #{discriminator_forward.13} parent=0 // pred_check_branch
    %468 = sbr.rel (0) target = $region21
  $region20: #{discriminator_forward.13} parent=0 // pred_region
    _
  $region21: #{discriminator_forward.13} parent=0 // pred_fallthru
    _
  // Predicated region
  $region22: #{discriminator_forward.13} parent=0 // pred_check
    _
  $region23: #{discriminator_forward.13} parent=0 // pred_check_branch
    %470 = sbr.rel (0) target = $region25
  $region24: #{discriminator_forward.13} parent=0 // pred_region
    _
  $region25: #{discriminator_forward.13} parent=0 // pred_fallthru
    _
  // Predicated region
  $region26: #{discriminator_forward.13} parent=0 // pred_check
    _
  $region27: #{discriminator_forward.13} parent=0 // pred_check_branch
    %472 = sbr.rel (0) target = $region29
  $region28: #{discriminator_forward.13} parent=0 // pred_region
    _
  $region29: #{discriminator_forward.13} parent=0 // pred_fallthru
    _
  // Predicated region
  $region30: #{discriminator_forward.13} parent=0 // pred_check
    _
  $region31: #{discriminator_forward.13} parent=0 // pred_check_branch
    %474 = sbr.rel (0) target = $region33
  $region32: #{discriminator_forward.13} parent=0 // pred_region
    _
  $region33: #{discriminator_forward.13} parent=0 // pred_fallthru
    _

// kernel: discriminator_forward.14
$region0: #{discriminator_forward.14}
  #allocation0 [shape = 'u32[]', space=smem, size = 0x4, offset = 0x4, fixed_abs, tag = 'smem constant byte address 0x4 - core index']
  #allocation1 [shape = 'u32[144,128]{1,0:T(1,128)}', space=vmem, size = 0x12000, scoped, tag = 'internal scratch']
  %s0 = inlined_call_operand.vmem [shape: f32[32,64], index: 0, kind: input, shape index: {}]
  %s1 = inlined_call_operand.vmem [shape: f32[1,64], index: 1, kind: input, shape index: {}]
  %s2 = inlined_call_operand.vmem [shape: f32[1,64], index: 2, kind: input, shape index: {}]
  %s3 = inlined_call_operand.vmem [shape: bf16[32,64], index: 3, kind: output, shape index: {}]
  %s4 = sld [smem:[#allocation0]]
  $region22: #{discriminator_forward.14} parent=0
    _
  %s6 = ssub.s32 1, %s4
  %s7 = scalar_select 0, %s6, %s4
  // Predicated region
  $region2: #{discriminator_forward.14} parent=0 // pred_check
    _
  $region3: #{discriminator_forward.14} parent=0 // pred_check_branch
    %9 = sbr.rel (0) target = $region5
  $region4: #{discriminator_forward.14} parent=0 // pred_region
    _
  $region5: #{discriminator_forward.14} parent=0 // pred_fallthru
    _
  // Predicated region
  $region6: #{discriminator_forward.14} parent=0 // pred_check
    _
  $region7: #{discriminator_forward.14} parent=0 // pred_check_branch
    %11 = sbr.rel (0) target = $region9
  $region8: #{discriminator_forward.14} parent=0 // pred_region
    _
  $region9: #{discriminator_forward.14} parent=0 // pred_fallthru
    _
  // Predicated region
  $region10: #{discriminator_forward.14} parent=0 // pred_check
    _
  $region11: #{discriminator_forward.14} parent=0 // pred_check_branch
    %13 = sbr.rel (0) target = $region13
  $region12: #{discriminator_forward.14} parent=0 // pred_region
    _
  $region13: #{discriminator_forward.14} parent=0 // pred_fallthru
    _
  %v14 = vld [vmem:[%s0] sm:$0xff]
  %v15 = vld [vmem:[%s0 + $0x8] sm:$0xff]
  %v16 = vld [vmem:[%s0 + $0x10] sm:$0xff]
  %v17 = vld [vmem:[%s0 + $0x18] sm:$0xff]
  %v18 = vld [vmem:[%s1] sm:$0x1]
  %v20 = vlaneseq
  %v21 = vshrl.u32 %v20, 7
  %v22 = vsub.s32 0, %v21
  %v23 = vrot.slane %v18, %v22
  %v25 = vmul.f32 %v14, %v23
  %v26 = vmul.f32 %v15, %v23
  %v27 = vmul.f32 %v16, %v23
  %v28 = vmul.f32 %v17, %v23
  %v29 = vld [vmem:[%s2] sm:$0x1]
  %v31 = vlaneseq
  %v32 = vshrl.u32 %v31, 7
  %v33 = vsub.s32 0, %v32
  %v34 = vrot.slane %v29, %v33
  %v36 = vadd.f32 %v25, %v34
  %v37 = vadd.f32 %v26, %v34
  %v38 = vadd.f32 %v27, %v34
  %v39 = vadd.f32 %v28, %v34
  %vm40 = vcmp.gt.f32.partialorder %v36, 0.0
  %vm41 = vcmp.gt.f32.partialorder %v37, 0.0
  %vm42 = vcmp.gt.f32.partialorder %v38, 0.0
  %vm43 = vcmp.gt.f32.partialorder %v39, 0.0
  %v44 = vmul.f32 %v36, 0.2
  %v45 = vmul.f32 %v37, 0.2
  %v46 = vmul.f32 %v38, 0.2
  %v47 = vmul.f32 %v39, 0.2
  %v48 = vsel %vm40, %v36, %v44
  %v49 = vsel %vm41, %v37, %v45
  %v50 = vsel %vm42, %v38, %v46
  %v51 = vsel %vm43, %v39, %v47
  %v52 = vpack.c.bf16 %v49, %v48
  %v53 = vpack.c.bf16 %v51, %v50
  %v56 = vunpack.c.l.b16 %v52
  %v57 = vunpack.c.h.b16 %v52
  %v58 = vunpack.c.l.b16 %v53
  %v59 = vunpack.c.h.b16 %v53
  %v60 = vpack.c.b16 %v56, %v56
  %v61 = vpack.c.b16 %v57, %v57
  %v62 = vpack.c.b16 %v58, %v58
  %v63 = vpack.c.b16 %v59, %v59
  %vm68 = vcmask 519168
  %69 = vst.msk [vmem:[%s3] sm:$0xf] %vm68, %v60
  %70 = vst.msk [vmem:[%s3 + $0x4] sm:$0xf] %vm68, %v61
  %71 = vst.msk [vmem:[%s3 + $0x8] sm:$0xf] %vm68, %v62
  %72 = vst.msk [vmem:[%s3 + $0xc] sm:$0xf] %vm68, %v63
  // Predicated region
  $region14: #{discriminator_forward.14} parent=0 // pred_check
    _
  $region15: #{discriminator_forward.14} parent=0 // pred_check_branch
    %74 = sbr.rel (0) target = $region17
  $region16: #{discriminator_forward.14} parent=0 // pred_region
    _
  $region17: #{discriminator_forward.14} parent=0 // pred_fallthru
    _
  // Predicated region
  $region18: #{discriminator_forward.14} parent=0 // pred_check
    _
  $region19: #{discriminator_forward.14} parent=0 // pred_check_branch
    %76 = sbr.rel (0) target = $region21
  $region20: #{discriminator_forward.14} parent=0 // pred_region
    _
  $region21: #{discriminator_forward.14} parent=0 // pred_fallthru
    _

// kernel: discriminator_forward.15
$region0: #{discriminator_forward.15}
  #allocation0 [shape = 'u32[]', space=smem, size = 0x4, offset = 0x4, fixed_abs, tag = 'smem constant byte address 0x4 - core index']
  #allocation1 [shape = 'u32[144,128]{1,0:T(1,128)}', space=vmem, size = 0x12000, scoped, tag = 'internal scratch']
  %s0 = inlined_call_operand.vmem [shape: bf16[8,1024], index: 0, kind: input, shape index: {}]
  %s1 = inlined_call_operand.vmem [shape: bf16[1024,8], index: 1, kind: input, shape index: {}]
  %s2 = inlined_call_operand.vmem [shape: f32[8,8], index: 2, kind: output, shape index: {}]
  %s3 = sld [smem:[#allocation0]]
  $region18: #{discriminator_forward.15} parent=0
    _
  %s5 = ssub.s32 1, %s3
  %s6 = scalar_select 0, %s5, %s3
  // Predicated region
  $region2: #{discriminator_forward.15} parent=0 // pred_check
    _
  $region3: #{discriminator_forward.15} parent=0 // pred_check_branch
    %8 = sbr.rel (0) target = $region5
  $region4: #{discriminator_forward.15} parent=0 // pred_region
    _
  $region5: #{discriminator_forward.15} parent=0 // pred_fallthru
    _
  // Predicated region
  $region6: #{discriminator_forward.15} parent=0 // pred_check
    _
  $region7: #{discriminator_forward.15} parent=0 // pred_check_branch
    %10 = sbr.rel (0) target = $region9
  $region8: #{discriminator_forward.15} parent=0 // pred_region
    _
  $region9: #{discriminator_forward.15} parent=0 // pred_fallthru
    _
  %v12 = vld [vmem:[%s0] sm:$0xff]
  %v13 = vld [vmem:[%s0 + $0x8] sm:$0xff]
  %v14 = vld [vmem:[%s0 + $0x10] sm:$0xff]
  %v15 = vld [vmem:[%s0 + $0x18] sm:$0xff]
  %v16 = vld [vmem:[%s1] sm:$0xf]
  %v17 = vld [vmem:[%s1 + $0x4] sm:$0xf]
  %v18 = vld [vmem:[%s1 + $0x8] sm:$0xf]
  %v19 = vld [vmem:[%s1 + $0xc] sm:$0xf]
  %v20 = vld [vmem:[%s1 + $0x10] sm:$0xf]
  %v21 = vld [vmem:[%s1 + $0x14] sm:$0xf]
  %v22 = vld [vmem:[%s1 + $0x18] sm:$0xf]
  %v23 = vld [vmem:[%s1 + $0x1c] sm:$0xf]
  %v24 = vld [vmem:[%s1 + $0x20] sm:$0xf]
  %v25 = vld [vmem:[%s1 + $0x24] sm:$0xf]
  %v26 = vld [vmem:[%s1 + $0x28] sm:$0xf]
  %v27 = vld [vmem:[%s1 + $0x2c] sm:$0xf]
  %v28 = vld [vmem:[%s1 + $0x30] sm:$0xf]
  %v29 = vld [vmem:[%s1 + $0x34] sm:$0xf]
  %v30 = vld [vmem:[%s1 + $0x38] sm:$0xf]
  %v31 = vld [vmem:[%s1 + $0x3c] sm:$0xf]
  %v32 = vld [vmem:[%s1 + $0x40] sm:$0xf]
  %v33 = vld [vmem:[%s1 + $0x44] sm:$0xf]
  %v34 = vld [vmem:[%s1 + $0x48] sm:$0xf]
  %v35 = vld [vmem:[%s1 + $0x4c] sm:$0xf]
  %v36 = vld [vmem:[%s1 + $0x50] sm:$0xf]
  %v37 = vld [vmem:[%s1 + $0x54] sm:$0xf]
  %v38 = vld [vmem:[%s1 + $0x58] sm:$0xf]
  %v39 = vld [vmem:[%s1 + $0x5c] sm:$0xf]
  %v40 = vld [vmem:[%s1 + $0x60] sm:$0xf]
  %v41 = vld [vmem:[%s1 + $0x64] sm:$0xf]
  %v42 = vld [vmem:[%s1 + $0x68] sm:$0xf]
  %v43 = vld [vmem:[%s1 + $0x6c] sm:$0xf]
  %v44 = vld [vmem:[%s1 + $0x70] sm:$0xf]
  %v45 = vld [vmem:[%s1 + $0x74] sm:$0xf]
  %v46 = vld [vmem:[%s1 + $0x78] sm:$0xf]
  %v47 = vld [vmem:[%s1 + $0x7c] sm:$0xf]
  %v48 = vld [vmem:[%s1 + $0x80] sm:$0xf]
  %v49 = vld [vmem:[%s1 + $0x84] sm:$0xf]
  %v50 = vld [vmem:[%s1 + $0x88] sm:$0xf]
  %v51 = vld [vmem:[%s1 + $0x8c] sm:$0xf]
  %v52 = vld [vmem:[%s1 + $0x90] sm:$0xf]
  %v53 = vld [vmem:[%s1 + $0x94] sm:$0xf]
  %v54 = vld [vmem:[%s1 + $0x98] sm:$0xf]
  %v55 = vld [vmem:[%s1 + $0x9c] sm:$0xf]
  %v56 = vld [vmem:[%s1 + $0xa0] sm:$0xf]
  %v57 = vld [vmem:[%s1 + $0xa4] sm:$0xf]
  %v58 = vld [vmem:[%s1 + $0xa8] sm:$0xf]
  %v59 = vld [vmem:[%s1 + $0xac] sm:$0xf]
  %v60 = vld [vmem:[%s1 + $0xb0] sm:$0xf]
  %v61 = vld [vmem:[%s1 + $0xb4] sm:$0xf]
  %v62 = vld [vmem:[%s1 + $0xb8] sm:$0xf]
  %v63 = vld [vmem:[%s1 + $0xbc] sm:$0xf]
  %v64 = vld [vmem:[%s1 + $0xc0] sm:$0xf]
  %v65 = vld [vmem:[%s1 + $0xc4] sm:$0xf]
  %v66 = vld [vmem:[%s1 + $0xc8] sm:$0xf]
  %v67 = vld [vmem:[%s1 + $0xcc] sm:$0xf]
  %v68 = vld [vmem:[%s1 + $0xd0] sm:$0xf]
  %v69 = vld [vmem:[%s1 + $0xd4] sm:$0xf]
  %v70 = vld [vmem:[%s1 + $0xd8] sm:$0xf]
  %v71 = vld [vmem:[%s1 + $0xdc] sm:$0xf]
  %v72 = vld [vmem:[%s1 + $0xe0] sm:$0xf]
  %v73 = vld [vmem:[%s1 + $0xe4] sm:$0xf]
  %v74 = vld [vmem:[%s1 + $0xe8] sm:$0xf]
  %v75 = vld [vmem:[%s1 + $0xec] sm:$0xf]
  %v76 = vld [vmem:[%s1 + $0xf0] sm:$0xf]
  %v77 = vld [vmem:[%s1 + $0xf4] sm:$0xf]
  %v78 = vld [vmem:[%s1 + $0xf8] sm:$0xf]
  %v79 = vld [vmem:[%s1 + $0xfc] sm:$0xf]
  %v80 = vld [vmem:[%s1 + $0x100] sm:$0xf]
  %v81 = vld [vmem:[%s1 + $0x104] sm:$0xf]
  %v82 = vld [vmem:[%s1 + $0x108] sm:$0xf]
  %v83 = vld [vmem:[%s1 + $0x10c] sm:$0xf]
  %v84 = vld [vmem:[%s1 + $0x110] sm:$0xf]
  %v85 = vld [vmem:[%s1 + $0x114] sm:$0xf]
  %v86 = vld [vmem:[%s1 + $0x118] sm:$0xf]
  %v87 = vld [vmem:[%s1 + $0x11c] sm:$0xf]
  %v88 = vld [vmem:[%s1 + $0x120] sm:$0xf]
  %v89 = vld [vmem:[%s1 + $0x124] sm:$0xf]
  %v90 = vld [vmem:[%s1 + $0x128] sm:$0xf]
  %v91 = vld [vmem:[%s1 + $0x12c] sm:$0xf]
  %v92 = vld [vmem:[%s1 + $0x130] sm:$0xf]
  %v93 = vld [vmem:[%s1 + $0x134] sm:$0xf]
  %v94 = vld [vmem:[%s1 + $0x138] sm:$0xf]
  %v95 = vld [vmem:[%s1 + $0x13c] sm:$0xf]
  %v96 = vld [vmem:[%s1 + $0x140] sm:$0xf]
  %v97 = vld [vmem:[%s1 + $0x144] sm:$0xf]
  %v98 = vld [vmem:[%s1 + $0x148] sm:$0xf]
  %v99 = vld [vmem:[%s1 + $0x14c] sm:$0xf]
  %v100 = vld [vmem:[%s1 + $0x150] sm:$0xf]
  %v101 = vld [vmem:[%s1 + $0x154] sm:$0xf]
  %v102 = vld [vmem:[%s1 + $0x158] sm:$0xf]
  %v103 = vld [vmem:[%s1 + $0x15c] sm:$0xf]
  %v104 = vld [vmem:[%s1 + $0x160] sm:$0xf]
  %v105 = vld [vmem:[%s1 + $0x164] sm:$0xf]
  %v106 = vld [vmem:[%s1 + $0x168] sm:$0xf]
  %v107 = vld [vmem:[%s1 + $0x16c] sm:$0xf]
  %v108 = vld [vmem:[%s1 + $0x170] sm:$0xf]
  %v109 = vld [vmem:[%s1 + $0x174] sm:$0xf]
  %v110 = vld [vmem:[%s1 + $0x178] sm:$0xf]
  %v111 = vld [vmem:[%s1 + $0x17c] sm:$0xf]
  %v112 = vld [vmem:[%s1 + $0x180] sm:$0xf]
  %v113 = vld [vmem:[%s1 + $0x184] sm:$0xf]
  %v114 = vld [vmem:[%s1 + $0x188] sm:$0xf]
  %v115 = vld [vmem:[%s1 + $0x18c] sm:$0xf]
  %v116 = vld [vmem:[%s1 + $0x190] sm:$0xf]
  %v117 = vld [vmem:[%s1 + $0x194] sm:$0xf]
  %v118 = vld [vmem:[%s1 + $0x198] sm:$0xf]
  %v119 = vld [vmem:[%s1 + $0x19c] sm:$0xf]
  %v120 = vld [vmem:[%s1 + $0x1a0] sm:$0xf]
  %v121 = vld [vmem:[%s1 + $0x1a4] sm:$0xf]
  %v122 = vld [vmem:[%s1 + $0x1a8] sm:$0xf]
  %v123 = vld [vmem:[%s1 + $0x1ac] sm:$0xf]
  %v124 = vld [vmem:[%s1 + $0x1b0] sm:$0xf]
  %v125 = vld [vmem:[%s1 + $0x1b4] sm:$0xf]
  %v126 = vld [vmem:[%s1 + $0x1b8] sm:$0xf]
  %v127 = vld [vmem:[%s1 + $0x1bc] sm:$0xf]
  %v128 = vld [vmem:[%s1 + $0x1c0] sm:$0xf]
  %v129 = vld [vmem:[%s1 + $0x1c4] sm:$0xf]
  %v130 = vld [vmem:[%s1 + $0x1c8] sm:$0xf]
  %v131 = vld [vmem:[%s1 + $0x1cc] sm:$0xf]
  %v132 = vld [vmem:[%s1 + $0x1d0] sm:$0xf]
  %v133 = vld [vmem:[%s1 + $0x1d4] sm:$0xf]
  %v134 = vld [vmem:[%s1 + $0x1d8] sm:$0xf]
  %v135 = vld [vmem:[%s1 + $0x1dc] sm:$0xf]
  %v136 = vld [vmem:[%s1 + $0x1e0] sm:$0xf]
  %v137 = vld [vmem:[%s1 + $0x1e4] sm:$0xf]
  %v138 = vld [vmem:[%s1 + $0x1e8] sm:$0xf]
  %v139 = vld [vmem:[%s1 + $0x1ec] sm:$0xf]
  %v140 = vld [vmem:[%s1 + $0x1f0] sm:$0xf]
  %v141 = vld [vmem:[%s1 + $0x1f4] sm:$0xf]
  %v142 = vld [vmem:[%s1 + $0x1f8] sm:$0xf]
  %v143 = vld [vmem:[%s1 + $0x1fc] sm:$0xf]
  %v148 = vunpack.c.l.b16 %v12
  %v149 = vunpack.c.h.b16 %v12
  %v150 = vunpack.c.l.b16 %v13
  %v151 = vunpack.c.h.b16 %v13
  %v152 = vunpack.c.l.b16 %v14
  %v153 = vunpack.c.h.b16 %v14
  %v154 = vunpack.c.l.b16 %v15
  %v155 = vunpack.c.h.b16 %v15
  %v156 = vpack.c.b16 %v148, %v148
  %v157 = vpack.c.b16 %v149, %v149
  %v158 = vpack.c.b16 %v150, %v150
  %v159 = vpack.c.b16 %v151, %v151
  %v160 = vpack.c.b16 %v152, %v152
  %v161 = vpack.c.b16 %v153, %v153
  %v162 = vpack.c.b16 %v154, %v154
  %v163 = vpack.c.b16 %v155, %v155
  %v300 = vunpack.c.l.b16 %v16
  %v301 = vunpack.c.l.b16 %v17
  %v302 = vunpack.c.l.b16 %v18
  %v303 = vunpack.c.l.b16 %v19
  %v304 = vunpack.c.l.b16 %v20
  %v305 = vunpack.c.l.b16 %v21
  %v306 = vunpack.c.l.b16 %v22
  %v307 = vunpack.c.l.b16 %v23
  %v308 = vunpack.c.l.b16 %v24
  %v309 = vunpack.c.l.b16 %v25
  %v310 = vunpack.c.l.b16 %v26
  %v311 = vunpack.c.l.b16 %v27
  %v312 = vunpack.c.l.b16 %v28
  %v313 = vunpack.c.l.b16 %v29
  %v314 = vunpack.c.l.b16 %v30
  %v315 = vunpack.c.l.b16 %v31
  %v316 = vunpack.c.l.b16 %v32
  %v317 = vunpack.c.l.b16 %v33
  %v318 = vunpack.c.l.b16 %v34
  %v319 = vunpack.c.l.b16 %v35
  %v320 = vunpack.c.l.b16 %v36
  %v321 = vunpack.c.l.b16 %v37
  %v322 = vunpack.c.l.b16 %v38
  %v323 = vunpack.c.l.b16 %v39
  %v324 = vunpack.c.l.b16 %v40
  %v325 = vunpack.c.l.b16 %v41
  %v326 = vunpack.c.l.b16 %v42
  %v327 = vunpack.c.l.b16 %v43
  %v328 = vunpack.c.l.b16 %v44
  %v329 = vunpack.c.l.b16 %v45
  %v330 = vunpack.c.l.b16 %v46
  %v331 = vunpack.c.l.b16 %v47
  %v332 = vunpack.c.l.b16 %v48
  %v333 = vunpack.c.l.b16 %v49
  %v334 = vunpack.c.l.b16 %v50
  %v335 = vunpack.c.l.b16 %v51
  %v336 = vunpack.c.l.b16 %v52
  %v337 = vunpack.c.l.b16 %v53
  %v338 = vunpack.c.l.b16 %v54
  %v339 = vunpack.c.l.b16 %v55
  %v340 = vunpack.c.l.b16 %v56
  %v341 = vunpack.c.l.b16 %v57
  %v342 = vunpack.c.l.b16 %v58
  %v343 = vunpack.c.l.b16 %v59
  %v344 = vunpack.c.l.b16 %v60
  %v345 = vunpack.c.l.b16 %v61
  %v346 = vunpack.c.l.b16 %v62
  %v347 = vunpack.c.l.b16 %v63
  %v348 = vunpack.c.l.b16 %v64
  %v349 = vunpack.c.l.b16 %v65
  %v350 = vunpack.c.l.b16 %v66
  %v351 = vunpack.c.l.b16 %v67
  %v352 = vunpack.c.l.b16 %v68
  %v353 = vunpack.c.l.b16 %v69
  %v354 = vunpack.c.l.b16 %v70
  %v355 = vunpack.c.l.b16 %v71
  %v356 = vunpack.c.l.b16 %v72
  %v357 = vunpack.c.l.b16 %v73
  %v358 = vunpack.c.l.b16 %v74
  %v359 = vunpack.c.l.b16 %v75
  %v360 = vunpack.c.l.b16 %v76
  %v361 = vunpack.c.l.b16 %v77
  %v362 = vunpack.c.l.b16 %v78
  %v363 = vunpack.c.l.b16 %v79
  %v364 = vunpack.c.l.b16 %v80
  %v365 = vunpack.c.l.b16 %v81
  %v366 = vunpack.c.l.b16 %v82
  %v367 = vunpack.c.l.b16 %v83
  %v368 = vunpack.c.l.b16 %v84
  %v369 = vunpack.c.l.b16 %v85
  %v370 = vunpack.c.l.b16 %v86
  %v371 = vunpack.c.l.b16 %v87
  %v372 = vunpack.c.l.b16 %v88
  %v373 = vunpack.c.l.b16 %v89
  %v374 = vunpack.c.l.b16 %v90
  %v375 = vunpack.c.l.b16 %v91
  %v376 = vunpack.c.l.b16 %v92
  %v377 = vunpack.c.l.b16 %v93
  %v378 = vunpack.c.l.b16 %v94
  %v379 = vunpack.c.l.b16 %v95
  %v380 = vunpack.c.l.b16 %v96
  %v381 = vunpack.c.l.b16 %v97
  %v382 = vunpack.c.l.b16 %v98
  %v383 = vunpack.c.l.b16 %v99
  %v384 = vunpack.c.l.b16 %v100
  %v385 = vunpack.c.l.b16 %v101
  %v386 = vunpack.c.l.b16 %v102
  %v387 = vunpack.c.l.b16 %v103
  %v388 = vunpack.c.l.b16 %v104
  %v389 = vunpack.c.l.b16 %v105
  %v390 = vunpack.c.l.b16 %v106
  %v391 = vunpack.c.l.b16 %v107
  %v392 = vunpack.c.l.b16 %v108
  %v393 = vunpack.c.l.b16 %v109
  %v394 = vunpack.c.l.b16 %v110
  %v395 = vunpack.c.l.b16 %v111
  %v396 = vunpack.c.l.b16 %v112
  %v397 = vunpack.c.l.b16 %v113
  %v398 = vunpack.c.l.b16 %v114
  %v399 = vunpack.c.l.b16 %v115
  %v400 = vunpack.c.l.b16 %v116
  %v401 = vunpack.c.l.b16 %v117
  %v402 = vunpack.c.l.b16 %v118
  %v403 = vunpack.c.l.b16 %v119
  %v404 = vunpack.c.l.b16 %v120
  %v405 = vunpack.c.l.b16 %v121
  %v406 = vunpack.c.l.b16 %v122
  %v407 = vunpack.c.l.b16 %v123
  %v408 = vunpack.c.l.b16 %v124
  %v409 = vunpack.c.l.b16 %v125
  %v410 = vunpack.c.l.b16 %v126
  %v411 = vunpack.c.l.b16 %v127
  %v412 = vunpack.c.l.b16 %v128
  %v413 = vunpack.c.l.b16 %v129
  %v414 = vunpack.c.l.b16 %v130
  %v415 = vunpack.c.l.b16 %v131
  %v416 = vunpack.c.l.b16 %v132
  %v417 = vunpack.c.l.b16 %v133
  %v418 = vunpack.c.l.b16 %v134
  %v419 = vunpack.c.l.b16 %v135
  %v420 = vunpack.c.l.b16 %v136
  %v421 = vunpack.c.l.b16 %v137
  %v422 = vunpack.c.l.b16 %v138
  %v423 = vunpack.c.l.b16 %v139
  %v424 = vunpack.c.l.b16 %v140
  %v425 = vunpack.c.l.b16 %v141
  %v426 = vunpack.c.l.b16 %v142
  %v427 = vunpack.c.l.b16 %v143
  %v428 = vpack.c.b16 %v301, %v300
  %v429 = vpack.c.b16 %v303, %v302
  %v430 = vpack.c.b16 %v305, %v304
  %v431 = vpack.c.b16 %v307, %v306
  %v432 = vpack.c.b16 %v309, %v308
  %v433 = vpack.c.b16 %v311, %v310
  %v434 = vpack.c.b16 %v313, %v312
  %v435 = vpack.c.b16 %v315, %v314
  %v436 = vpack.c.b16 %v317, %v316
  %v437 = vpack.c.b16 %v319, %v318
  %v438 = vpack.c.b16 %v321, %v320
  %v439 = vpack.c.b16 %v323, %v322
  %v440 = vpack.c.b16 %v325, %v324
  %v441 = vpack.c.b16 %v327, %v326
  %v442 = vpack.c.b16 %v329, %v328
  %v443 = vpack.c.b16 %v331, %v330
  %v444 = vpack.c.b16 %v333, %v332
  %v445 = vpack.c.b16 %v335, %v334
  %v446 = vpack.c.b16 %v337, %v336
  %v447 = vpack.c.b16 %v339, %v338
  %v448 = vpack.c.b16 %v341, %v340
  %v449 = vpack.c.b16 %v343, %v342
  %v450 = vpack.c.b16 %v345, %v344
  %v451 = vpack.c.b16 %v347, %v346
  %v452 = vpack.c.b16 %v349, %v348
  %v453 = vpack.c.b16 %v351, %v350
  %v454 = vpack.c.b16 %v353, %v352
  %v455 = vpack.c.b16 %v355, %v354
  %v456 = vpack.c.b16 %v357, %v356
  %v457 = vpack.c.b16 %v359, %v358
  %v458 = vpack.c.b16 %v361, %v360
  %v459 = vpack.c.b16 %v363, %v362
  %v460 = vpack.c.b16 %v365, %v364
  %v461 = vpack.c.b16 %v367, %v366
  %v462 = vpack.c.b16 %v369, %v368
  %v463 = vpack.c.b16 %v371, %v370
  %v464 = vpack.c.b16 %v373, %v372
  %v465 = vpack.c.b16 %v375, %v374
  %v466 = vpack.c.b16 %v377, %v376
  %v467 = vpack.c.b16 %v379, %v378
  %v468 = vpack.c.b16 %v381, %v380
  %v469 = vpack.c.b16 %v383, %v382
  %v470 = vpack.c.b16 %v385, %v384
  %v471 = vpack.c.b16 %v387, %v386
  %v472 = vpack.c.b16 %v389, %v388
  %v473 = vpack.c.b16 %v391, %v390
  %v474 = vpack.c.b16 %v393, %v392
  %v475 = vpack.c.b16 %v395, %v394
  %v476 = vpack.c.b16 %v397, %v396
  %v477 = vpack.c.b16 %v399, %v398
  %v478 = vpack.c.b16 %v401, %v400
  %v479 = vpack.c.b16 %v403, %v402
  %v480 = vpack.c.b16 %v405, %v404
  %v481 = vpack.c.b16 %v407, %v406
  %v482 = vpack.c.b16 %v409, %v408
  %v483 = vpack.c.b16 %v411, %v410
  %v484 = vpack.c.b16 %v413, %v412
  %v485 = vpack.c.b16 %v415, %v414
  %v486 = vpack.c.b16 %v417, %v416
  %v487 = vpack.c.b16 %v419, %v418
  %v488 = vpack.c.b16 %v421, %v420
  %v489 = vpack.c.b16 %v423, %v422
  %v490 = vpack.c.b16 %v425, %v424
  %v491 = vpack.c.b16 %v427, %v426
  %556 = vmatprep.subr.bf16.mxu0 0
  %557 = vmatpush1.bf16.msra.mxu0 %v435
  %558 = vmatprep.subr.bf16.mxu0 0
  %559 = vmatpush1.bf16.msra.mxu0 %v434
  %560 = vmatprep.subr.bf16.mxu0 0
  %561 = vmatpush1.bf16.msra.mxu0 %v433
  %562 = vmatprep.subr.bf16.mxu0 0
  %563 = vmatpush1.bf16.msra.mxu0 %v432
  %564 = vmatprep.subr.bf16.mxu0 0
  %565 = vmatpush1.bf16.msra.mxu0 %v431
  %566 = vmatprep.subr.bf16.mxu0 0
  %567 = vmatpush1.bf16.msra.mxu0 %v430
  %568 = vmatprep.subr.bf16.mxu0 0
  %569 = vmatpush1.bf16.msra.mxu0 %v429
  %570 = vmatprep.subr.bf16.mxu0 0
  %571 = vmatpush1.bf16.msra.mxu0 %v428
  %572 = vmatprep.subr.bf16.mxu0 0
  %573 = vmatpush2.bf16.msra.mxu0 %v443
  %574 = vmatprep.subr.bf16.mxu0 0
  %575 = vmatpush2.bf16.msra.mxu0 %v442
  %576 = vmatprep.subr.bf16.mxu0 0
  %577 = vmatpush2.bf16.msra.mxu0 %v441
  %578 = vmatprep.subr.bf16.mxu0 0
  %579 = vmatpush2.bf16.msra.mxu0 %v440
  %580 = vmatprep.subr.bf16.mxu0 0
  %581 = vmatpush2.bf16.msra.mxu0 %v439
  %582 = vmatprep.subr.bf16.mxu0 0
  %583 = vmatpush2.bf16.msra.mxu0 %v438
  %584 = vmatprep.subr.bf16.mxu0 0
  %585 = vmatpush2.bf16.msra.mxu0 %v437
  %586 = vmatprep.subr.bf16.mxu0 0
  %587 = vmatpush2.bf16.msra.mxu0 %v436
  %588 = vmatprep.mubr.bf16.mxu0 %v157
  %589 = vmatmul.mubr.bf16.gmra.mxu0 %v156
  %v590 = vpop.f32.mrf.mxu0
  %v591 = vadd.f32 0.0, %v590
  %v592 = vpop.f32.mrf.mxu0
  %v593 = vpop.f32.mrf.mxu0
  %v594 = vpop.f32.mrf.mxu0
  %595 = vdwg.mxu0
  %596 = vmatprep.subr.bf16.mxu0 0
  %597 = vmatpush1.bf16.msra.mxu0 %v451
  %598 = vmatprep.subr.bf16.mxu0 0
  %599 = vmatpush1.bf16.msra.mxu0 %v450
  %600 = vmatprep.subr.bf16.mxu0 0
  %601 = vmatpush1.bf16.msra.mxu0 %v449
  %602 = vmatprep.subr.bf16.mxu0 0
  %603 = vmatpush1.bf16.msra.mxu0 %v448
  %604 = vmatprep.subr.bf16.mxu0 0
  %605 = vmatpush1.bf16.msra.mxu0 %v447
  %606 = vmatprep.subr.bf16.mxu0 0
  %607 = vmatpush1.bf16.msra.mxu0 %v446
  %608 = vmatprep.subr.bf16.mxu0 0
  %609 = vmatpush1.bf16.msra.mxu0 %v445
  %610 = vmatprep.subr.bf16.mxu0 0
  %611 = vmatpush1.bf16.msra.mxu0 %v444
  %612 = vmatprep.subr.bf16.mxu0 0
  %613 = vmatpush2.bf16.msra.mxu0 %v459
  %614 = vmatprep.subr.bf16.mxu0 0
  %615 = vmatpush2.bf16.msra.mxu0 %v458
  %616 = vmatprep.subr.bf16.mxu0 0
  %617 = vmatpush2.bf16.msra.mxu0 %v457
  %618 = vmatprep.subr.bf16.mxu0 0
  %619 = vmatpush2.bf16.msra.mxu0 %v456
  %620 = vmatprep.subr.bf16.mxu0 0
  %621 = vmatpush2.bf16.msra.mxu0 %v455
  %622 = vmatprep.subr.bf16.mxu0 0
  %623 = vmatpush2.bf16.msra.mxu0 %v454
  %624 = vmatprep.subr.bf16.mxu0 0
  %625 = vmatpush2.bf16.msra.mxu0 %v453
  %626 = vmatprep.subr.bf16.mxu0 0
  %627 = vmatpush2.bf16.msra.mxu0 %v452
  %628 = vmatprep.mubr.bf16.mxu0 %v159
  %629 = vmatmul.mubr.bf16.gmra.mxu0 %v158
  %v630 = vpop.f32.mrf.mxu0
  %v631 = vadd.f32 %v591, %v630
  %v632 = vpop.f32.mrf.mxu0
  %v633 = vpop.f32.mrf.mxu0
  %v634 = vpop.f32.mrf.mxu0
  %635 = vdwg.mxu0
  %636 = vmatprep.subr.bf16.mxu0 0
  %637 = vmatpush1.bf16.msra.mxu0 %v467
  %638 = vmatprep.subr.bf16.mxu0 0
  %639 = vmatpush1.bf16.msra.mxu0 %v466
  %640 = vmatprep.subr.bf16.mxu0 0
  %641 = vmatpush1.bf16.msra.mxu0 %v465
  %642 = vmatprep.subr.bf16.mxu0 0
  %643 = vmatpush1.bf16.msra.mxu0 %v464
  %644 = vmatprep.subr.bf16.mxu0 0
  %645 = vmatpush1.bf16.msra.mxu0 %v463
  %646 = vmatprep.subr.bf16.mxu0 0
  %647 = vmatpush1.bf16.msra.mxu0 %v462
  %648 = vmatprep.subr.bf16.mxu0 0
  %649 = vmatpush1.bf16.msra.mxu0 %v461
  %650 = vmatprep.subr.bf16.mxu0 0
  %651 = vmatpush1.bf16.msra.mxu0 %v460
  %652 = vmatprep.subr.bf16.mxu0 0
  %653 = vmatpush2.bf16.msra.mxu0 %v475
  %654 = vmatprep.subr.bf16.mxu0 0
  %655 = vmatpush2.bf16.msra.mxu0 %v474
  %656 = vmatprep.subr.bf16.mxu0 0
  %657 = vmatpush2.bf16.msra.mxu0 %v473
  %658 = vmatprep.subr.bf16.mxu0 0
  %659 = vmatpush2.bf16.msra.mxu0 %v472
  %660 = vmatprep.subr.bf16.mxu0 0
  %661 = vmatpush2.bf16.msra.mxu0 %v471
  %662 = vmatprep.subr.bf16.mxu0 0
  %663 = vmatpush2.bf16.msra.mxu0 %v470
  %664 = vmatprep.subr.bf16.mxu0 0
  %665 = vmatpush2.bf16.msra.mxu0 %v469
  %666 = vmatprep.subr.bf16.mxu0 0
  %667 = vmatpush2.bf16.msra.mxu0 %v468
  %668 = vmatprep.mubr.bf16.mxu0 %v161
  %669 = vmatmul.mubr.bf16.gmra.mxu0 %v160
  %v670 = vpop.f32.mrf.mxu0
  %v671 = vadd.f32 %v631, %v670
  %v672 = vpop.f32.mrf.mxu0
  %v673 = vpop.f32.mrf.mxu0
  %v674 = vpop.f32.mrf.mxu0
  %675 = vdwg.mxu0
  %676 = vmatprep.subr.bf16.mxu0 0
  %677 = vmatpush1.bf16.msra.mxu0 %v483
  %678 = vmatprep.subr.bf16.mxu0 0
  %679 = vmatpush1.bf16.msra.mxu0 %v482
  %680 = vmatprep.subr.bf16.mxu0 0
  %681 = vmatpush1.bf16.msra.mxu0 %v481
  %682 = vmatprep.subr.bf16.mxu0 0
  %683 = vmatpush1.bf16.msra.mxu0 %v480
  %684 = vmatprep.subr.bf16.mxu0 0
  %685 = vmatpush1.bf16.msra.mxu0 %v479
  %686 = vmatprep.subr.bf16.mxu0 0
  %687 = vmatpush1.bf16.msra.mxu0 %v478
  %688 = vmatprep.subr.bf16.mxu0 0
  %689 = vmatpush1.bf16.msra.mxu0 %v477
  %690 = vmatprep.subr.bf16.mxu0 0
  %691 = vmatpush1.bf16.msra.mxu0 %v476
  %692 = vmatprep.subr.bf16.mxu0 0
  %693 = vmatpush2.bf16.msra.mxu0 %v491
  %694 = vmatprep.subr.bf16.mxu0 0
  %695 = vmatpush2.bf16.msra.mxu0 %v490
  %696 = vmatprep.subr.bf16.mxu0 0
  %697 = vmatpush2.bf16.msra.mxu0 %v489
  %698 = vmatprep.subr.bf16.mxu0 0
  %699 = vmatpush2.bf16.msra.mxu0 %v488
  %700 = vmatprep.subr.bf16.mxu0 0
  %701 = vmatpush2.bf16.msra.mxu0 %v487
  %702 = vmatprep.subr.bf16.mxu0 0
  %703 = vmatpush2.bf16.msra.mxu0 %v486
  %704 = vmatprep.subr.bf16.mxu0 0
  %705 = vmatpush2.bf16.msra.mxu0 %v485
  %706 = vmatprep.subr.bf16.mxu0 0
  %707 = vmatpush2.bf16.msra.mxu0 %v484
  %708 = vmatprep.mubr.bf16.mxu0 %v163
  %709 = vmatmul.mubr.bf16.gmra.mxu0 %v162
  %v710 = vpop.f32.mrf.mxu0
  %v711 = vadd.f32 %v671, %v710
  %v712 = vpop.f32.mrf.mxu0
  %v713 = vpop.f32.mrf.mxu0
  %v714 = vpop.f32.mrf.mxu0
  %715 = vdwg.mxu0
  %v716 = vxor.u32 %v711, 2147483648
  %v717 = vmul.f32 %v716, 1.442695
  %v718 = vpow.pop %v717
  %v719 = vadd.f32 %v718, 1.0
  %v720 = vrcp.pop %v719
  %v721 = vmul.f32 1.0, %v720
  %vm722 = vcmask 64512
  %723 = vst.msk [vmem:[%s2] sm:$0xff] %vm722, %v721
  // Predicated region
  $region10: #{discriminator_forward.15} parent=0 // pred_check
    _
  $region11: #{discriminator_forward.15} parent=0 // pred_check_branch
    %725 = sbr.rel (0) target = $region13
  $region12: #{discriminator_forward.15} parent=0 // pred_region
    _
  $region13: #{discriminator_forward.15} parent=0 // pred_fallthru
    _
  // Predicated region
  $region14: #{discriminator_forward.15} parent=0 // pred_check
    _
  $region15: #{discriminator_forward.15} parent=0 // pred_check_branch
    %727 = sbr.rel (0) target = $region17
  $region16: #{discriminator_forward.15} parent=0 // pred_region
    _
  $region17: #{discriminator_forward.15} parent=0 // pred_fallthru
    _

</llo_original>
